<compile_context>
chip_gen: v7x
topology: tpu7x:2x2x1
jax: 0.10.0
libtpu: 0.0.40
codegen_flags: <defaults>
</compile_context>

<pallas_src>
import functools
import math

import jax
import jax.numpy as jnp
import numpy as np
from jax.experimental import pallas as pl
from jax.experimental.pallas import tpu as pltpu

_F32 = jnp.float32
_BF16 = jnp.bfloat16


def _vmem_limit(nbytes):
    # Explicit scoped-VMEM budget: actual tiles + headroom, clamped to 64 MiB (v7x).
    return int(min(max(nbytes + (8 << 20), 32 << 20), 64 << 20))


# ------------------------------ Pallas kernels -------------------------------

def _linear_kernel(x_ref, w_ref, b_ref, o_ref):
    # x: f32 activations, w: bf16 weights resident in HBM, f32 MXU accumulation.
    y = jnp.dot(x_ref[...].astype(_BF16), w_ref[...], preferred_element_type=_F32)
    o_ref[...] = (y + b_ref[...]).astype(o_ref.dtype)


def pallas_linear(x, w_bf16, b2d, *, row_tile=256):
    """(M, K) f32 @ (K, N) bf16 + (1, N) f32 -> (M, N) f32, parallel grid over rows."""
    M, K = x.shape
    N = w_bf16.shape[1]
    tm = M if M <= row_tile else row_tile
    block_bytes = tm * K * 4 + K * N * 2 + N * 4 + tm * N * 4
    return pl.pallas_call(
        _linear_kernel,
        out_shape=jax.ShapeDtypeStruct((M, N), _F32),
        grid=(pl.cdiv(M, tm),),
        in_specs=[
            pl.BlockSpec((tm, K), lambda i: (i, 0)),
            pl.BlockSpec((K, N), lambda i: (0, 0)),
            pl.BlockSpec((1, N), lambda i: (0, 0)),
        ],
        out_specs=pl.BlockSpec((tm, N), lambda i: (i, 0)),
        compiler_params=pltpu.CompilerParams(
            dimension_semantics=("parallel",),
            vmem_limit_bytes=_vmem_limit(2 * block_bytes)),
    )(x, w_bf16, b2d)


def _ln(t, g, b, eps):
    """LayerNorm over the last dim in f32; g/b broadcast from (1, D)."""
    mu = jnp.mean(t, axis=-1, keepdims=True)
    xc = t - mu
    var = jnp.mean(xc * xc, axis=-1, keepdims=True)
    return xc * jax.lax.rsqrt(var + eps) * g + b


def _fused_blocks_kernel(zp_ref, zs_ref,
                         ln1_g, ln1_b, qkv_w, qkv_b, proj_w, proj_b,
                         ln2_g, ln2_b, fc1_w, fc1_b, fc2_w, fc2_b,
                         pg_ref, pb_ref, sg_ref, sb_ref,
                         op_ref, os_ref,
                         z_sc, qkv_sc, o_sc,
                         *, num_heads, eps, mlp_chunk):
    """One grid step = one transformer block (depth axis) for one batch block.

    The residual stream lives in a VMEM scratch carried across the (inner,
    'arbitrary') depth axis; the final per-stream LayerNorms run at the last
    depth step, so the whole neck is a single pallas_call with no HBM
    round-trips in between.
    """
    d = pl.program_id(1)
    Bb, S, D = z_sc.shape
    Sp = zp_ref.shape[1]
    Dh = D // num_heads
    Hm = fc1_w.shape[1]
    M = Bb * S
    scale = 1.0 / math.sqrt(Dh)

    # depth step 0: fuse stream concat (tokens already have pos-embed added).
    @pl.when(d == 0)
    def _():
        z_sc[:, :Sp, :] = zp_ref[...].astype(_F32)
        z_sc[:, Sp:, :] = zs_ref[...].astype(_F32)

    z2 = z_sc[...].reshape(M, D)                 # f32 residual stream, (Bb*S, D)

    # ---- attention sub-block (pre-norm) --------------------------------------
    h = _ln(z2, ln1_g[...], ln1_b[...], eps)
    # One lane-dense (M, D) @ (D, 3D) matmul; result parked in VMEM scratch.
    qkv_sc[...] = jnp.dot(h.astype(_BF16), qkv_w[...],
                          preferred_element_type=_F32) + qkv_b[...]

    # Heads are sliced from the VMEM Ref at static offsets; per-head outputs are
    # merged into o_sc so the output projection is a single K=D matmul.
    # TODO(synk): for large num_heads, a head-batched (H, S, Dh) layout would give
    # the scheduler more ILP than this static unroll.
    for hh in range(num_heads):
        q = qkv_sc[:, hh * Dh:(hh + 1) * Dh].reshape(Bb, S, Dh)
        k = qkv_sc[:, D + hh * Dh:D + (hh + 1) * Dh].reshape(Bb, S, Dh)
        v = qkv_sc[:, 2 * D + hh * Dh:2 * D + (hh + 1) * Dh].reshape(Bb, S, Dh)
        s = jnp.einsum("bqd,bkd->bqk", q.astype(_BF16), k.astype(_BF16),
                       preferred_element_type=_F32) * scale
        s = s - jnp.max(s, axis=-1, keepdims=True)
        p = jnp.exp(s)                                            # f32 softmax
        p = p * pl.reciprocal(jnp.sum(p, axis=-1, keepdims=True), approx=True)
        oh = jnp.einsum("bqk,bkd->bqd", p.astype(_BF16), v.astype(_BF16),
                        preferred_element_type=_F32)
        o_sc[:, hh * Dh:(hh + 1) * Dh] = oh.reshape(M, Dh)

    attn = jnp.dot(o_sc[...].astype(_BF16), proj_w[...],
                   preferred_element_type=_F32) + proj_b[...]
    z2 = z2 + attn

    # ---- MLP sub-block (pre-norm), hidden dim processed in lane chunks -------
    h = _ln(z2, ln2_g[...], ln2_b[...], eps).astype(_BF16)
    mlp = jnp.zeros((M, D), _F32)
    for c0 in range(0, Hm, mlp_chunk):
        c1 = min(c0 + mlp_chunk, Hm)
        hc = jnp.dot(h, fc1_w[:, c0:c1], preferred_element_type=_F32) + fc1_b[:, c0:c1]
        # TODO(synk): use approximate=False (erf) if bit-matching torch nn.GELU()
        # is required; tanh-GELU halves EUP work per the perf review.
        hc = jax.nn.gelu(hc, approximate=True)
        mlp = mlp + jnp.dot(hc.astype(_BF16), fc2_w[c0:c1, :],
                            preferred_element_type=_F32)
    z2 = z2 + mlp + fc2_b[...]

    z_new = z2.reshape(Bb, S, D)
    z_sc[...] = z_new

    # ---- final per-stream output LayerNorms after the last block -------------
    # Correct because both output index_maps are constant in d, so writeback
    # happens exactly once per batch block, after the last depth step.
    @pl.when(d == pl.num_programs(1) - 1)
    def _():
        op_ref[...] = _ln(z_new[:, :Sp, :], pg_ref[...], pb_ref[...], eps).astype(op_ref.dtype)
        os_ref[...] = _ln(z_new[:, Sp:, :], sg_ref[...], sb_ref[...], eps).astype(os_ref.dtype)


def fused_two_stream_transformer(zp, zs, blocks, out_norms, *, num_heads,
                                 batch_block=8, mlp_chunk=512):
    """zp: (B, Sp, D), zs: (B, Ss, D) (pos-embed already added).  All transformer
    blocks + per-stream output norms in ONE pallas_call, grid = (B//Bb, depth)."""
    B, Sp, D = zp.shape
    Ss = zs.shape[1]
    S = Sp + Ss
    depth = blocks["qkv_w"].shape[0]
    Hm = blocks["fc1_w"].shape[2]
    Bb = B if B <= batch_block else batch_block
    assert B % Bb == 0, (B, Bb)

    kernel = functools.partial(_fused_blocks_kernel, num_heads=num_heads,
                               eps=1e-6, mlp_chunk=mlp_chunk)

    def stk(r, c):   # depth-stacked parameter: leading depth dim follows grid axis 1
        return pl.BlockSpec((None, r, c), lambda b, d: (d, 0, 0))

    def cst(r, c):   # grid-constant small parameter
        return pl.BlockSpec((r, c), lambda b, d: (0, 0))

    # Per-step VMEM budget: double-buffered blocks + persistent scratches.
    wbytes = 2 * (D * 3 * D + D * D + D * Hm + Hm * D)            # bf16 weights
    pbytes = 4 * (3 * D + D + Hm + D) + 4 * 8 * D                 # f32 biases + LN params
    tbytes = 4 * Bb * S * D * 2                                   # in + out token blocks
    sbytes = 4 * (Bb * S * D + Bb * S * 3 * D + Bb * S * D)       # scratches
    vmem = _vmem_limit(2 * (wbytes + pbytes + tbytes) + sbytes)

    pg, pb, sg, sb = out_norms
    return pl.pallas_call(
        kernel,
        out_shape=(jax.ShapeDtypeStruct((B, Sp, D), _F32),
                   jax.ShapeDtypeStruct((B, Ss, D), _F32)),
        grid=(B // Bb, depth),
        in_specs=[
            pl.BlockSpec((Bb, Sp, D), lambda b, d: (b, 0, 0)),     # primary tokens
            pl.BlockSpec((Bb, Ss, D), lambda b, d: (b, 0, 0)),     # secondary tokens
            stk(1, D), stk(1, D),                                  # ln1 gamma/beta
            stk(D, 3 * D), stk(1, 3 * D),                          # qkv w/b
            stk(D, D), stk(1, D),                                  # proj w/b
            stk(1, D), stk(1, D),                                  # ln2 gamma/beta
            stk(D, Hm), stk(1, Hm),                                # fc1 w/b
            stk(Hm, D), stk(1, D),                                 # fc2 w/b
            cst(1, D), cst(1, D),                                  # primary out-norm g/b
            cst(1, D), cst(1, D),                                  # secondary out-norm g/b
        ],
        out_specs=[
            pl.BlockSpec((Bb, Sp, D), lambda b, d: (b, 0, 0)),
            pl.BlockSpec((Bb, Ss, D), lambda b, d: (b, 0, 0)),
        ],
        scratch_shapes=[
            pltpu.VMEM((Bb, S, D), _F32),        # residual stream
            pltpu.VMEM((Bb * S, 3 * D), _F32),   # QKV matmul output
            pltpu.VMEM((Bb * S, D), _F32),       # merged per-head attention output
        ],
        compiler_params=pltpu.CompilerParams(
            dimension_semantics=("parallel", "arbitrary"),
            vmem_limit_bytes=vmem),
    )(zp, zs,
      blocks["ln1_g"], blocks["ln1_b"],
      blocks["qkv_w"], blocks["qkv_b"],
      blocks["proj_w"], blocks["proj_b"],
      blocks["ln2_g"], blocks["ln2_b"],
      blocks["fc1_w"], blocks["fc1_b"],
      blocks["fc2_w"], blocks["fc2_b"],
      pg, pb, sg, sb)


# --------------------------------- JAX glue -----------------------------------

def patchify(x, patch_size):
    """x: (B, C, T, H, W) -> (B, N, C*pt*ph*pw); token order = (T', H', W'),
    feature order = (C, pt, ph, pw), matching Conv3d(kernel=stride=patch)."""
    B, C, T, H, W = x.shape
    pt, ph, pw = patch_size
    x = x.reshape(B, C, T // pt, pt, H // ph, ph, W // pw, pw)
    x = x.transpose(0, 2, 4, 6, 1, 3, 5, 7)
    return x.reshape(B, (T // pt) * (H // ph) * (W // pw), C * pt * ph * pw)


def sinusoidal_pos_embedding(positions, hidden_dim):
    """Non-learnable sinusoid table, (1, positions, hidden_dim). Precomputed once."""
    pos = np.arange(positions)[:, None].astype(np.float64)
    i = np.arange(hidden_dim)[None, :].astype(np.float64)
    angle = pos / np.power(10000.0, (2.0 * (i // 2)) / hidden_dim)
    pe = np.zeros((positions, hidden_dim), dtype=np.float64)
    pe[:, 0::2] = np.sin(angle[:, 0::2])
    pe[:, 1::2] = np.cos(angle[:, 1::2])
    return jnp.asarray(pe[None], dtype=_F32)


def mask_keep(z, mask, n_keep):
    """Equivalent of z[~mask].reshape(B, -1, C) when every row keeps n_keep tokens.
    Stable argsort of the boolean mask preserves original token order."""
    order = jnp.argsort(mask.astype(jnp.int32), axis=1)   # False (keep) first, stable
    keep_idx = order[:, :n_keep]
    return jnp.take_along_axis(z, keep_idx[:, :, None], axis=1)


def build_forward(cfg, n_keep_p, n_keep_s):
    D = cfg["embed_dim"]
    num_heads = cfg["num_heads"]

    @jax.jit
    def fwd(params, pe_p, pe_s, x_primary, mask_primary, x_secondary, mask_secondary):
        B = x_primary.shape[0]

        # (1) Patch embeddings (Conv3d with kernel == stride  ≡  patchify + linear)
        xp = patchify(x_primary, cfg["patch_size_p"])
        Np = xp.shape[1]
        xp = pallas_linear(xp.reshape(B * Np, -1),
                           params["patch_w_p"], params["patch_b_p"]).reshape(B, Np, D)
        xs = patchify(x_secondary, cfg["patch_size_s"])
        Ns = xs.shape[1]
        xs = pallas_linear(xs.reshape(B * Ns, -1),
                           params["patch_w_s"], params["patch_b_s"]).reshape(B, Ns, D)

        # (2) Positional embeddings (precomputed sinusoid tables)
        pep = jnp.broadcast_to(pe_p, (B, Np, D))
        pes = jnp.broadcast_to(pe_s, (B, Ns, D))

        # (3) Keep ~mask tokens and pos-embeds (per-row keep count is static),
        #     add pos-embed; the stream concat is fused into the transformer kernel.
        zp = mask_keep(xp, mask_primary, n_keep_p) + mask_keep(pep, mask_primary, n_keep_p)
        zs = mask_keep(xs, mask_secondary, n_keep_s) + mask_keep(pes, mask_secondary, n_keep_s)

        # (4 + 5) TwoStreamTransformer neck + per-stream output norms, fully fused.
        # TODO(synk): exact TwoStreamTransformer block wiring (per-stream vs. shared
        # weights / cross-attention) is not in the reference snippet; implemented as
        # pre-norm ViT blocks with joint attention over (primary ++ secondary) tokens.
        zp_out, zs_out = fused_two_stream_transformer(
            zp, zs, params["blocks"],
            (params["primary_norm_g"], params["primary_norm_b"],
             params["secondary_norm_g"], params["secondary_norm_b"]),
            num_heads=num_heads)
        return zp_out, zs_out, mask_primary, mask_secondary

    return fwd


# ----------------------------- deterministic init ------------------------------

def init_params(key, cfg):
    D = cfg["embed_dim"]
    Hm = cfg["mlp_hidden"]
    depth = cfg["depth"]
    keys = jax.random.split(key, 2 + 4 * depth)

    def lin(k, fan_in, fan_out):
        # ~trunc_normal(0.02); stored bf16 in HBM (f32 MXU accumulation in-kernel)
        return (jax.random.normal(k, (fan_in, fan_out), _F32) * 0.02).astype(_BF16)

    blocks = {
        "ln1_g": jnp.ones((depth, 1, D), _F32),
        "ln1_b": jnp.zeros((depth, 1, D), _F32),
        "ln2_g": jnp.ones((depth, 1, D), _F32),
        "ln2_b": jnp.zeros((depth, 1, D), _F32),
        "qkv_w": jnp.stack([lin(keys[2 + 4 * i + 0], D, 3 * D) for i in range(depth)]),
        "qkv_b": jnp.zeros((depth, 1, 3 * D), _F32),
        "proj_w": jnp.stack([lin(keys[2 + 4 * i + 1], D, D) for i in range(depth)]),
        "proj_b": jnp.zeros((depth, 1, D), _F32),
        "fc1_w": jnp.stack([lin(keys[2 + 4 * i + 2], D, Hm) for i in range(depth)]),
        "fc1_b": jnp.zeros((depth, 1, Hm), _F32),
        "fc2_w": jnp.stack([lin(keys[2 + 4 * i + 3], Hm, D) for i in range(depth)]),
        "fc2_b": jnp.zeros((depth, 1, D), _F32),
    }
    return {
        "patch_w_p": lin(keys[0], cfg["patch_dim_p"], D),
        "patch_b_p": jnp.zeros((1, D), _F32),
        "patch_w_s": lin(keys[1], cfg["patch_dim_s"], D),
        "patch_b_s": jnp.zeros((1, D), _F32),
        "primary_norm_g": jnp.ones((1, D), _F32),
        "primary_norm_b": jnp.zeros((1, D), _F32),
        "secondary_norm_g": jnp.ones((1, D), _F32),
        "secondary_norm_b": jnp.zeros((1, D), _F32),
        "blocks": blocks,
    }


def make_mask(key, B, N, n_mask):
    rows = []
    for b in range(B):
        perm = jax.random.permutation(jax.random.fold_in(key, b), N)
        row = jnp.zeros((N,), jnp.bool_).at[perm[:n_mask]].set(True)
        rows.append(row)
    return jnp.stack(rows)


# ------------------------------------ main -------------------------------------

if __name__ == "__main__":
    B = 2
    cfg = {
        "embed_dim": 32,
        "num_heads": 4,
        "depth": 2,
        "mlp_hidden": 128,
        # primary stream: C=3 video, T=4, 16x16, tubelet patches (2,8,8)
        "patch_size_p": (2, 8, 8),
        "inp_p": (3, 4, 16, 16),
        # secondary stream: C=2 (e.g. flow), same spatio-temporal size
        "patch_size_s": (2, 8, 8),
        "inp_s": (2, 4, 16, 16),
    }
    cfg["patch_dim_p"] = cfg["inp_p"][0] * int(np.prod(cfg["patch_size_p"]))
    cfg["patch_dim_s"] = cfg["inp_s"][0] * int(np.prod(cfg["patch_size_s"]))

    Cp, Tp, Hp, Wp = cfg["inp_p"]
    Cs, Ts, Hs, Ws = cfg["inp_s"]
    pt, ph, pw = cfg["patch_size_p"]
    Np = (Tp // pt) * (Hp // ph) * (Wp // pw)      # 8 tokens
    Ns = (Ts // pt) * (Hs // ph) * (Ws // pw)      # 8 tokens
    D = cfg["embed_dim"]

    root = jax.random.PRNGKey(0)
    k_params, k_xp, k_xs, k_mp, k_ms = jax.random.split(root, 5)

    params = init_params(k_params, cfg)
    pe_p = sinusoidal_pos_embedding(Np, D)         # precomputed once (outside jit)
    pe_s = sinusoidal_pos_embedding(Ns, D)

    x_primary = jax.random.normal(k_xp, (B, Cp, Tp, Hp, Wp), _F32)
    x_secondary = jax.random.normal(k_xs, (B, Cs, Ts, Hs, Ws), _F32)

    n_mask_p, n_mask_s = 4, 4                      # mask half the tokens per stream
    mask_primary = make_mask(k_mp, B, Np, n_mask_p)     # True = masked out
    mask_secondary = make_mask(k_ms, B, Ns, n_mask_s)
    n_keep_p, n_keep_s = Np - n_mask_p, Ns - n_mask_s

    fwd = build_forward(cfg, n_keep_p, n_keep_s)
    z_primary, z_secondary, mp_out, ms_out = fwd(
        params, pe_p, pe_s, x_primary, mask_primary, x_secondary, mask_secondary)

    jax.block_until_ready((z_primary, z_secondary, mp_out, ms_out))
    assert z_primary.shape == (B, n_keep_p, D)
    assert z_secondary.shape == (B, n_keep_s, D)
    assert bool(jnp.all(jnp.isfinite(z_primary))) and bool(jnp.all(jnp.isfinite(z_secondary)))
    print("KERNEL_OK")
</pallas_src>

<mosaic_0001>
module attributes {stable_mosaic.version = 11 : i64} {
  func.func @_linear_kernel(%arg0: i32, %arg1: memref<16x384xf32, #tpu.memory_space<vmem>>, %arg2: memref<384x32xbf16, #tpu.memory_space<vmem>>, %arg3: memref<1x32xf32, #tpu.memory_space<vmem>>, %arg4: memref<16x32xf32, #tpu.memory_space<vmem>>) attributes {dimension_semantics = [#tpu.dimension_semantics<parallel>], iteration_bounds = array<i64: 1>, scalar_prefetch = 0 : i64, scratch_operands = 0 : i64, tpu.core_type = #tpu.core_type<tc>, window_params = [{transform_indices = @transform_0, window_bounds = array<i64: 16, 384>}, {pipeline_mode = #tpu.pipeline_mode<synchronous>, transform_indices = @transform_1, window_bounds = array<i64: 384, 32>}, {pipeline_mode = #tpu.pipeline_mode<synchronous>, transform_indices = @transform_2, window_bounds = array<i64: 1, 32>}, {transform_indices = @transform_3, window_bounds = array<i64: 16, 32>}]} {
    %c0 = arith.constant 0 : index
    %c0_0 = arith.constant 0 : index
    %0 = vector.load %arg1[%c0, %c0_0] : memref<16x384xf32, #tpu.memory_space<vmem>>, vector<16x384xf32>
    %1 = arith.truncf %0 : vector<16x384xf32> to vector<16x384xbf16>
    %c0_1 = arith.constant 0 : index
    %c0_2 = arith.constant 0 : index
    %2 = vector.load %arg2[%c0_1, %c0_2] : memref<384x32xbf16, #tpu.memory_space<vmem>>, vector<384x32xbf16>
    %cst = arith.constant dense<0.000000e+00> : vector<16x32xf32>
    %3 = tpu.matmul %1, %2, %cst {dimension_numbers = #tpu.dot_dimension_numbers<[1], [0], [0], [1], [0, 0, 1, 1], [], []>} : vector<16x384xbf16>, vector<384x32xbf16>, vector<16x32xf32> -> vector<16x32xf32>
    %c0_3 = arith.constant 0 : index
    %c0_4 = arith.constant 0 : index
    %4 = vector.load %arg3[%c0_3, %c0_4] : memref<1x32xf32, #tpu.memory_space<vmem>>, vector<1x32xf32>
    %5 = vector.broadcast %4 : vector<1x32xf32> to vector<16x32xf32>
    %6 = arith.addf %3, %5 : vector<16x32xf32>
    %c0_5 = arith.constant 0 : index
    %c0_6 = arith.constant 0 : index
    %7 = vector.load %arg4[%c0_5, %c0_6] : memref<16x32xf32, #tpu.memory_space<vmem>>, vector<16x32xf32>
    tpu.vector_store %arg4[%c0_5, %c0_6], %6 {strides = array<i32>} : memref<16x32xf32, #tpu.memory_space<vmem>>, vector<16x32xf32>,
    return
  }
  func.func @transform_0(%arg0: i32) -> (i32, i32) {
    %c0_i32 = arith.constant 0 : i32
    %c0_i32_0 = arith.constant 0 : i32
    return %arg0, %c0_i32 : i32, i32
  }
  func.func @transform_1(%arg0: i32) -> (i32, i32) {
    %c0_i32 = arith.constant 0 : i32
    %c0_i32_0 = arith.constant 0 : i32
    %c0_i32_1 = arith.constant 0 : i32
    return %c0_i32, %c0_i32_0 : i32, i32
  }
  func.func @transform_2(%arg0: i32) -> (i32, i32) {
    %c0_i32 = arith.constant 0 : i32
    %c0_i32_0 = arith.constant 0 : i32
    %c0_i32_1 = arith.constant 0 : i32
    return %c0_i32, %c0_i32_0 : i32, i32
  }
  func.func @transform_3(%arg0: i32) -> (i32, i32) {
    %c0_i32 = arith.constant 0 : i32
    %c0_i32_0 = arith.constant 0 : i32
    return %arg0, %c0_i32 : i32, i32
  }
}

module attributes {stable_mosaic.version = 11 : i64} {
  func.func @_linear_kernel(%arg0: i32, %arg1: memref<16x256xf32, #tpu.memory_space<vmem>>, %arg2: memref<256x32xbf16, #tpu.memory_space<vmem>>, %arg3: memref<1x32xf32, #tpu.memory_space<vmem>>, %arg4: memref<16x32xf32, #tpu.memory_space<vmem>>) attributes {dimension_semantics = [#tpu.dimension_semantics<parallel>], iteration_bounds = array<i64: 1>, scalar_prefetch = 0 : i64, scratch_operands = 0 : i64, tpu.core_type = #tpu.core_type<tc>, window_params = [{transform_indices = @transform_0, window_bounds = array<i64: 16, 256>}, {pipeline_mode = #tpu.pipeline_mode<synchronous>, transform_indices = @transform_1, window_bounds = array<i64: 256, 32>}, {pipeline_mode = #tpu.pipeline_mode<synchronous>, transform_indices = @transform_2, window_bounds = array<i64: 1, 32>}, {transform_indices = @transform_3, window_bounds = array<i64: 16, 32>}]} {
    %c0 = arith.constant 0 : index
    %c0_0 = arith.constant 0 : index
    %0 = vector.load %arg1[%c0, %c0_0] : memref<16x256xf32, #tpu.memory_space<vmem>>, vector<16x256xf32>
    %1 = arith.truncf %0 : vector<16x256xf32> to vector<16x256xbf16>
    %c0_1 = arith.constant 0 : index
    %c0_2 = arith.constant 0 : index
    %2 = vector.load %arg2[%c0_1, %c0_2] : memref<256x32xbf16, #tpu.memory_space<vmem>>, vector<256x32xbf16>
    %cst = arith.constant dense<0.000000e+00> : vector<16x32xf32>
    %3 = tpu.matmul %1, %2, %cst {dimension_numbers = #tpu.dot_dimension_numbers<[1], [0], [0], [1], [0, 0, 1, 1], [], []>} : vector<16x256xbf16>, vector<256x32xbf16>, vector<16x32xf32> -> vector<16x32xf32>
    %c0_3 = arith.constant 0 : index
    %c0_4 = arith.constant 0 : index
    %4 = vector.load %arg3[%c0_3, %c0_4] : memref<1x32xf32, #tpu.memory_space<vmem>>, vector<1x32xf32>
    %5 = vector.broadcast %4 : vector<1x32xf32> to vector<16x32xf32>
    %6 = arith.addf %3, %5 : vector<16x32xf32>
    %c0_5 = arith.constant 0 : index
    %c0_6 = arith.constant 0 : index
    %7 = vector.load %arg4[%c0_5, %c0_6] : memref<16x32xf32, #tpu.memory_space<vmem>>, vector<16x32xf32>
    tpu.vector_store %arg4[%c0_5, %c0_6], %6 {strides = array<i32>} : memref<16x32xf32, #tpu.memory_space<vmem>>, vector<16x32xf32>,
    return
  }
  func.func @transform_0(%arg0: i32) -> (i32, i32) {
    %c0_i32 = arith.constant 0 : i32
    %c0_i32_0 = arith.constant 0 : i32
    return %arg0, %c0_i32 : i32, i32
  }
  func.func @transform_1(%arg0: i32) -> (i32, i32) {
    %c0_i32 = arith.constant 0 : i32
    %c0_i32_0 = arith.constant 0 : i32
    %c0_i32_1 = arith.constant 0 : i32
    return %c0_i32, %c0_i32_0 : i32, i32
  }
  func.func @transform_2(%arg0: i32) -> (i32, i32) {
    %c0_i32 = arith.constant 0 : i32
    %c0_i32_0 = arith.constant 0 : i32
    %c0_i32_1 = arith.constant 0 : i32
    return %c0_i32, %c0_i32_0 : i32, i32
  }
  func.func @transform_3(%arg0: i32) -> (i32, i32) {
    %c0_i32 = arith.constant 0 : i32
    %c0_i32_0 = arith.constant 0 : i32
    return %arg0, %c0_i32 : i32, i32
  }
}

module attributes {stable_mosaic.version = 11 : i64} {
  func.func @_fused_blocks_kernel(%arg0: i32, %arg1: i32, %arg2: memref<2x4x32xf32, #tpu.memory_space<vmem>>, %arg3: memref<2x4x32xf32, #tpu.memory_space<vmem>>, %arg4: memref<1x1x32xf32, #tpu.memory_space<vmem>>, %arg5: memref<1x1x32xf32, #tpu.memory_space<vmem>>, %arg6: memref<1x32x96xbf16, #tpu.memory_space<vmem>>, %arg7: memref<1x1x96xf32, #tpu.memory_space<vmem>>, %arg8: memref<1x32x32xbf16, #tpu.memory_space<vmem>>, %arg9: memref<1x1x32xf32, #tpu.memory_space<vmem>>, %arg10: memref<1x1x32xf32, #tpu.memory_space<vmem>>, %arg11: memref<1x1x32xf32, #tpu.memory_space<vmem>>, %arg12: memref<1x32x128xbf16, #tpu.memory_space<vmem>>, %arg13: memref<1x1x128xf32, #tpu.memory_space<vmem>>, %arg14: memref<1x128x32xbf16, #tpu.memory_space<vmem>>, %arg15: memref<1x1x32xf32, #tpu.memory_space<vmem>>, %arg16: memref<1x32xf32, #tpu.memory_space<vmem>>, %arg17: memref<1x32xf32, #tpu.memory_space<vmem>>, %arg18: memref<1x32xf32, #tpu.memory_space<vmem>>, %arg19: memref<1x32xf32, #tpu.memory_space<vmem>>, %arg20: memref<2x4x32xf32, #tpu.memory_space<vmem>>, %arg21: memref<2x4x32xf32, #tpu.memory_space<vmem>>, %arg22: memref<2x8x32xf32, #tpu.memory_space<vmem>>, %arg23: memref<16x96xf32, #tpu.memory_space<vmem>>, %arg24: memref<16x32xf32, #tpu.memory_space<vmem>>) attributes {dimension_semantics = [#tpu.dimension_semantics<parallel>, #tpu.dimension_semantics<arbitrary>], iteration_bounds = array<i64: 1, 2>, scalar_prefetch = 0 : i64, scratch_operands = 3 : i64, tpu.core_type = #tpu.core_type<tc>, window_params = [{transform_indices = @transform_0, window_bounds = array<i64: 2, 4, 32>}, {transform_indices = @transform_1, window_bounds = array<i64: 2, 4, 32>}, {transform_indices = @transform_2, window_bounds = array<i64: 1, 1, 32>}, {transform_indices = @transform_3, window_bounds = array<i64: 1, 1, 32>}, {transform_indices = @transform_4, window_bounds = array<i64: 1, 32, 96>}, {transform_indices = @transform_5, window_bounds = array<i64: 1, 1, 96>}, {transform_indices = @transform_6, window_bounds = array<i64: 1, 32, 32>}, {transform_indices = @transform_7, window_bounds = array<i64: 1, 1, 32>}, {transform_indices = @transform_8, window_bounds = array<i64: 1, 1, 32>}, {transform_indices = @transform_9, window_bounds = array<i64: 1, 1, 32>}, {transform_indices = @transform_10, window_bounds = array<i64: 1, 32, 128>}, {transform_indices = @transform_11, window_bounds = array<i64: 1, 1, 128>}, {transform_indices = @transform_12, window_bounds = array<i64: 1, 128, 32>}, {transform_indices = @transform_13, window_bounds = array<i64: 1, 1, 32>}, {pipeline_mode = #tpu.pipeline_mode<synchronous>, transform_indices = @transform_14, window_bounds = array<i64: 1, 32>}, {pipeline_mode = #tpu.pipeline_mode<synchronous>, transform_indices = @transform_15, window_bounds = array<i64: 1, 32>}, {pipeline_mode = #tpu.pipeline_mode<synchronous>, transform_indices = @transform_16, window_bounds = array<i64: 1, 32>}, {pipeline_mode = #tpu.pipeline_mode<synchronous>, transform_indices = @transform_17, window_bounds = array<i64: 1, 32>}, {transform_indices = @transform_18, window_bounds = array<i64: 2, 4, 32>}, {transform_indices = @transform_19, window_bounds = array<i64: 2, 4, 32>}]} {
    %c0_i32 = arith.constant 0 : i32
    %0 = arith.cmpi eq, %arg1, %c0_i32 : i32
    %1 = arith.extui %0 : i1 to i32
    %c0_i32_0 = arith.constant 0 : i32
    %2 = arith.cmpi ne, %1, %c0_i32_0 : i32
    scf.if %2 {
      %c0_106 = arith.constant 0 : index
      %c0_107 = arith.constant 0 : index
      %c0_108 = arith.constant 0 : index
      %213 = vector.load %arg2[%c0_106, %c0_107, %c0_108] : memref<2x4x32xf32, #tpu.memory_space<vmem>>, vector<2x4x32xf32>
      %c0_109 = arith.constant 0 : index
      %c0_110 = arith.constant 0 : index
      %c0_111 = arith.constant 0 : index
      %214 = vector.load %arg22[%c0_109, %c0_110, %c0_111] : memref<2x8x32xf32, #tpu.memory_space<vmem>>, vector<2x4x32xf32>
      tpu.vector_store %arg22[%c0_109, %c0_110, %c0_111], %213 {strides = array<i32>} : memref<2x8x32xf32, #tpu.memory_space<vmem>>, vector<2x4x32xf32>,
      %c0_112 = arith.constant 0 : index
      %c0_113 = arith.constant 0 : index
      %c0_114 = arith.constant 0 : index
      %215 = vector.load %arg3[%c0_112, %c0_113, %c0_114] : memref<2x4x32xf32, #tpu.memory_space<vmem>>, vector<2x4x32xf32>
      %c0_115 = arith.constant 0 : index
      %c4 = arith.constant 4 : index
      %c0_116 = arith.constant 0 : index
      %216 = vector.load %arg22[%c0_115, %c4, %c0_116] : memref<2x8x32xf32, #tpu.memory_space<vmem>>, vector<2x4x32xf32>
      tpu.vector_store %arg22[%c0_115, %c4, %c0_116], %215 {strides = array<i32>} : memref<2x8x32xf32, #tpu.memory_space<vmem>>, vector<2x4x32xf32>,
    } else {
    }
    %c0 = arith.constant 0 : index
    %c0_1 = arith.constant 0 : index
    %c0_2 = arith.constant 0 : index
    %3 = vector.load %arg22[%c0, %c0_1, %c0_2] : memref<2x8x32xf32, #tpu.memory_space<vmem>>, vector<2x8x32xf32>
    %4 = vector.shape_cast %3 : vector<2x8x32xf32> to vector<16x32xf32>
    %c0_3 = arith.constant 0 : index
    %c0_4 = arith.constant 0 : index
    %c0_5 = arith.constant 0 : index
    %5 = vector.load %arg4[%c0_3, %c0_4, %c0_5] : memref<1x1x32xf32, #tpu.memory_space<vmem>>, vector<1x1x32xf32>
    %6 = vector.shape_cast %5 : vector<1x1x32xf32> to vector<1x32xf32>
    %c0_6 = arith.constant 0 : index
    %c0_7 = arith.constant 0 : index
    %c0_8 = arith.constant 0 : index
    %7 = vector.load %arg5[%c0_6, %c0_7, %c0_8] : memref<1x1x32xf32, #tpu.memory_space<vmem>>, vector<1x1x32xf32>
    %8 = vector.shape_cast %7 : vector<1x1x32xf32> to vector<1x32xf32>
    %cst = arith.constant dense<0.000000e+00> : vector<16xf32>
    %9 = vector.multi_reduction <add>, %4, %cst [1] : vector<16x32xf32> to vector<16xf32>
    %10 = vector.shape_cast %9 : vector<16xf32> to vector<16x1xf32>
    %cst_9 = arith.constant 3.200000e+01 : f32
    %11 = vector.broadcast %cst_9 : f32 to vector<16x1xf32>
    %12 = arith.divf %10, %11 : vector<16x1xf32>
    %13 = vector.broadcast %12 : vector<16x1xf32> to vector<16x32xf32>
    %14 = arith.subf %4, %13 : vector<16x32xf32>
    %15 = arith.mulf %14, %14 : vector<16x32xf32>
    %cst_10 = arith.constant dense<0.000000e+00> : vector<16xf32>
    %16 = vector.multi_reduction <add>, %15, %cst_10 [1] : vector<16x32xf32> to vector<16xf32>
    %17 = vector.shape_cast %16 : vector<16xf32> to vector<16x1xf32>
    %cst_11 = arith.constant 3.200000e+01 : f32
    %18 = vector.broadcast %cst_11 : f32 to vector<16x1xf32>
    %19 = arith.divf %17, %18 : vector<16x1xf32>
    %cst_12 = arith.constant 9.99999997E-7 : f32
    %20 = vector.broadcast %cst_12 : f32 to vector<16x1xf32>
    %21 = arith.addf %19, %20 : vector<16x1xf32>
    %22 = math.rsqrt %21 : vector<16x1xf32>
    %23 = vector.broadcast %22 : vector<16x1xf32> to vector<16x32xf32>
    %24 = arith.mulf %14, %23 : vector<16x32xf32>
    %25 = vector.broadcast %6 : vector<1x32xf32> to vector<16x32xf32>
    %26 = arith.mulf %24, %25 : vector<16x32xf32>
    %27 = vector.broadcast %8 : vector<1x32xf32> to vector<16x32xf32>
    %28 = arith.addf %26, %27 : vector<16x32xf32>
    %29 = arith.truncf %28 : vector<16x32xf32> to vector<16x32xbf16>
    %c0_13 = arith.constant 0 : index
    %c0_14 = arith.constant 0 : index
    %c0_15 = arith.constant 0 : index
    %30 = vector.load %arg6[%c0_13, %c0_14, %c0_15] : memref<1x32x96xbf16, #tpu.memory_space<vmem>>, vector<1x32x96xbf16>
    %31 = vector.shape_cast %30 : vector<1x32x96xbf16> to vector<32x96xbf16>
    %cst_16 = arith.constant dense<0.000000e+00> : vector<16x96xf32>
    %32 = tpu.matmul %29, %31, %cst_16 {dimension_numbers = #tpu.dot_dimension_numbers<[1], [0], [0], [1], [0, 0, 1, 1], [], []>} : vector<16x32xbf16>, vector<32x96xbf16>, vector<16x96xf32> -> vector<16x96xf32>
    %c0_17 = arith.constant 0 : index
    %c0_18 = arith.constant 0 : index
    %c0_19 = arith.constant 0 : index
    %33 = vector.load %arg7[%c0_17, %c0_18, %c0_19] : memref<1x1x96xf32, #tpu.memory_space<vmem>>, vector<1x1x96xf32>
    %34 = vector.shape_cast %33 : vector<1x1x96xf32> to vector<1x96xf32>
    %35 = vector.broadcast %34 : vector<1x96xf32> to vector<16x96xf32>
    %36 = arith.addf %32, %35 : vector<16x96xf32>
    %c0_20 = arith.constant 0 : index
    %c0_21 = arith.constant 0 : index
    %37 = vector.load %arg23[%c0_20, %c0_21] : memref<16x96xf32, #tpu.memory_space<vmem>>, vector<16x96xf32>
    tpu.vector_store %arg23[%c0_20, %c0_21], %36 {strides = array<i32>} : memref<16x96xf32, #tpu.memory_space<vmem>>, vector<16x96xf32>,
    %c0_22 = arith.constant 0 : index
    %c0_23 = arith.constant 0 : index
    %38 = vector.load %arg23[%c0_22, %c0_23] : memref<16x96xf32, #tpu.memory_space<vmem>>, vector<16x8xf32>
    %39 = vector.shape_cast %38 : vector<16x8xf32> to vector<2x8x8xf32>
    %c0_24 = arith.constant 0 : index
    %c32 = arith.constant 32 : index
    %40 = vector.load %arg23[%c0_24, %c32] : memref<16x96xf32, #tpu.memory_space<vmem>>, vector<16x8xf32>
    %41 = vector.shape_cast %40 : vector<16x8xf32> to vector<2x8x8xf32>
    %c0_25 = arith.constant 0 : index
    %c64 = arith.constant 64 : index
    %42 = vector.load %arg23[%c0_25, %c64] : memref<16x96xf32, #tpu.memory_space<vmem>>, vector<16x8xf32>
    %43 = vector.shape_cast %42 : vector<16x8xf32> to vector<2x8x8xf32>
    %44 = arith.truncf %39 : vector<2x8x8xf32> to vector<2x8x8xbf16>
    %45 = arith.truncf %41 : vector<2x8x8xf32> to vector<2x8x8xbf16>
    "tpu.trace_start"() <{level = 10 : i32, message = "bqd,bkd->bqk"}> : () -> ()
    %cst_26 = arith.constant dense<0.000000e+00> : vector<2x8x8xf32>
    %46 = tpu.matmul %44, %45, %cst_26 {dimension_numbers = #tpu.dot_dimension_numbers<[2], [2], [1], [1], [0, 0, 0, 1, 1, 1], [0], [0]>} : vector<2x8x8xbf16>, vector<2x8x8xbf16>, vector<2x8x8xf32> -> vector<2x8x8xf32>
    "tpu.trace_stop"() : () -> ()
    %cst_27 = arith.constant 0.353553385 : f32
    %47 = vector.broadcast %cst_27 : f32 to vector<2x8x8xf32>
    %48 = arith.mulf %46, %47 : vector<2x8x8xf32>
    %cst_28 = arith.constant dense<0xFF800000> : vector<2x8xf32>
    %49 = vector.multi_reduction <maximumf>, %48, %cst_28 [2] : vector<2x8x8xf32> to vector<2x8xf32>
    %50 = vector.shape_cast %49 : vector<2x8xf32> to vector<2x8x1xf32>
    %51 = vector.broadcast %50 : vector<2x8x1xf32> to vector<2x8x8xf32>
    %52 = arith.subf %48, %51 : vector<2x8x8xf32>
    %53 = math.exp %52 : vector<2x8x8xf32>
    %cst_29 = arith.constant dense<0.000000e+00> : vector<2x8xf32>
    %54 = vector.multi_reduction <add>, %53, %cst_29 [2] : vector<2x8x8xf32> to vector<2x8xf32>
    %55 = vector.shape_cast %54 : vector<2x8xf32> to vector<2x8x1xf32>
    %56 = tpu.reciprocal %55 {approx = true} : vector<2x8x1xf32> -> vector<2x8x1xf32>
    %57 = vector.broadcast %56 : vector<2x8x1xf32> to vector<2x8x8xf32>
    %58 = arith.mulf %53, %57 : vector<2x8x8xf32>
    %59 = arith.truncf %58 : vector<2x8x8xf32> to vector<2x8x8xbf16>
    %60 = arith.truncf %43 : vector<2x8x8xf32> to vector<2x8x8xbf16>
    "tpu.trace_start"() <{level = 10 : i32, message = "bqk,bkd->bqd"}> : () -> ()
    %cst_30 = arith.constant dense<0.000000e+00> : vector<2x8x8xf32>
    %61 = tpu.matmul %59, %60, %cst_30 {dimension_numbers = #tpu.dot_dimension_numbers<[2], [1], [1], [2], [0, 0, 0, 1, 1, 2], [0], [0]>} : vector<2x8x8xbf16>, vector<2x8x8xbf16>, vector<2x8x8xf32> -> vector<2x8x8xf32>
    "tpu.trace_stop"() : () -> ()
    %62 = vector.shape_cast %61 : vector<2x8x8xf32> to vector<16x8xf32>
    %c0_31 = arith.constant 0 : index
    %c0_32 = arith.constant 0 : index
    %63 = vector.load %arg24[%c0_31, %c0_32] : memref<16x32xf32, #tpu.memory_space<vmem>>, vector<16x8xf32>
    tpu.vector_store %arg24[%c0_31, %c0_32], %62 {strides = array<i32>} : memref<16x32xf32, #tpu.memory_space<vmem>>, vector<16x8xf32>,
    %c0_33 = arith.constant 0 : index
    %c8 = arith.constant 8 : index
    %64 = vector.load %arg23[%c0_33, %c8] : memref<16x96xf32, #tpu.memory_space<vmem>>, vector<16x8xf32>
    %65 = vector.shape_cast %64 : vector<16x8xf32> to vector<2x8x8xf32>
    %c0_34 = arith.constant 0 : index
    %c40 = arith.constant 40 : index
    %66 = vector.load %arg23[%c0_34, %c40] : memref<16x96xf32, #tpu.memory_space<vmem>>, vector<16x8xf32>
    %67 = vector.shape_cast %66 : vector<16x8xf32> to vector<2x8x8xf32>
    %c0_35 = arith.constant 0 : index
    %c72 = arith.constant 72 : index
    %68 = vector.load %arg23[%c0_35, %c72] : memref<16x96xf32, #tpu.memory_space<vmem>>, vector<16x8xf32>
    %69 = vector.shape_cast %68 : vector<16x8xf32> to vector<2x8x8xf32>
    %70 = arith.truncf %65 : vector<2x8x8xf32> to vector<2x8x8xbf16>
    %71 = arith.truncf %67 : vector<2x8x8xf32> to vector<2x8x8xbf16>
    "tpu.trace_start"() <{level = 10 : i32, message = "bqd,bkd->bqk"}> : () -> ()
    %cst_36 = arith.constant dense<0.000000e+00> : vector<2x8x8xf32>
    %72 = tpu.matmul %70, %71, %cst_36 {dimension_numbers = #tpu.dot_dimension_numbers<[2], [2], [1], [1], [0, 0, 0, 1, 1, 1], [0], [0]>} : vector<2x8x8xbf16>, vector<2x8x8xbf16>, vector<2x8x8xf32> -> vector<2x8x8xf32>
    "tpu.trace_stop"() : () -> ()
    %cst_37 = arith.constant 0.353553385 : f32
    %73 = vector.broadcast %cst_37 : f32 to vector<2x8x8xf32>
    %74 = arith.mulf %72, %73 : vector<2x8x8xf32>
    %cst_38 = arith.constant dense<0xFF800000> : vector<2x8xf32>
    %75 = vector.multi_reduction <maximumf>, %74, %cst_38 [2] : vector<2x8x8xf32> to vector<2x8xf32>
    %76 = vector.shape_cast %75 : vector<2x8xf32> to vector<2x8x1xf32>
    %77 = vector.broadcast %76 : vector<2x8x1xf32> to vector<2x8x8xf32>
    %78 = arith.subf %74, %77 : vector<2x8x8xf32>
    %79 = math.exp %78 : vector<2x8x8xf32>
    %cst_39 = arith.constant dense<0.000000e+00> : vector<2x8xf32>
    %80 = vector.multi_reduction <add>, %79, %cst_39 [2] : vector<2x8x8xf32> to vector<2x8xf32>
    %81 = vector.shape_cast %80 : vector<2x8xf32> to vector<2x8x1xf32>
    %82 = tpu.reciprocal %81 {approx = true} : vector<2x8x1xf32> -> vector<2x8x1xf32>
    %83 = vector.broadcast %82 : vector<2x8x1xf32> to vector<2x8x8xf32>
    %84 = arith.mulf %79, %83 : vector<2x8x8xf32>
    %85 = arith.truncf %84 : vector<2x8x8xf32> to vector<2x8x8xbf16>
    %86 = arith.truncf %69 : vector<2x8x8xf32> to vector<2x8x8xbf16>
    "tpu.trace_start"() <{level = 10 : i32, message = "bqk,bkd->bqd"}> : () -> ()
    %cst_40 = arith.constant dense<0.000000e+00> : vector<2x8x8xf32>
    %87 = tpu.matmul %85, %86, %cst_40 {dimension_numbers = #tpu.dot_dimension_numbers<[2], [1], [1], [2], [0, 0, 0, 1, 1, 2], [0], [0]>} : vector<2x8x8xbf16>, vector<2x8x8xbf16>, vector<2x8x8xf32> -> vector<2x8x8xf32>
    "tpu.trace_stop"() : () -> ()
    %88 = vector.shape_cast %87 : vector<2x8x8xf32> to vector<16x8xf32>
    %c0_41 = arith.constant 0 : index
    %c8_42 = arith.constant 8 : index
    %89 = vector.load %arg24[%c0_41, %c8_42] : memref<16x32xf32, #tpu.memory_space<vmem>>, vector<16x8xf32>
    tpu.vector_store %arg24[%c0_41, %c8_42], %88 {strides = array<i32>} : memref<16x32xf32, #tpu.memory_space<vmem>>, vector<16x8xf32>,
    %c0_43 = arith.constant 0 : index
    %c16 = arith.constant 16 : index
    %90 = vector.load %arg23[%c0_43, %c16] : memref<16x96xf32, #tpu.memory_space<vmem>>, vector<16x8xf32>
    %91 = vector.shape_cast %90 : vector<16x8xf32> to vector<2x8x8xf32>
    %c0_44 = arith.constant 0 : index
    %c48 = arith.constant 48 : index
    %92 = vector.load %arg23[%c0_44, %c48] : memref<16x96xf32, #tpu.memory_space<vmem>>, vector<16x8xf32>
    %93 = vector.shape_cast %92 : vector<16x8xf32> to vector<2x8x8xf32>
    %c0_45 = arith.constant 0 : index
    %c80 = arith.constant 80 : index
    %94 = vector.load %arg23[%c0_45, %c80] : memref<16x96xf32, #tpu.memory_space<vmem>>, vector<16x8xf32>
    %95 = vector.shape_cast %94 : vector<16x8xf32> to vector<2x8x8xf32>
    %96 = arith.truncf %91 : vector<2x8x8xf32> to vector<2x8x8xbf16>
    %97 = arith.truncf %93 : vector<2x8x8xf32> to vector<2x8x8xbf16>
    "tpu.trace_start"() <{level = 10 : i32, message = "bqd,bkd->bqk"}> : () -> ()
    %cst_46 = arith.constant dense<0.000000e+00> : vector<2x8x8xf32>
    %98 = tpu.matmul %96, %97, %cst_46 {dimension_numbers = #tpu.dot_dimension_numbers<[2], [2], [1], [1], [0, 0, 0, 1, 1, 1], [0], [0]>} : vector<2x8x8xbf16>, vector<2x8x8xbf16>, vector<2x8x8xf32> -> vector<2x8x8xf32>
    "tpu.trace_stop"() : () -> ()
    %cst_47 = arith.constant 0.353553385 : f32
    %99 = vector.broadcast %cst_47 : f32 to vector<2x8x8xf32>
    %100 = arith.mulf %98, %99 : vector<2x8x8xf32>
    %cst_48 = arith.constant dense<0xFF800000> : vector<2x8xf32>
    %101 = vector.multi_reduction <maximumf>, %100, %cst_48 [2] : vector<2x8x8xf32> to vector<2x8xf32>
    %102 = vector.shape_cast %101 : vector<2x8xf32> to vector<2x8x1xf32>
    %103 = vector.broadcast %102 : vector<2x8x1xf32> to vector<2x8x8xf32>
    %104 = arith.subf %100, %103 : vector<2x8x8xf32>
    %105 = math.exp %104 : vector<2x8x8xf32>
    %cst_49 = arith.constant dense<0.000000e+00> : vector<2x8xf32>
    %106 = vector.multi_reduction <add>, %105, %cst_49 [2] : vector<2x8x8xf32> to vector<2x8xf32>
    %107 = vector.shape_cast %106 : vector<2x8xf32> to vector<2x8x1xf32>
    %108 = tpu.reciprocal %107 {approx = true} : vector<2x8x1xf32> -> vector<2x8x1xf32>
    %109 = vector.broadcast %108 : vector<2x8x1xf32> to vector<2x8x8xf32>
    %110 = arith.mulf %105, %109 : vector<2x8x8xf32>
    %111 = arith.truncf %110 : vector<2x8x8xf32> to vector<2x8x8xbf16>
    %112 = arith.truncf %95 : vector<2x8x8xf32> to vector<2x8x8xbf16>
    "tpu.trace_start"() <{level = 10 : i32, message = "bqk,bkd->bqd"}> : () -> ()
    %cst_50 = arith.constant dense<0.000000e+00> : vector<2x8x8xf32>
    %113 = tpu.matmul %111, %112, %cst_50 {dimension_numbers = #tpu.dot_dimension_numbers<[2], [1], [1], [2], [0, 0, 0, 1, 1, 2], [0], [0]>} : vector<2x8x8xbf16>, vector<2x8x8xbf16>, vector<2x8x8xf32> -> vector<2x8x8xf32>
    "tpu.trace_stop"() : () -> ()
    %114 = vector.shape_cast %113 : vector<2x8x8xf32> to vector<16x8xf32>
    %c0_51 = arith.constant 0 : index
    %c16_52 = arith.constant 16 : index
    %115 = vector.load %arg24[%c0_51, %c16_52] : memref<16x32xf32, #tpu.memory_space<vmem>>, vector<16x8xf32>
    tpu.vector_store %arg24[%c0_51, %c16_52], %114 {strides = array<i32>} : memref<16x32xf32, #tpu.memory_space<vmem>>, vector<16x8xf32>,
    %c0_53 = arith.constant 0 : index
    %c24 = arith.constant 24 : index
    %116 = vector.load %arg23[%c0_53, %c24] : memref<16x96xf32, #tpu.memory_space<vmem>>, vector<16x8xf32>
    %117 = vector.shape_cast %116 : vector<16x8xf32> to vector<2x8x8xf32>
    %c0_54 = arith.constant 0 : index
    %c56 = arith.constant 56 : index
    %118 = vector.load %arg23[%c0_54, %c56] : memref<16x96xf32, #tpu.memory_space<vmem>>, vector<16x8xf32>
    %119 = vector.shape_cast %118 : vector<16x8xf32> to vector<2x8x8xf32>
    %c0_55 = arith.constant 0 : index
    %c88 = arith.constant 88 : index
    %120 = vector.load %arg23[%c0_55, %c88] : memref<16x96xf32, #tpu.memory_space<vmem>>, vector<16x8xf32>
    %121 = vector.shape_cast %120 : vector<16x8xf32> to vector<2x8x8xf32>
    %122 = arith.truncf %117 : vector<2x8x8xf32> to vector<2x8x8xbf16>
    %123 = arith.truncf %119 : vector<2x8x8xf32> to vector<2x8x8xbf16>
    "tpu.trace_start"() <{level = 10 : i32, message = "bqd,bkd->bqk"}> : () -> ()
    %cst_56 = arith.constant dense<0.000000e+00> : vector<2x8x8xf32>
    %124 = tpu.matmul %122, %123, %cst_56 {dimension_numbers = #tpu.dot_dimension_numbers<[2], [2], [1], [1], [0, 0, 0, 1, 1, 1], [0], [0]>} : vector<2x8x8xbf16>, vector<2x8x8xbf16>, vector<2x8x8xf32> -> vector<2x8x8xf32>
    "tpu.trace_stop"() : () -> ()
    %cst_57 = arith.constant 0.353553385 : f32
    %125 = vector.broadcast %cst_57 : f32 to vector<2x8x8xf32>
    %126 = arith.mulf %124, %125 : vector<2x8x8xf32>
    %cst_58 = arith.constant dense<0xFF800000> : vector<2x8xf32>
    %127 = vector.multi_reduction <maximumf>, %126, %cst_58 [2] : vector<2x8x8xf32> to vector<2x8xf32>
    %128 = vector.shape_cast %127 : vector<2x8xf32> to vector<2x8x1xf32>
    %129 = vector.broadcast %128 : vector<2x8x1xf32> to vector<2x8x8xf32>
    %130 = arith.subf %126, %129 : vector<2x8x8xf32>
    %131 = math.exp %130 : vector<2x8x8xf32>
    %cst_59 = arith.constant dense<0.000000e+00> : vector<2x8xf32>
    %132 = vector.multi_reduction <add>, %131, %cst_59 [2] : vector<2x8x8xf32> to vector<2x8xf32>
    %133 = vector.shape_cast %132 : vector<2x8xf32> to vector<2x8x1xf32>
    %134 = tpu.reciprocal %133 {approx = true} : vector<2x8x1xf32> -> vector<2x8x1xf32>
    %135 = vector.broadcast %134 : vector<2x8x1xf32> to vector<2x8x8xf32>
    %136 = arith.mulf %131, %135 : vector<2x8x8xf32>
    %137 = arith.truncf %136 : vector<2x8x8xf32> to vector<2x8x8xbf16>
    %138 = arith.truncf %121 : vector<2x8x8xf32> to vector<2x8x8xbf16>
    "tpu.trace_start"() <{level = 10 : i32, message = "bqk,bkd->bqd"}> : () -> ()
    %cst_60 = arith.constant dense<0.000000e+00> : vector<2x8x8xf32>
    %139 = tpu.matmul %137, %138, %cst_60 {dimension_numbers = #tpu.dot_dimension_numbers<[2], [1], [1], [2], [0, 0, 0, 1, 1, 2], [0], [0]>} : vector<2x8x8xbf16>, vector<2x8x8xbf16>, vector<2x8x8xf32> -> vector<2x8x8xf32>
    "tpu.trace_stop"() : () -> ()
    %140 = vector.shape_cast %139 : vector<2x8x8xf32> to vector<16x8xf32>
    %c0_61 = arith.constant 0 : index
    %c24_62 = arith.constant 24 : index
    %141 = vector.load %arg24[%c0_61, %c24_62] : memref<16x32xf32, #tpu.memory_space<vmem>>, vector<16x8xf32>
    tpu.vector_store %arg24[%c0_61, %c24_62], %140 {strides = array<i32>} : memref<16x32xf32, #tpu.memory_space<vmem>>, vector<16x8xf32>,
    %c0_63 = arith.constant 0 : index
    %c0_64 = arith.constant 0 : index
    %142 = vector.load %arg24[%c0_63, %c0_64] : memref<16x32xf32, #tpu.memory_space<vmem>>, vector<16x32xf32>
    %143 = arith.truncf %142 : vector<16x32xf32> to vector<16x32xbf16>
    %c0_65 = arith.constant 0 : index
    %c0_66 = arith.constant 0 : index
    %c0_67 = arith.constant 0 : index
    %144 = vector.load %arg8[%c0_65, %c0_66, %c0_67] : memref<1x32x32xbf16, #tpu.memory_space<vmem>>, vector<1x32x32xbf16>
    %145 = vector.shape_cast %144 : vector<1x32x32xbf16> to vector<32x32xbf16>
    %cst_68 = arith.constant dense<0.000000e+00> : vector<16x32xf32>
    %146 = tpu.matmul %143, %145, %cst_68 {dimension_numbers = #tpu.dot_dimension_numbers<[1], [0], [0], [1], [0, 0, 1, 1], [], []>} : vector<16x32xbf16>, vector<32x32xbf16>, vector<16x32xf32> -> vector<16x32xf32>
    %c0_69 = arith.constant 0 : index
    %c0_70 = arith.constant 0 : index
    %c0_71 = arith.constant 0 : index
    %147 = vector.load %arg9[%c0_69, %c0_70, %c0_71] : memref<1x1x32xf32, #tpu.memory_space<vmem>>, vector<1x1x32xf32>
    %148 = vector.shape_cast %147 : vector<1x1x32xf32> to vector<1x32xf32>
    %149 = vector.broadcast %148 : vector<1x32xf32> to vector<16x32xf32>
    %150 = arith.addf %146, %149 : vector<16x32xf32>
    %151 = arith.addf %4, %150 : vector<16x32xf32>
    %c0_72 = arith.constant 0 : index
    %c0_73 = arith.constant 0 : index
    %c0_74 = arith.constant 0 : index
    %152 = vector.load %arg10[%c0_72, %c0_73, %c0_74] : memref<1x1x32xf32, #tpu.memory_space<vmem>>, vector<1x1x32xf32>
    %153 = vector.shape_cast %152 : vector<1x1x32xf32> to vector<1x32xf32>
    %c0_75 = arith.constant 0 : index
    %c0_76 = arith.constant 0 : index
    %c0_77 = arith.constant 0 : index
    %154 = vector.load %arg11[%c0_75, %c0_76, %c0_77] : memref<1x1x32xf32, #tpu.memory_space<vmem>>, vector<1x1x32xf32>
    %155 = vector.shape_cast %154 : vector<1x1x32xf32> to vector<1x32xf32>
    %cst_78 = arith.constant dense<0.000000e+00> : vector<16xf32>
    %156 = vector.multi_reduction <add>, %151, %cst_78 [1] : vector<16x32xf32> to vector<16xf32>
    %157 = vector.shape_cast %156 : vector<16xf32> to vector<16x1xf32>
    %cst_79 = arith.constant 3.200000e+01 : f32
    %158 = vector.broadcast %cst_79 : f32 to vector<16x1xf32>
    %159 = arith.divf %157, %158 : vector<16x1xf32>
    %160 = vector.broadcast %159 : vector<16x1xf32> to vector<16x32xf32>
    %161 = arith.subf %151, %160 : vector<16x32xf32>
    %162 = arith.mulf %161, %161 : vector<16x32xf32>
    %cst_80 = arith.constant dense<0.000000e+00> : vector<16xf32>
    %163 = vector.multi_reduction <add>, %162, %cst_80 [1] : vector<16x32xf32> to vector<16xf32>
    %164 = vector.shape_cast %163 : vector<16xf32> to vector<16x1xf32>
    %cst_81 = arith.constant 3.200000e+01 : f32
    %165 = vector.broadcast %cst_81 : f32 to vector<16x1xf32>
    %166 = arith.divf %164, %165 : vector<16x1xf32>
    %cst_82 = arith.constant 9.99999997E-7 : f32
    %167 = vector.broadcast %cst_82 : f32 to vector<16x1xf32>
    %168 = arith.addf %166, %167 : vector<16x1xf32>
    %169 = math.rsqrt %168 : vector<16x1xf32>
    %170 = vector.broadcast %169 : vector<16x1xf32> to vector<16x32xf32>
    %171 = arith.mulf %161, %170 : vector<16x32xf32>
    %172 = vector.broadcast %153 : vector<1x32xf32> to vector<16x32xf32>
    %173 = arith.mulf %171, %172 : vector<16x32xf32>
    %174 = vector.broadcast %155 : vector<1x32xf32> to vector<16x32xf32>
    %175 = arith.addf %173, %174 : vector<16x32xf32>
    %176 = arith.truncf %175 : vector<16x32xf32> to vector<16x32xbf16>
    %cst_83 = arith.constant 0.000000e+00 : f32
    %177 = vector.broadcast %cst_83 : f32 to vector<16x32xf32>
    %c0_84 = arith.constant 0 : index
    %c0_85 = arith.constant 0 : index
    %c0_86 = arith.constant 0 : index
    %178 = vector.load %arg12[%c0_84, %c0_85, %c0_86] : memref<1x32x128xbf16, #tpu.memory_space<vmem>>, vector<1x32x128xbf16>
    %179 = vector.shape_cast %178 : vector<1x32x128xbf16> to vector<32x128xbf16>
    %cst_87 = arith.constant dense<0.000000e+00> : vector<16x128xf32>
    %180 = tpu.matmul %176, %179, %cst_87 {dimension_numbers = #tpu.dot_dimension_numbers<[1], [0], [0], [1], [0, 0, 1, 1], [], []>} : vector<16x32xbf16>, vector<32x128xbf16>, vector<16x128xf32> -> vector<16x128xf32>
    %c0_88 = arith.constant 0 : index
    %c0_89 = arith.constant 0 : index
    %c0_90 = arith.constant 0 : index
    %181 = vector.load %arg13[%c0_88, %c0_89, %c0_90] : memref<1x1x128xf32, #tpu.memory_space<vmem>>, vector<1x1x128xf32>
    %182 = vector.shape_cast %181 : vector<1x1x128xf32> to vector<1x128xf32>
    %183 = vector.broadcast %182 : vector<1x128xf32> to vector<16x128xf32>
    %184 = arith.addf %180, %183 : vector<16x128xf32>
    %185 = arith.mulf %184, %184 : vector<16x128xf32>
    %186 = arith.mulf %184, %185 : vector<16x128xf32>
    %cst_91 = arith.constant 4.471500e-02 : f32
    %187 = vector.broadcast %cst_91 : f32 to vector<16x128xf32>
    %188 = arith.mulf %187, %186 : vector<16x128xf32>
    %189 = arith.addf %184, %188 : vector<16x128xf32>
    %cst_92 = arith.constant 0.797884583 : f32
    %190 = vector.broadcast %cst_92 : f32 to vector<16x128xf32>
    %191 = arith.mulf %190, %189 : vector<16x128xf32>
    %192 = math.tanh %191 : vector<16x128xf32>
    %cst_93 = arith.constant 1.000000e+00 : f32
    %193 = vector.broadcast %cst_93 : f32 to vector<16x128xf32>
    %194 = arith.addf %193, %192 : vector<16x128xf32>
    %cst_94 = arith.constant 5.000000e-01 : f32
    %195 = vector.broadcast %cst_94 : f32 to vector<16x128xf32>
    %196 = arith.mulf %195, %194 : vector<16x128xf32>
    %197 = arith.mulf %184, %196 : vector<16x128xf32>
    %198 = arith.truncf %197 : vector<16x128xf32> to vector<16x128xbf16>
    %c0_95 = arith.constant 0 : index
    %c0_96 = arith.constant 0 : index
    %c0_97 = arith.constant 0 : index
    %199 = vector.load %arg14[%c0_95, %c0_96, %c0_97] : memref<1x128x32xbf16, #tpu.memory_space<vmem>>, vector<1x128x32xbf16>
    %200 = vector.shape_cast %199 : vector<1x128x32xbf16> to vector<128x32xbf16>
    %cst_98 = arith.constant dense<0.000000e+00> : vector<16x32xf32>
    %201 = tpu.matmul %198, %200, %cst_98 {dimension_numbers = #tpu.dot_dimension_numbers<[1], [0], [0], [1], [0, 0, 1, 1], [], []>} : vector<16x128xbf16>, vector<128x32xbf16>, vector<16x32xf32> -> vector<16x32xf32>
    %202 = arith.addf %177, %201 : vector<16x32xf32>
    %203 = arith.addf %151, %202 : vector<16x32xf32>
    %c0_99 = arith.constant 0 : index
    %c0_100 = arith.constant 0 : index
    %c0_101 = arith.constant 0 : index
    %204 = vector.load %arg15[%c0_99, %c0_100, %c0_101] : memref<1x1x32xf32, #tpu.memory_space<vmem>>, vector<1x1x32xf32>
    %205 = vector.shape_cast %204 : vector<1x1x32xf32> to vector<1x32xf32>
    %206 = vector.broadcast %205 : vector<1x32xf32> to vector<16x32xf32>
    %207 = arith.addf %203, %206 : vector<16x32xf32>
    %208 = vector.shape_cast %207 : vector<16x32xf32> to vector<2x8x32xf32>
    %c0_102 = arith.constant 0 : index
    %c0_103 = arith.constant 0 : index
    %c0_104 = arith.constant 0 : index
    %209 = vector.load %arg22[%c0_102, %c0_103, %c0_104] : memref<2x8x32xf32, #tpu.memory_space<vmem>>, vector<2x8x32xf32>
    tpu.vector_store %arg22[%c0_102, %c0_103, %c0_104], %208 {strides = array<i32>} : memref<2x8x32xf32, #tpu.memory_space<vmem>>, vector<2x8x32xf32>,
    %c1_i32 = arith.constant 1 : i32
    %210 = arith.cmpi eq, %arg1, %c1_i32 : i32
    %211 = arith.extui %210 : i1 to i32
    %c0_i32_105 = arith.constant 0 : i32
    %212 = arith.cmpi ne, %211, %c0_i32_105 : i32
    scf.if %212 {
      %213 = vector.extract_strided_slice %208 {offsets = [0, 0, 0], sizes = [2, 4, 32], strides = [1, 1, 1]} : vector<2x8x32xf32> to vector<2x4x32xf32>
      %c0_106 = arith.constant 0 : index
      %c0_107 = arith.constant 0 : index
      %214 = vector.load %arg16[%c0_106, %c0_107] : memref<1x32xf32, #tpu.memory_space<vmem>>, vector<1x32xf32>
      %c0_108 = arith.constant 0 : index
      %c0_109 = arith.constant 0 : index
      %215 = vector.load %arg17[%c0_108, %c0_109] : memref<1x32xf32, #tpu.memory_space<vmem>>, vector<1x32xf32>
      %cst_110 = arith.constant dense<0.000000e+00> : vector<2x4xf32>
      %216 = vector.multi_reduction <add>, %213, %cst_110 [2] : vector<2x4x32xf32> to vector<2x4xf32>
      %217 = vector.shape_cast %216 : vector<2x4xf32> to vector<2x4x1xf32>
      %cst_111 = arith.constant 3.200000e+01 : f32
      %218 = vector.broadcast %cst_111 : f32 to vector<2x4x1xf32>
      %219 = arith.divf %217, %218 : vector<2x4x1xf32>
      %220 = vector.broadcast %219 : vector<2x4x1xf32> to vector<2x4x32xf32>
      %221 = arith.subf %213, %220 : vector<2x4x32xf32>
      %222 = arith.mulf %221, %221 : vector<2x4x32xf32>
      %cst_112 = arith.constant dense<0.000000e+00> : vector<2x4xf32>
      %223 = vector.multi_reduction <add>, %222, %cst_112 [2] : vector<2x4x32xf32> to vector<2x4xf32>
      %224 = vector.shape_cast %223 : vector<2x4xf32> to vector<2x4x1xf32>
      %cst_113 = arith.constant 3.200000e+01 : f32
      %225 = vector.broadcast %cst_113 : f32 to vector<2x4x1xf32>
      %226 = arith.divf %224, %225 : vector<2x4x1xf32>
      %cst_114 = arith.constant 9.99999997E-7 : f32
      %227 = vector.broadcast %cst_114 : f32 to vector<2x4x1xf32>
      %228 = arith.addf %226, %227 : vector<2x4x1xf32>
      %229 = math.rsqrt %228 : vector<2x4x1xf32>
      %230 = vector.broadcast %229 : vector<2x4x1xf32> to vector<2x4x32xf32>
      %231 = arith.mulf %221, %230 : vector<2x4x32xf32>
      %232 = vector.shape_cast %214 : vector<1x32xf32> to vector<1x1x32xf32>
      %233 = vector.broadcast %232 : vector<1x1x32xf32> to vector<2x4x32xf32>
      %234 = arith.mulf %231, %233 : vector<2x4x32xf32>
      %235 = vector.shape_cast %215 : vector<1x32xf32> to vector<1x1x32xf32>
      %236 = vector.broadcast %235 : vector<1x1x32xf32> to vector<2x4x32xf32>
      %237 = arith.addf %234, %236 : vector<2x4x32xf32>
      %c0_115 = arith.constant 0 : index
      %c0_116 = arith.constant 0 : index
      %c0_117 = arith.constant 0 : index
      %238 = vector.load %arg20[%c0_115, %c0_116, %c0_117] : memref<2x4x32xf32, #tpu.memory_space<vmem>>, vector<2x4x32xf32>
      tpu.vector_store %arg20[%c0_115, %c0_116, %c0_117], %237 {strides = array<i32>} : memref<2x4x32xf32, #tpu.memory_space<vmem>>, vector<2x4x32xf32>,
      %239 = vector.extract_strided_slice %208 {offsets = [0, 4, 0], sizes = [2, 4, 32], strides = [1, 1, 1]} : vector<2x8x32xf32> to vector<2x4x32xf32>
      %c0_118 = arith.constant 0 : index
      %c0_119 = arith.constant 0 : index
      %240 = vector.load %arg18[%c0_118, %c0_119] : memref<1x32xf32, #tpu.memory_space<vmem>>, vector<1x32xf32>
      %c0_120 = arith.constant 0 : index
      %c0_121 = arith.constant 0 : index
      %241 = vector.load %arg19[%c0_120, %c0_121] : memref<1x32xf32, #tpu.memory_space<vmem>>, vector<1x32xf32>
      %cst_122 = arith.constant dense<0.000000e+00> : vector<2x4xf32>
      %242 = vector.multi_reduction <add>, %239, %cst_122 [2] : vector<2x4x32xf32> to vector<2x4xf32>
      %243 = vector.shape_cast %242 : vector<2x4xf32> to vector<2x4x1xf32>
      %cst_123 = arith.constant 3.200000e+01 : f32
      %244 = vector.broadcast %cst_123 : f32 to vector<2x4x1xf32>
      %245 = arith.divf %243, %244 : vector<2x4x1xf32>
      %246 = vector.broadcast %245 : vector<2x4x1xf32> to vector<2x4x32xf32>
      %247 = arith.subf %239, %246 : vector<2x4x32xf32>
      %248 = arith.mulf %247, %247 : vector<2x4x32xf32>
      %cst_124 = arith.constant dense<0.000000e+00> : vector<2x4xf32>
      %249 = vector.multi_reduction <add>, %248, %cst_124 [2] : vector<2x4x32xf32> to vector<2x4xf32>
      %250 = vector.shape_cast %249 : vector<2x4xf32> to vector<2x4x1xf32>
      %cst_125 = arith.constant 3.200000e+01 : f32
      %251 = vector.broadcast %cst_125 : f32 to vector<2x4x1xf32>
      %252 = arith.divf %250, %251 : vector<2x4x1xf32>
      %cst_126 = arith.constant 9.99999997E-7 : f32
      %253 = vector.broadcast %cst_126 : f32 to vector<2x4x1xf32>
      %254 = arith.addf %252, %253 : vector<2x4x1xf32>
      %255 = math.rsqrt %254 : vector<2x4x1xf32>
      %256 = vector.broadcast %255 : vector<2x4x1xf32> to vector<2x4x32xf32>
      %257 = arith.mulf %247, %256 : vector<2x4x32xf32>
      %258 = vector.shape_cast %240 : vector<1x32xf32> to vector<1x1x32xf32>
      %259 = vector.broadcast %258 : vector<1x1x32xf32> to vector<2x4x32xf32>
      %260 = arith.mulf %257, %259 : vector<2x4x32xf32>
      %261 = vector.shape_cast %241 : vector<1x32xf32> to vector<1x1x32xf32>
      %262 = vector.broadcast %261 : vector<1x1x32xf32> to vector<2x4x32xf32>
      %263 = arith.addf %260, %262 : vector<2x4x32xf32>
      %c0_127 = arith.constant 0 : index
      %c0_128 = arith.constant 0 : index
      %c0_129 = arith.constant 0 : index
      %264 = vector.load %arg21[%c0_127, %c0_128, %c0_129] : memref<2x4x32xf32, #tpu.memory_space<vmem>>, vector<2x4x32xf32>
      tpu.vector_store %arg21[%c0_127, %c0_128, %c0_129], %263 {strides = array<i32>} : memref<2x4x32xf32, #tpu.memory_space<vmem>>, vector<2x4x32xf32>,
    } else {
    }
    return
  }
  func.func @transform_0(%arg0: i32, %arg1: i32) -> (i32, i32, i32) {
    %c0_i32 = arith.constant 0 : i32
    %c0_i32_0 = arith.constant 0 : i32
    %c0_i32_1 = arith.constant 0 : i32
    return %arg0, %c0_i32, %c0_i32_0 : i32, i32, i32
  }
  func.func @transform_1(%arg0: i32, %arg1: i32) -> (i32, i32, i32) {
    %c0_i32 = arith.constant 0 : i32
    %c0_i32_0 = arith.constant 0 : i32
    %c0_i32_1 = arith.constant 0 : i32
    return %arg0, %c0_i32, %c0_i32_0 : i32, i32, i32
  }
  func.func @transform_2(%arg0: i32, %arg1: i32) -> (i32, i32, i32) {
    %c0_i32 = arith.constant 0 : i32
    %c0_i32_0 = arith.constant 0 : i32
    %c0_i32_1 = arith.constant 0 : i32
    return %arg1, %c0_i32, %c0_i32_0 : i32, i32, i32
  }
  func.func @transform_3(%arg0: i32, %arg1: i32) -> (i32, i32, i32) {
    %c0_i32 = arith.constant 0 : i32
    %c0_i32_0 = arith.constant 0 : i32
    %c0_i32_1 = arith.constant 0 : i32
    return %arg1, %c0_i32, %c0_i32_0 : i32, i32, i32
  }
  func.func @transform_4(%arg0: i32, %arg1: i32) -> (i32, i32, i32) {
    %c0_i32 = arith.constant 0 : i32
    %c0_i32_0 = arith.constant 0 : i32
    %c0_i32_1 = arith.constant 0 : i32
    return %arg1, %c0_i32, %c0_i32_0 : i32, i32, i32
  }
  func.func @transform_5(%arg0: i32, %arg1: i32) -> (i32, i32, i32) {
    %c0_i32 = arith.constant 0 : i32
    %c0_i32_0 = arith.constant 0 : i32
    %c0_i32_1 = arith.constant 0 : i32
    return %arg1, %c0_i32, %c0_i32_0 : i32, i32, i32
  }
  func.func @transform_6(%arg0: i32, %arg1: i32) -> (i32, i32, i32) {
    %c0_i32 = arith.constant 0 : i32
    %c0_i32_0 = arith.constant 0 : i32
    %c0_i32_1 = arith.constant 0 : i32
    return %arg1, %c0_i32, %c0_i32_0 : i32, i32, i32
  }
  func.func @transform_7(%arg0: i32, %arg1: i32) -> (i32, i32, i32) {
    %c0_i32 = arith.constant 0 : i32
    %c0_i32_0 = arith.constant 0 : i32
    %c0_i32_1 = arith.constant 0 : i32
    return %arg1, %c0_i32, %c0_i32_0 : i32, i32, i32
  }
  func.func @transform_8(%arg0: i32, %arg1: i32) -> (i32, i32, i32) {
    %c0_i32 = arith.constant 0 : i32
    %c0_i32_0 = arith.constant 0 : i32
    %c0_i32_1 = arith.constant 0 : i32
    return %arg1, %c0_i32, %c0_i32_0 : i32, i32, i32
  }
  func.func @transform_9(%arg0: i32, %arg1: i32) -> (i32, i32, i32) {
    %c0_i32 = arith.constant 0 : i32
    %c0_i32_0 = arith.constant 0 : i32
    %c0_i32_1 = arith.constant 0 : i32
    return %arg1, %c0_i32, %c0_i32_0 : i32, i32, i32
  }
  func.func @transform_10(%arg0: i32, %arg1: i32) -> (i32, i32, i32) {
    %c0_i32 = arith.constant 0 : i32
    %c0_i32_0 = arith.constant 0 : i32
    %c0_i32_1 = arith.constant 0 : i32
    return %arg1, %c0_i32, %c0_i32_0 : i32, i32, i32
  }
  func.func @transform_11(%arg0: i32, %arg1: i32) -> (i32, i32, i32) {
    %c0_i32 = arith.constant 0 : i32
    %c0_i32_0 = arith.constant 0 : i32
    %c0_i32_1 = arith.constant 0 : i32
    return %arg1, %c0_i32, %c0_i32_0 : i32, i32, i32
  }
  func.func @transform_12(%arg0: i32, %arg1: i32) -> (i32, i32, i32) {
    %c0_i32 = arith.constant 0 : i32
    %c0_i32_0 = arith.constant 0 : i32
    %c0_i32_1 = arith.constant 0 : i32
    return %arg1, %c0_i32, %c0_i32_0 : i32, i32, i32
  }
  func.func @transform_13(%arg0: i32, %arg1: i32) -> (i32, i32, i32) {
    %c0_i32 = arith.constant 0 : i32
    %c0_i32_0 = arith.constant 0 : i32
    %c0_i32_1 = arith.constant 0 : i32
    return %arg1, %c0_i32, %c0_i32_0 : i32, i32, i32
  }
  func.func @transform_14(%arg0: i32, %arg1: i32) -> (i32, i32) {
    %c0_i32 = arith.constant 0 : i32
    %c0_i32_0 = arith.constant 0 : i32
    %c0_i32_1 = arith.constant 0 : i32
    return %c0_i32, %c0_i32_0 : i32, i32
  }
  func.func @transform_15(%arg0: i32, %arg1: i32) -> (i32, i32) {
    %c0_i32 = arith.constant 0 : i32
    %c0_i32_0 = arith.constant 0 : i32
    %c0_i32_1 = arith.constant 0 : i32
    return %c0_i32, %c0_i32_0 : i32, i32
  }
  func.func @transform_16(%arg0: i32, %arg1: i32) -> (i32, i32) {
    %c0_i32 = arith.constant 0 : i32
    %c0_i32_0 = arith.constant 0 : i32
    %c0_i32_1 = arith.constant 0 : i32
    return %c0_i32, %c0_i32_0 : i32, i32
  }
  func.func @transform_17(%arg0: i32, %arg1: i32) -> (i32, i32) {
    %c0_i32 = arith.constant 0 : i32
    %c0_i32_0 = arith.constant 0 : i32
    %c0_i32_1 = arith.constant 0 : i32
    return %c0_i32, %c0_i32_0 : i32, i32
  }
  func.func @transform_18(%arg0: i32, %arg1: i32) -> (i32, i32, i32) {
    %c0_i32 = arith.constant 0 : i32
    %c0_i32_0 = arith.constant 0 : i32
    %c0_i32_1 = arith.constant 0 : i32
    return %arg0, %c0_i32, %c0_i32_0 : i32, i32, i32
  }
  func.func @transform_19(%arg0: i32, %arg1: i32) -> (i32, i32, i32) {
    %c0_i32 = arith.constant 0 : i32
    %c0_i32_0 = arith.constant 0 : i32
    %c0_i32_1 = arith.constant 0 : i32
    return %arg0, %c0_i32, %c0_i32_0 : i32, i32, i32
  }
}

</mosaic_0001>

<llo_original>
// kernel: fwd.3
$region0: #{fwd.3}
  #allocation0 [shape = 'u32[]', space=smem, size = 0x4, offset = 0x4, fixed_abs, tag = 'smem constant byte address 0x4 - core index']
  #allocation1 [shape = 'u32[144,128]{1,0:T(1,128)}', space=vmem, size = 0x12000, scoped, tag = 'internal scratch']
  %s0 = inlined_call_operand.vmem [shape: f32[16,384], index: 0, kind: input, shape index: {}]
  %s1 = inlined_call_operand.vmem [shape: bf16[384,32], index: 1, kind: input, shape index: {}]
  %s2 = inlined_call_operand.vmem [shape: f32[1,32], index: 2, kind: input, shape index: {}]
  %s3 = inlined_call_operand.vmem [shape: f32[16,32], index: 3, kind: output, shape index: {}]
  %s4 = sld [smem:[#allocation0]]
  $region22: #{fwd.3} parent=0
    _
  %s6 = ssub.s32 1, %s4
  %s7 = scalar_select 0, %s6, %s4
  // Predicated region
  $region2: #{fwd.3} parent=0 // pred_check
    _
  $region3: #{fwd.3} parent=0 // pred_check_branch
    %9 = sbr.rel (0) target = $region5
  $region4: #{fwd.3} parent=0 // pred_region
    _
  $region5: #{fwd.3} parent=0 // pred_fallthru
    _
  // Predicated region
  $region6: #{fwd.3} parent=0 // pred_check
    _
  $region7: #{fwd.3} parent=0 // pred_check_branch
    %11 = sbr.rel (0) target = $region9
  $region8: #{fwd.3} parent=0 // pred_region
    _
  $region9: #{fwd.3} parent=0 // pred_fallthru
    _
  // Predicated region
  $region10: #{fwd.3} parent=0 // pred_check
    _
  $region11: #{fwd.3} parent=0 // pred_check_branch
    %13 = sbr.rel (0) target = $region13
  $region12: #{fwd.3} parent=0 // pred_region
    _
  $region13: #{fwd.3} parent=0 // pred_fallthru
    _
  %v15 = vld [vmem:[%s0] sm:$0xff]
  %v16 = vld [vmem:[%s0 + $0x8] sm:$0xff]
  %v17 = vld [vmem:[%s0 + $0x10] sm:$0xff]
  %v18 = vld [vmem:[%s0 + $0x18] sm:$0xff]
  %v19 = vld [vmem:[%s0 + $0x20] sm:$0xff]
  %v20 = vld [vmem:[%s0 + $0x28] sm:$0xff]
  %v21 = vpack.c.bf16 %v18, %v15
  %v22 = vpack.c.bf16 %v19, %v16
  %v23 = vpack.c.bf16 %v20, %v17
  %v24 = vld [vmem:[%s1] sm:$0xf]
  %v25 = vld [vmem:[%s1 + $0x4] sm:$0xf]
  %v26 = vld [vmem:[%s1 + $0x8] sm:$0xf]
  %v27 = vld [vmem:[%s1 + $0xc] sm:$0xf]
  %v28 = vld [vmem:[%s1 + $0x10] sm:$0xf]
  %v29 = vld [vmem:[%s1 + $0x14] sm:$0xf]
  %v30 = vld [vmem:[%s1 + $0x18] sm:$0xf]
  %v31 = vld [vmem:[%s1 + $0x1c] sm:$0xf]
  %v32 = vld [vmem:[%s1 + $0x20] sm:$0xf]
  %v33 = vld [vmem:[%s1 + $0x24] sm:$0xf]
  %v34 = vld [vmem:[%s1 + $0x28] sm:$0xf]
  %v35 = vld [vmem:[%s1 + $0x2c] sm:$0xf]
  %v36 = vld [vmem:[%s1 + $0x30] sm:$0xf]
  %v37 = vld [vmem:[%s1 + $0x34] sm:$0xf]
  %v38 = vld [vmem:[%s1 + $0x38] sm:$0xf]
  %v39 = vld [vmem:[%s1 + $0x3c] sm:$0xf]
  %v40 = vld [vmem:[%s1 + $0x40] sm:$0xf]
  %v41 = vld [vmem:[%s1 + $0x44] sm:$0xf]
  %v42 = vld [vmem:[%s1 + $0x48] sm:$0xf]
  %v43 = vld [vmem:[%s1 + $0x4c] sm:$0xf]
  %v44 = vld [vmem:[%s1 + $0x50] sm:$0xf]
  %v45 = vld [vmem:[%s1 + $0x54] sm:$0xf]
  %v46 = vld [vmem:[%s1 + $0x58] sm:$0xf]
  %v47 = vld [vmem:[%s1 + $0x5c] sm:$0xf]
  %v48 = vld [vmem:[%s1 + $0x60] sm:$0xf]
  %v49 = vld [vmem:[%s1 + $0x64] sm:$0xf]
  %v50 = vld [vmem:[%s1 + $0x68] sm:$0xf]
  %v51 = vld [vmem:[%s1 + $0x6c] sm:$0xf]
  %v52 = vld [vmem:[%s1 + $0x70] sm:$0xf]
  %v53 = vld [vmem:[%s1 + $0x74] sm:$0xf]
  %v54 = vld [vmem:[%s1 + $0x78] sm:$0xf]
  %v55 = vld [vmem:[%s1 + $0x7c] sm:$0xf]
  %v56 = vld [vmem:[%s1 + $0x80] sm:$0xf]
  %v57 = vld [vmem:[%s1 + $0x84] sm:$0xf]
  %v58 = vld [vmem:[%s1 + $0x88] sm:$0xf]
  %v59 = vld [vmem:[%s1 + $0x8c] sm:$0xf]
  %v60 = vld [vmem:[%s1 + $0x90] sm:$0xf]
  %v61 = vld [vmem:[%s1 + $0x94] sm:$0xf]
  %v62 = vld [vmem:[%s1 + $0x98] sm:$0xf]
  %v63 = vld [vmem:[%s1 + $0x9c] sm:$0xf]
  %v64 = vld [vmem:[%s1 + $0xa0] sm:$0xf]
  %v65 = vld [vmem:[%s1 + $0xa4] sm:$0xf]
  %v66 = vld [vmem:[%s1 + $0xa8] sm:$0xf]
  %v67 = vld [vmem:[%s1 + $0xac] sm:$0xf]
  %v68 = vld [vmem:[%s1 + $0xb0] sm:$0xf]
  %v69 = vld [vmem:[%s1 + $0xb4] sm:$0xf]
  %v70 = vld [vmem:[%s1 + $0xb8] sm:$0xf]
  %v71 = vld [vmem:[%s1 + $0xbc] sm:$0xf]
  %v72 = vld [vmem:[%s2] sm:$0x1]
  %v74 = vlaneseq
  %v75 = vshrl.u32 %v74, 7
  %v76 = vsub.s32 0, %v75
  %v77 = vrot.slane %v72, %v76
  %v127 = vunpack.c.l.b16 %v24
  %v128 = vunpack.c.l.b16 %v25
  %v129 = vunpack.c.l.b16 %v26
  %v130 = vunpack.c.l.b16 %v27
  %v131 = vunpack.c.l.b16 %v28
  %v132 = vunpack.c.l.b16 %v29
  %v133 = vunpack.c.l.b16 %v30
  %v134 = vunpack.c.l.b16 %v31
  %v135 = vunpack.c.l.b16 %v32
  %v136 = vunpack.c.l.b16 %v33
  %v137 = vunpack.c.l.b16 %v34
  %v138 = vunpack.c.l.b16 %v35
  %v139 = vunpack.c.l.b16 %v36
  %v140 = vunpack.c.l.b16 %v37
  %v141 = vunpack.c.l.b16 %v38
  %v142 = vunpack.c.l.b16 %v39
  %v143 = vunpack.c.l.b16 %v40
  %v144 = vunpack.c.l.b16 %v41
  %v145 = vunpack.c.l.b16 %v42
  %v146 = vunpack.c.l.b16 %v43
  %v147 = vunpack.c.l.b16 %v44
  %v148 = vunpack.c.l.b16 %v45
  %v149 = vunpack.c.l.b16 %v46
  %v150 = vunpack.c.l.b16 %v47
  %v151 = vunpack.c.l.b16 %v48
  %v152 = vunpack.c.l.b16 %v49
  %v153 = vunpack.c.l.b16 %v50
  %v154 = vunpack.c.l.b16 %v51
  %v155 = vunpack.c.l.b16 %v52
  %v156 = vunpack.c.l.b16 %v53
  %v157 = vunpack.c.l.b16 %v54
  %v158 = vunpack.c.l.b16 %v55
  %v159 = vunpack.c.l.b16 %v56
  %v160 = vunpack.c.l.b16 %v57
  %v161 = vunpack.c.l.b16 %v58
  %v162 = vunpack.c.l.b16 %v59
  %v163 = vunpack.c.l.b16 %v60
  %v164 = vunpack.c.l.b16 %v61
  %v165 = vunpack.c.l.b16 %v62
  %v166 = vunpack.c.l.b16 %v63
  %v167 = vunpack.c.l.b16 %v64
  %v168 = vunpack.c.l.b16 %v65
  %v169 = vunpack.c.l.b16 %v66
  %v170 = vunpack.c.l.b16 %v67
  %v171 = vunpack.c.l.b16 %v68
  %v172 = vunpack.c.l.b16 %v69
  %v173 = vunpack.c.l.b16 %v70
  %v174 = vunpack.c.l.b16 %v71
  %v175 = vpack.c.b16 %v128, %v127
  %v176 = vpack.c.b16 %v130, %v129
  %v177 = vpack.c.b16 %v132, %v131
  %v178 = vpack.c.b16 %v134, %v133
  %v179 = vpack.c.b16 %v136, %v135
  %v180 = vpack.c.b16 %v138, %v137
  %v181 = vpack.c.b16 %v140, %v139
  %v182 = vpack.c.b16 %v142, %v141
  %v183 = vpack.c.b16 %v144, %v143
  %v184 = vpack.c.b16 %v146, %v145
  %v185 = vpack.c.b16 %v148, %v147
  %v186 = vpack.c.b16 %v150, %v149
  %v187 = vpack.c.b16 %v152, %v151
  %v188 = vpack.c.b16 %v154, %v153
  %v189 = vpack.c.b16 %v156, %v155
  %v190 = vpack.c.b16 %v158, %v157
  %v191 = vpack.c.b16 %v160, %v159
  %v192 = vpack.c.b16 %v162, %v161
  %v193 = vpack.c.b16 %v164, %v163
  %v194 = vpack.c.b16 %v166, %v165
  %v195 = vpack.c.b16 %v168, %v167
  %v196 = vpack.c.b16 %v170, %v169
  %v197 = vpack.c.b16 %v172, %v171
  %v198 = vpack.c.b16 %v174, %v173
  %223 = vmatprep.subr.bf16.mxu0 0
  %224 = vmatpush1.bf16.msra.mxu0 %v175
  %225 = vmatprep.subr.bf16.mxu0 0
  %226 = vmatpush1.bf16.msra.mxu0 %v176
  %227 = vmatprep.subr.bf16.mxu0 0
  %228 = vmatpush1.bf16.msra.mxu0 %v177
  %229 = vmatprep.subr.bf16.mxu0 0
  %230 = vmatpush1.bf16.msra.mxu0 %v178
  %231 = vmatprep.subr.bf16.mxu0 0
  %232 = vmatpush1.bf16.msra.mxu0 %v179
  %233 = vmatprep.subr.bf16.mxu0 0
  %234 = vmatpush1.bf16.msra.mxu0 %v180
  %235 = vmatprep.subr.bf16.mxu0 0
  %236 = vmatpush1.bf16.msra.mxu0 %v181
  %237 = vmatprep.subr.bf16.mxu0 0
  %238 = vmatpush1.bf16.msra.mxu0 %v182
  %239 = vmatprep.subr.bf16.mxu0 0
  %240 = vmatpush1.bf16.msra.mxu0 %v183
  %241 = vmatprep.subr.bf16.mxu0 0
  %242 = vmatpush1.bf16.msra.mxu0 %v184
  %243 = vmatprep.subr.bf16.mxu0 0
  %244 = vmatpush1.bf16.msra.mxu0 %v185
  %245 = vmatprep.subr.bf16.mxu0 0
  %246 = vmatpush1.bf16.msra.mxu0 %v186
  %247 = vmatprep.subr.bf16.mxu0 0
  %248 = vmatpush1.bf16.msra.mxu0 %v187
  %249 = vmatprep.subr.bf16.mxu0 0
  %250 = vmatpush1.bf16.msra.mxu0 %v188
  %251 = vmatprep.subr.bf16.mxu0 0
  %252 = vmatpush1.bf16.msra.mxu0 %v189
  %253 = vmatprep.subr.bf16.mxu0 0
  %254 = vmatpush1.bf16.msra.mxu0 %v190
  %255 = vmatprep.mubr.bf16.mxu0 %v22
  %256 = vmatmul.mubr.bf16.gmra.mrb[0].mxu0 %v21
  %v257 = vpop.f32.mrb[0].mxu0
  %v258 = vadd.f32 %v77, %v257
  %v259 = vpop.f32.mrb[0].mxu0
  %v260 = vpop.f32.mrb[0].mxu0
  %v261 = vadd.f32 %v77, %v260
  %v262 = vpop.f32.mrb[0].mxu0
  %263 = vdwg.mxu0
  %264 = vmatprep.subr.bf16.mxu0 0
  %265 = vmatpush1.bf16.msra.mxu0 %v191
  %266 = vmatprep.subr.bf16.mxu0 0
  %267 = vmatpush1.bf16.msra.mxu0 %v192
  %268 = vmatprep.subr.bf16.mxu0 0
  %269 = vmatpush1.bf16.msra.mxu0 %v193
  %270 = vmatprep.subr.bf16.mxu0 0
  %271 = vmatpush1.bf16.msra.mxu0 %v194
  %272 = vmatprep.subr.bf16.mxu0 0
  %273 = vmatpush1.bf16.msra.mxu0 %v195
  %274 = vmatprep.subr.bf16.mxu0 0
  %275 = vmatpush1.bf16.msra.mxu0 %v196
  %276 = vmatprep.subr.bf16.mxu0 0
  %277 = vmatpush1.bf16.msra.mxu0 %v197
  %278 = vmatprep.subr.bf16.mxu0 0
  %279 = vmatpush1.bf16.msra.mxu0 %v198
  %280 = vmatprep.subr.bf16.mxu0 0
  %281 = vmatpush1.bf16.msra.mxu0 0
  %282 = vmatprep.subr.bf16.mxu0 0
  %283 = vmatpush1.bf16.msra.mxu0 0
  %284 = vmatprep.subr.bf16.mxu0 0
  %285 = vmatpush1.bf16.msra.mxu0 0
  %286 = vmatprep.subr.bf16.mxu0 0
  %287 = vmatpush1.bf16.msra.mxu0 0
  %288 = vmatprep.subr.bf16.mxu0 0
  %289 = vmatpush1.bf16.msra.mxu0 0
  %290 = vmatprep.subr.bf16.mxu0 0
  %291 = vmatpush1.bf16.msra.mxu0 0
  %292 = vmatprep.subr.bf16.mxu0 0
  %293 = vmatpush1.bf16.msra.mxu0 0
  %294 = vmatprep.subr.bf16.mxu0 0
  %295 = vmatpush1.bf16.msra.mxu0 0
  %296 = vmatprep.mubr.bf16.mxu0 0
  %297 = vmatmul.mubr.bf16.gmra.mrb[0].mxu0 %v23
  %v298 = vpop.f32.mrb[0].mxu0
  %v299 = vadd.f32 %v258, %v298
  %v300 = vpop.f32.mrb[0].mxu0
  %v301 = vpop.f32.mrb[0].mxu0
  %v302 = vadd.f32 %v261, %v301
  %v303 = vpop.f32.mrb[0].mxu0
  %304 = vdwg.mxu0
  %vm305 = vcmask 261120
  %306 = vst.msk [vmem:[%s3] sm:$0xff] %vm305, %v299
  %307 = vst.msk [vmem:[%s3 + $0x8] sm:$0xff] %vm305, %v302
  // Predicated region
  $region14: #{fwd.3} parent=0 // pred_check
    _
  $region15: #{fwd.3} parent=0 // pred_check_branch
    %309 = sbr.rel (0) target = $region17
  $region16: #{fwd.3} parent=0 // pred_region
    _
  $region17: #{fwd.3} parent=0 // pred_fallthru
    _
  // Predicated region
  $region18: #{fwd.3} parent=0 // pred_check
    _
  $region19: #{fwd.3} parent=0 // pred_check_branch
    %311 = sbr.rel (0) target = $region21
  $region20: #{fwd.3} parent=0 // pred_region
    _
  $region21: #{fwd.3} parent=0 // pred_fallthru
    _

// kernel: fwd.4
$region0: #{fwd.4}
  #allocation0 [shape = 'u32[]', space=smem, size = 0x4, offset = 0x4, fixed_abs, tag = 'smem constant byte address 0x4 - core index']
  #allocation1 [shape = 'u32[144,128]{1,0:T(1,128)}', space=vmem, size = 0x12000, scoped, tag = 'internal scratch']
  %s0 = inlined_call_operand.vmem [shape: f32[16,256], index: 0, kind: input, shape index: {}]
  %s1 = inlined_call_operand.vmem [shape: bf16[256,32], index: 1, kind: input, shape index: {}]
  %s2 = inlined_call_operand.vmem [shape: f32[1,32], index: 2, kind: input, shape index: {}]
  %s3 = inlined_call_operand.vmem [shape: f32[16,32], index: 3, kind: output, shape index: {}]
  %s4 = sld [smem:[#allocation0]]
  $region22: #{fwd.4} parent=0
    _
  %s6 = ssub.s32 1, %s4
  %s7 = scalar_select 0, %s6, %s4
  // Predicated region
  $region2: #{fwd.4} parent=0 // pred_check
    _
  $region3: #{fwd.4} parent=0 // pred_check_branch
    %9 = sbr.rel (0) target = $region5
  $region4: #{fwd.4} parent=0 // pred_region
    _
  $region5: #{fwd.4} parent=0 // pred_fallthru
    _
  // Predicated region
  $region6: #{fwd.4} parent=0 // pred_check
    _
  $region7: #{fwd.4} parent=0 // pred_check_branch
    %11 = sbr.rel (0) target = $region9
  $region8: #{fwd.4} parent=0 // pred_region
    _
  $region9: #{fwd.4} parent=0 // pred_fallthru
    _
  // Predicated region
  $region10: #{fwd.4} parent=0 // pred_check
    _
  $region11: #{fwd.4} parent=0 // pred_check_branch
    %13 = sbr.rel (0) target = $region13
  $region12: #{fwd.4} parent=0 // pred_region
    _
  $region13: #{fwd.4} parent=0 // pred_fallthru
    _
  %v15 = vld [vmem:[%s0] sm:$0xff]
  %v16 = vld [vmem:[%s0 + $0x8] sm:$0xff]
  %v17 = vld [vmem:[%s0 + $0x10] sm:$0xff]
  %v18 = vld [vmem:[%s0 + $0x18] sm:$0xff]
  %v19 = vpack.c.bf16 %v17, %v15
  %v20 = vpack.c.bf16 %v18, %v16
  %v21 = vld [vmem:[%s1] sm:$0xf]
  %v22 = vld [vmem:[%s1 + $0x4] sm:$0xf]
  %v23 = vld [vmem:[%s1 + $0x8] sm:$0xf]
  %v24 = vld [vmem:[%s1 + $0xc] sm:$0xf]
  %v25 = vld [vmem:[%s1 + $0x10] sm:$0xf]
  %v26 = vld [vmem:[%s1 + $0x14] sm:$0xf]
  %v27 = vld [vmem:[%s1 + $0x18] sm:$0xf]
  %v28 = vld [vmem:[%s1 + $0x1c] sm:$0xf]
  %v29 = vld [vmem:[%s1 + $0x20] sm:$0xf]
  %v30 = vld [vmem:[%s1 + $0x24] sm:$0xf]
  %v31 = vld [vmem:[%s1 + $0x28] sm:$0xf]
  %v32 = vld [vmem:[%s1 + $0x2c] sm:$0xf]
  %v33 = vld [vmem:[%s1 + $0x30] sm:$0xf]
  %v34 = vld [vmem:[%s1 + $0x34] sm:$0xf]
  %v35 = vld [vmem:[%s1 + $0x38] sm:$0xf]
  %v36 = vld [vmem:[%s1 + $0x3c] sm:$0xf]
  %v37 = vld [vmem:[%s1 + $0x40] sm:$0xf]
  %v38 = vld [vmem:[%s1 + $0x44] sm:$0xf]
  %v39 = vld [vmem:[%s1 + $0x48] sm:$0xf]
  %v40 = vld [vmem:[%s1 + $0x4c] sm:$0xf]
  %v41 = vld [vmem:[%s1 + $0x50] sm:$0xf]
  %v42 = vld [vmem:[%s1 + $0x54] sm:$0xf]
  %v43 = vld [vmem:[%s1 + $0x58] sm:$0xf]
  %v44 = vld [vmem:[%s1 + $0x5c] sm:$0xf]
  %v45 = vld [vmem:[%s1 + $0x60] sm:$0xf]
  %v46 = vld [vmem:[%s1 + $0x64] sm:$0xf]
  %v47 = vld [vmem:[%s1 + $0x68] sm:$0xf]
  %v48 = vld [vmem:[%s1 + $0x6c] sm:$0xf]
  %v49 = vld [vmem:[%s1 + $0x70] sm:$0xf]
  %v50 = vld [vmem:[%s1 + $0x74] sm:$0xf]
  %v51 = vld [vmem:[%s1 + $0x78] sm:$0xf]
  %v52 = vld [vmem:[%s1 + $0x7c] sm:$0xf]
  %v53 = vld [vmem:[%s2] sm:$0x1]
  %v55 = vlaneseq
  %v56 = vshrl.u32 %v55, 7
  %v57 = vsub.s32 0, %v56
  %v58 = vrot.slane %v53, %v57
  %v92 = vunpack.c.l.b16 %v21
  %v93 = vunpack.c.l.b16 %v22
  %v94 = vunpack.c.l.b16 %v23
  %v95 = vunpack.c.l.b16 %v24
  %v96 = vunpack.c.l.b16 %v25
  %v97 = vunpack.c.l.b16 %v26
  %v98 = vunpack.c.l.b16 %v27
  %v99 = vunpack.c.l.b16 %v28
  %v100 = vunpack.c.l.b16 %v29
  %v101 = vunpack.c.l.b16 %v30
  %v102 = vunpack.c.l.b16 %v31
  %v103 = vunpack.c.l.b16 %v32
  %v104 = vunpack.c.l.b16 %v33
  %v105 = vunpack.c.l.b16 %v34
  %v106 = vunpack.c.l.b16 %v35
  %v107 = vunpack.c.l.b16 %v36
  %v108 = vunpack.c.l.b16 %v37
  %v109 = vunpack.c.l.b16 %v38
  %v110 = vunpack.c.l.b16 %v39
  %v111 = vunpack.c.l.b16 %v40
  %v112 = vunpack.c.l.b16 %v41
  %v113 = vunpack.c.l.b16 %v42
  %v114 = vunpack.c.l.b16 %v43
  %v115 = vunpack.c.l.b16 %v44
  %v116 = vunpack.c.l.b16 %v45
  %v117 = vunpack.c.l.b16 %v46
  %v118 = vunpack.c.l.b16 %v47
  %v119 = vunpack.c.l.b16 %v48
  %v120 = vunpack.c.l.b16 %v49
  %v121 = vunpack.c.l.b16 %v50
  %v122 = vunpack.c.l.b16 %v51
  %v123 = vunpack.c.l.b16 %v52
  %v124 = vpack.c.b16 %v93, %v92
  %v125 = vpack.c.b16 %v95, %v94
  %v126 = vpack.c.b16 %v97, %v96
  %v127 = vpack.c.b16 %v99, %v98
  %v128 = vpack.c.b16 %v101, %v100
  %v129 = vpack.c.b16 %v103, %v102
  %v130 = vpack.c.b16 %v105, %v104
  %v131 = vpack.c.b16 %v107, %v106
  %v132 = vpack.c.b16 %v109, %v108
  %v133 = vpack.c.b16 %v111, %v110
  %v134 = vpack.c.b16 %v113, %v112
  %v135 = vpack.c.b16 %v115, %v114
  %v136 = vpack.c.b16 %v117, %v116
  %v137 = vpack.c.b16 %v119, %v118
  %v138 = vpack.c.b16 %v121, %v120
  %v139 = vpack.c.b16 %v123, %v122
  %156 = vmatprep.subr.bf16.mxu0 0
  %157 = vmatpush1.bf16.msra.mxu0 %v124
  %158 = vmatprep.subr.bf16.mxu0 0
  %159 = vmatpush1.bf16.msra.mxu0 %v125
  %160 = vmatprep.subr.bf16.mxu0 0
  %161 = vmatpush1.bf16.msra.mxu0 %v126
  %162 = vmatprep.subr.bf16.mxu0 0
  %163 = vmatpush1.bf16.msra.mxu0 %v127
  %164 = vmatprep.subr.bf16.mxu0 0
  %165 = vmatpush1.bf16.msra.mxu0 %v128
  %166 = vmatprep.subr.bf16.mxu0 0
  %167 = vmatpush1.bf16.msra.mxu0 %v129
  %168 = vmatprep.subr.bf16.mxu0 0
  %169 = vmatpush1.bf16.msra.mxu0 %v130
  %170 = vmatprep.subr.bf16.mxu0 0
  %171 = vmatpush1.bf16.msra.mxu0 %v131
  %172 = vmatprep.subr.bf16.mxu0 0
  %173 = vmatpush1.bf16.msra.mxu0 %v132
  %174 = vmatprep.subr.bf16.mxu0 0
  %175 = vmatpush1.bf16.msra.mxu0 %v133
  %176 = vmatprep.subr.bf16.mxu0 0
  %177 = vmatpush1.bf16.msra.mxu0 %v134
  %178 = vmatprep.subr.bf16.mxu0 0
  %179 = vmatpush1.bf16.msra.mxu0 %v135
  %180 = vmatprep.subr.bf16.mxu0 0
  %181 = vmatpush1.bf16.msra.mxu0 %v136
  %182 = vmatprep.subr.bf16.mxu0 0
  %183 = vmatpush1.bf16.msra.mxu0 %v137
  %184 = vmatprep.subr.bf16.mxu0 0
  %185 = vmatpush1.bf16.msra.mxu0 %v138
  %186 = vmatprep.subr.bf16.mxu0 0
  %187 = vmatpush1.bf16.msra.mxu0 %v139
  %188 = vmatprep.mubr.bf16.mxu0 %v20
  %189 = vmatmul.mubr.bf16.gmra.mrb[0].mxu0 %v19
  %v190 = vpop.f32.mrb[0].mxu0
  %v191 = vadd.f32 %v58, %v190
  %v192 = vpop.f32.mrb[0].mxu0
  %v193 = vpop.f32.mrb[0].mxu0
  %v194 = vadd.f32 %v58, %v193
  %v195 = vpop.f32.mrb[0].mxu0
  %196 = vdwg.mxu0
  %vm197 = vcmask 261120
  %198 = vst.msk [vmem:[%s3] sm:$0xff] %vm197, %v191
  %199 = vst.msk [vmem:[%s3 + $0x8] sm:$0xff] %vm197, %v194
  // Predicated region
  $region14: #{fwd.4} parent=0 // pred_check
    _
  $region15: #{fwd.4} parent=0 // pred_check_branch
    %201 = sbr.rel (0) target = $region17
  $region16: #{fwd.4} parent=0 // pred_region
    _
  $region17: #{fwd.4} parent=0 // pred_fallthru
    _
  // Predicated region
  $region18: #{fwd.4} parent=0 // pred_check
    _
  $region19: #{fwd.4} parent=0 // pred_check_branch
    %203 = sbr.rel (0) target = $region21
  $region20: #{fwd.4} parent=0 // pred_region
    _
  $region21: #{fwd.4} parent=0 // pred_fallthru
    _

// kernel: fwd.5
$region0: #{fwd.5}
  #allocation0 [shape = 'u32[]', space=smem, size = 0x4, offset = 0x4, fixed_abs, tag = 'smem constant byte address 0x4 - core index']
  #allocation1 [shape = 'u32[144,128]{1,0:T(1,128)}', space=vmem, size = 0x12000, scoped, tag = 'internal scratch']
  #allocation2 [shape = 'f32[2,8,32]{2,1,0:T(8,128)}', space=vmem, size = 0x2000, scoped, tag = 'scratch operand']
  #allocation3 [shape = 'f32[16,96]{1,0:T(8,128)}', space=vmem, size = 0x2000, scoped, tag = 'scratch operand']
  #allocation4 [shape = 'f32[16,32]{1,0:T(8,128)}', space=vmem, size = 0x2000, scoped, tag = 'scratch operand']
  %s0 = inlined_call_operand.vmem [shape: f32[2,4,32], index: 0, kind: input, shape index: {}]
  %s1 = inlined_call_operand.vmem [shape: f32[2,4,32], index: 1, kind: input, shape index: {}]
  %s2 = inlined_call_operand.vmem [shape: f32[2,1,32], index: 2, kind: input, shape index: {}]
  %s3 = inlined_call_operand.vmem [shape: f32[2,1,32], index: 3, kind: input, shape index: {}]
  %s4 = inlined_call_operand.vmem [shape: bf16[2,32,96], index: 4, kind: input, shape index: {}]
  %s5 = inlined_call_operand.vmem [shape: f32[2,1,96], index: 5, kind: input, shape index: {}]
  %s6 = inlined_call_operand.vmem [shape: bf16[2,32,32], index: 6, kind: input, shape index: {}]
  %s7 = inlined_call_operand.vmem [shape: f32[2,1,32], index: 7, kind: input, shape index: {}]
  %s8 = inlined_call_operand.vmem [shape: f32[2,1,32], index: 8, kind: input, shape index: {}]
  %s9 = inlined_call_operand.vmem [shape: f32[2,1,32], index: 9, kind: input, shape index: {}]
  %s10 = inlined_call_operand.vmem [shape: bf16[2,32,128], index: 10, kind: input, shape index: {}]
  %s11 = inlined_call_operand.vmem [shape: f32[2,1,128], index: 11, kind: input, shape index: {}]
  %s12 = inlined_call_operand.vmem [shape: bf16[2,128,32], index: 12, kind: input, shape index: {}]
  %s13 = inlined_call_operand.vmem [shape: f32[2,1,32], index: 13, kind: input, shape index: {}]
  %s14 = inlined_call_operand.vmem [shape: f32[1,32], index: 14, kind: input, shape index: {}]
  %s15 = inlined_call_operand.vmem [shape: f32[1,32], index: 15, kind: input, shape index: {}]
  %s16 = inlined_call_operand.vmem [shape: f32[1,32], index: 16, kind: input, shape index: {}]
  %s17 = inlined_call_operand.vmem [shape: f32[1,32], index: 17, kind: input, shape index: {}]
  %s18 = inlined_call_operand.hbm [shape: f32[2,4,32], index: 18, kind: output, shape index: {0}]
  %s19 = inlined_call_operand.hbm [shape: f32[2,4,32], index: 19, kind: output, shape index: {1}]
  %20 = xla_tuple %s18, %s19
  %s21 = sld [smem:[#allocation0]]
  $region121: #{fwd.5} parent=0
    _
  %s23 = ssub.s32 1, %s21
  %s24 = scalar_select 0, %s23, %s21
  $region1: #{fwd.5} parent=0
    #allocation5 [shape = 'u8[4096]{0}', space=vmem, size = 0x1000, scoped, tag = 'output window, operand 0, single buffered']
    #allocation6 [shape = 's32[2]{0}', space=sflag, size = 0x8, scoped, tag = 'scoped memory for fwd.5']
    #allocation7 [shape = 'u8[4096]{0}', space=vmem, size = 0x1000, scoped, tag = 'output window, operand 1, single buffered']
    #allocation8 [shape = 's32[1]{0}', space=sflag, size = 0x4, scoped, tag = 'scoped memory for fwd.5']
    %25 = vsyncpa [#allocation6], 0
    %26 = vsyncpa [#allocation8], 0
    loop: start=0, step=1, limit=4
    $region2: #{fwd.5} parent=1 // loop_pre_header
      _
    $region3: #{fwd.5} parent=1 // loop_header
      %s28 = sphi 0, %s32
      %p29 = scmp.ge.s32.totalorder %s28, 4
      %s35 = sphi 0, %s47
      %s36 = sphi 0, %s43
      %s37 = sphi 0, %s35
      %s38 = sphi 0, %s36
      %s39 = sphi 0, %s37
      %s40 = sphi 0, %s38
      %s50 = sphi 0, %s52
      %s53 = sphi 0, %s50
      %s54 = sphi 0, %s53
      %s70 = sphi 0, %s54
      %s76 = sphi 0, %s78
      %s79 = sphi 0, %s76
      %s80 = sphi 0, %s79
      %s96 = sphi 0, %s80
      %s102 = sphi 0, %s104
      %s105 = sphi 0, %s102
      %s106 = sphi 0, %s105
      %s122 = sphi 0, %s106
      %s128 = sphi 0, %s130
      %s131 = sphi 0, %s128
      %s132 = sphi 0, %s131
      %s148 = sphi 0, %s132
      %s154 = sphi 0, %s156
      %s157 = sphi 0, %s154
      %s158 = sphi 0, %s157
      %s174 = sphi 0, %s158
      %s180 = sphi 0, %s182
      %s183 = sphi 0, %s180
      %s184 = sphi 0, %s183
      %s200 = sphi 0, %s184
      %s206 = sphi 0, %s208
      %s209 = sphi 0, %s206
      %s210 = sphi 0, %s209
      %s226 = sphi 0, %s210
      %s232 = sphi 0, %s234
      %s235 = sphi 0, %s232
      %s236 = sphi 0, %s235
      %s252 = sphi 0, %s236
      %s258 = sphi 0, %s260
      %s261 = sphi 0, %s258
      %s262 = sphi 0, %s261
      %s278 = sphi 0, %s262
      %s284 = sphi 0, %s286
      %s287 = sphi 0, %s284
      %s288 = sphi 0, %s287
      %s304 = sphi 0, %s288
      %s310 = sphi 0, %s312
      %s313 = sphi 0, %s310
      %s314 = sphi 0, %s313
      %s330 = sphi 0, %s314
      %s336 = sphi 0, %s338
      %s339 = sphi 0, %s336
      %s340 = sphi 0, %s339
      %s356 = sphi 0, %s340
      %s362 = sphi 0, %s364
      %s365 = sphi 0, %s362
      %s366 = sphi 0, %s365
      %s382 = sphi 0, %s366
      %s388 = sphi 0, %s390
      %s391 = sphi 0, %s388
      %s392 = sphi 0, %s391
      %s408 = sphi 0, %s392
      %s412 = sphi 0, %s412
      %s414 = sphi 0, %s412
      %s415 = sphi 0, %s414
      %s429 = sphi 0, %s415
      %s433 = sphi 0, %s433
      %s435 = sphi 0, %s433
      %s436 = sphi 0, %s435
      %s450 = sphi 0, %s436
      %s454 = sphi 0, %s454
      %s456 = sphi 0, %s454
      %s457 = sphi 0, %s456
      %s471 = sphi 0, %s457
      %s475 = sphi 0, %s475
      %s477 = sphi 0, %s475
      %s478 = sphi 0, %s477
      %s492 = sphi 0, %s478
      %s498 = sphi 0, %s500
      %s501 = sphi 0, %s498
      %s502 = sphi 0, %s501
      %s518 = sphi 0, %s502
      %s524 = sphi 0, %s526
      %s527 = sphi 0, %s524
      %s528 = sphi 0, %s527
      %s544 = sphi 0, %s528
    $region4: #{fwd.5} parent=1 // loop_header_branch
      %31 = sbr.rel (%p29) target = $region8
    $region5: #{fwd.5} parent=1 // loop_body
      %s33 = ssub.s32 %s28, 1
      %s34 = ssub.s32 %s28, 2
      %s41 = sadd.s32 1, %s36
      %p42 = scmp.ge.s32.totalorder %s41, 2
      %s43 = scalar_select %p42, 0, %s41
      %s44 = sadd.s32 1, %s35
      %s45 = scalar_select %p42, %s44, %s35
      %p46 = scmp.ge.s32.totalorder %s45, 1
      %s47 = scalar_select %p46, 0, %s45
      %s48 = ssub.s32 %s35, %s47
      %p49 = scmp.eq.s32.totalorder %s48, 0
      %s51 = sadd.s32 %s50, 1
      %s52 = scalar_select %p49, %s50, %s51
      %p55 = pneg %p49
      %p56 = scmp.eq.s32.totalorder %s28, 1
      %p57 = por %p55, %p56
      %p58 = scmp.ne.s32.totalorder %s50, %s53
      %p59 = scmp.eq.s32.totalorder %s28, 0
      %p60 = por %p58, %p59
      %p61 = scmp.ne.s32.totalorder %s50, %s53
      %p62 = scmp.eq.s32.totalorder %s33, 1
      %p63 = por %p61, %p62
      %p64 = scmp.ne.s32.totalorder %s53, %s54
      %p65 = scmp.eq.s32.totalorder %s33, 0
      %p66 = por %p64, %p65
      %p67 = scmp.ne.s32.totalorder %s53, %s54
      %p68 = scmp.eq.s32.totalorder %s34, 1
      %p69 = por %p67, %p68
      %p71 = scmp.ne.s32.totalorder %s54, %s70
      %p72 = scmp.eq.s32.totalorder %s34, 0
      %p73 = por %p71, %p72
      %s74 = ssub.s32 %s35, %s47
      %p75 = scmp.eq.s32.totalorder %s74, 0
      %s77 = sadd.s32 %s76, 1
      %s78 = scalar_select %p75, %s76, %s77
      %p81 = pneg %p75
      %p82 = scmp.eq.s32.totalorder %s28, 1
      %p83 = por %p81, %p82
      %p84 = scmp.ne.s32.totalorder %s76, %s79
      %p85 = scmp.eq.s32.totalorder %s28, 0
      %p86 = por %p84, %p85
      %p87 = scmp.ne.s32.totalorder %s76, %s79
      %p88 = scmp.eq.s32.totalorder %s33, 1
      %p89 = por %p87, %p88
      %p90 = scmp.ne.s32.totalorder %s79, %s80
      %p91 = scmp.eq.s32.totalorder %s33, 0
      %p92 = por %p90, %p91
      %p93 = scmp.ne.s32.totalorder %s79, %s80
      %p94 = scmp.eq.s32.totalorder %s34, 1
      %p95 = por %p93, %p94
      %p97 = scmp.ne.s32.totalorder %s80, %s96
      %p98 = scmp.eq.s32.totalorder %s34, 0
      %p99 = por %p97, %p98
      %s100 = ssub.s32 %s36, %s43
      %p101 = scmp.eq.s32.totalorder %s100, 0
      %s103 = sadd.s32 %s102, 1
      %s104 = scalar_select %p101, %s102, %s103
      %p107 = pneg %p101
      %p108 = scmp.eq.s32.totalorder %s28, 1
      %p109 = por %p107, %p108
      %p110 = scmp.ne.s32.totalorder %s102, %s105
      %p111 = scmp.eq.s32.totalorder %s28, 0
      %p112 = por %p110, %p111
      %p113 = scmp.ne.s32.totalorder %s102, %s105
      %p114 = scmp.eq.s32.totalorder %s33, 1
      %p115 = por %p113, %p114
      %p116 = scmp.ne.s32.totalorder %s105, %s106
      %p117 = scmp.eq.s32.totalorder %s33, 0
      %p118 = por %p116, %p117
      %p119 = scmp.ne.s32.totalorder %s105, %s106
      %p120 = scmp.eq.s32.totalorder %s34, 1
      %p121 = por %p119, %p120
      %p123 = scmp.ne.s32.totalorder %s106, %s122
      %p124 = scmp.eq.s32.totalorder %s34, 0
      %p125 = por %p123, %p124
      %s126 = ssub.s32 %s36, %s43
      %p127 = scmp.eq.s32.totalorder %s126, 0
      %s129 = sadd.s32 %s128, 1
      %s130 = scalar_select %p127, %s128, %s129
      %p133 = pneg %p127
      %p134 = scmp.eq.s32.totalorder %s28, 1
      %p135 = por %p133, %p134
      %p136 = scmp.ne.s32.totalorder %s128, %s131
      %p137 = scmp.eq.s32.totalorder %s28, 0
      %p138 = por %p136, %p137
      %p139 = scmp.ne.s32.totalorder %s128, %s131
      %p140 = scmp.eq.s32.totalorder %s33, 1
      %p141 = por %p139, %p140
      %p142 = scmp.ne.s32.totalorder %s131, %s132
      %p143 = scmp.eq.s32.totalorder %s33, 0
      %p144 = por %p142, %p143
      %p145 = scmp.ne.s32.totalorder %s131, %s132
      %p146 = scmp.eq.s32.totalorder %s34, 1
      %p147 = por %p145, %p146
      %p149 = scmp.ne.s32.totalorder %s132, %s148
      %p150 = scmp.eq.s32.totalorder %s34, 0
      %p151 = por %p149, %p150
      %s152 = ssub.s32 %s36, %s43
      %p153 = scmp.eq.s32.totalorder %s152, 0
      %s155 = sadd.s32 %s154, 1
      %s156 = scalar_select %p153, %s154, %s155
      %p159 = pneg %p153
      %p160 = scmp.eq.s32.totalorder %s28, 1
      %p161 = por %p159, %p160
      %p162 = scmp.ne.s32.totalorder %s154, %s157
      %p163 = scmp.eq.s32.totalorder %s28, 0
      %p164 = por %p162, %p163
      %p165 = scmp.ne.s32.totalorder %s154, %s157
      %p166 = scmp.eq.s32.totalorder %s33, 1
      %p167 = por %p165, %p166
      %p168 = scmp.ne.s32.totalorder %s157, %s158
      %p169 = scmp.eq.s32.totalorder %s33, 0
      %p170 = por %p168, %p169
      %p171 = scmp.ne.s32.totalorder %s157, %s158
      %p172 = scmp.eq.s32.totalorder %s34, 1
      %p173 = por %p171, %p172
      %p175 = scmp.ne.s32.totalorder %s158, %s174
      %p176 = scmp.eq.s32.totalorder %s34, 0
      %p177 = por %p175, %p176
      %s178 = ssub.s32 %s36, %s43
      %p179 = scmp.eq.s32.totalorder %s178, 0
      %s181 = sadd.s32 %s180, 1
      %s182 = scalar_select %p179, %s180, %s181
      %p185 = pneg %p179
      %p186 = scmp.eq.s32.totalorder %s28, 1
      %p187 = por %p185, %p186
      %p188 = scmp.ne.s32.totalorder %s180, %s183
      %p189 = scmp.eq.s32.totalorder %s28, 0
      %p190 = por %p188, %p189
      %p191 = scmp.ne.s32.totalorder %s180, %s183
      %p192 = scmp.eq.s32.totalorder %s33, 1
      %p193 = por %p191, %p192
      %p194 = scmp.ne.s32.totalorder %s183, %s184
      %p195 = scmp.eq.s32.totalorder %s33, 0
      %p196 = por %p194, %p195
      %p197 = scmp.ne.s32.totalorder %s183, %s184
      %p198 = scmp.eq.s32.totalorder %s34, 1
      %p199 = por %p197, %p198
      %p201 = scmp.ne.s32.totalorder %s184, %s200
      %p202 = scmp.eq.s32.totalorder %s34, 0
      %p203 = por %p201, %p202
      %s204 = ssub.s32 %s36, %s43
      %p205 = scmp.eq.s32.totalorder %s204, 0
      %s207 = sadd.s32 %s206, 1
      %s208 = scalar_select %p205, %s206, %s207
      %p211 = pneg %p205
      %p212 = scmp.eq.s32.totalorder %s28, 1
      %p213 = por %p211, %p212
      %p214 = scmp.ne.s32.totalorder %s206, %s209
      %p215 = scmp.eq.s32.totalorder %s28, 0
      %p216 = por %p214, %p215
      %p217 = scmp.ne.s32.totalorder %s206, %s209
      %p218 = scmp.eq.s32.totalorder %s33, 1
      %p219 = por %p217, %p218
      %p220 = scmp.ne.s32.totalorder %s209, %s210
      %p221 = scmp.eq.s32.totalorder %s33, 0
      %p222 = por %p220, %p221
      %p223 = scmp.ne.s32.totalorder %s209, %s210
      %p224 = scmp.eq.s32.totalorder %s34, 1
      %p225 = por %p223, %p224
      %p227 = scmp.ne.s32.totalorder %s210, %s226
      %p228 = scmp.eq.s32.totalorder %s34, 0
      %p229 = por %p227, %p228
      %s230 = ssub.s32 %s36, %s43
      %p231 = scmp.eq.s32.totalorder %s230, 0
      %s233 = sadd.s32 %s232, 1
      %s234 = scalar_select %p231, %s232, %s233
      %p237 = pneg %p231
      %p238 = scmp.eq.s32.totalorder %s28, 1
      %p239 = por %p237, %p238
      %p240 = scmp.ne.s32.totalorder %s232, %s235
      %p241 = scmp.eq.s32.totalorder %s28, 0
      %p242 = por %p240, %p241
      %p243 = scmp.ne.s32.totalorder %s232, %s235
      %p244 = scmp.eq.s32.totalorder %s33, 1
      %p245 = por %p243, %p244
      %p246 = scmp.ne.s32.totalorder %s235, %s236
      %p247 = scmp.eq.s32.totalorder %s33, 0
      %p248 = por %p246, %p247
      %p249 = scmp.ne.s32.totalorder %s235, %s236
      %p250 = scmp.eq.s32.totalorder %s34, 1
      %p251 = por %p249, %p250
      %p253 = scmp.ne.s32.totalorder %s236, %s252
      %p254 = scmp.eq.s32.totalorder %s34, 0
      %p255 = por %p253, %p254
      %s256 = ssub.s32 %s36, %s43
      %p257 = scmp.eq.s32.totalorder %s256, 0
      %s259 = sadd.s32 %s258, 1
      %s260 = scalar_select %p257, %s258, %s259
      %p263 = pneg %p257
      %p264 = scmp.eq.s32.totalorder %s28, 1
      %p265 = por %p263, %p264
      %p266 = scmp.ne.s32.totalorder %s258, %s261
      %p267 = scmp.eq.s32.totalorder %s28, 0
      %p268 = por %p266, %p267
      %p269 = scmp.ne.s32.totalorder %s258, %s261
      %p270 = scmp.eq.s32.totalorder %s33, 1
      %p271 = por %p269, %p270
      %p272 = scmp.ne.s32.totalorder %s261, %s262
      %p273 = scmp.eq.s32.totalorder %s33, 0
      %p274 = por %p272, %p273
      %p275 = scmp.ne.s32.totalorder %s261, %s262
      %p276 = scmp.eq.s32.totalorder %s34, 1
      %p277 = por %p275, %p276
      %p279 = scmp.ne.s32.totalorder %s262, %s278
      %p280 = scmp.eq.s32.totalorder %s34, 0
      %p281 = por %p279, %p280
      %s282 = ssub.s32 %s36, %s43
      %p283 = scmp.eq.s32.totalorder %s282, 0
      %s285 = sadd.s32 %s284, 1
      %s286 = scalar_select %p283, %s284, %s285
      %p289 = pneg %p283
      %p290 = scmp.eq.s32.totalorder %s28, 1
      %p291 = por %p289, %p290
      %p292 = scmp.ne.s32.totalorder %s284, %s287
      %p293 = scmp.eq.s32.totalorder %s28, 0
      %p294 = por %p292, %p293
      %p295 = scmp.ne.s32.totalorder %s284, %s287
      %p296 = scmp.eq.s32.totalorder %s33, 1
      %p297 = por %p295, %p296
      %p298 = scmp.ne.s32.totalorder %s287, %s288
      %p299 = scmp.eq.s32.totalorder %s33, 0
      %p300 = por %p298, %p299
      %p301 = scmp.ne.s32.totalorder %s287, %s288
      %p302 = scmp.eq.s32.totalorder %s34, 1
      %p303 = por %p301, %p302
      %p305 = scmp.ne.s32.totalorder %s288, %s304
      %p306 = scmp.eq.s32.totalorder %s34, 0
      %p307 = por %p305, %p306
      %s308 = ssub.s32 %s36, %s43
      %p309 = scmp.eq.s32.totalorder %s308, 0
      %s311 = sadd.s32 %s310, 1
      %s312 = scalar_select %p309, %s310, %s311
      %p315 = pneg %p309
      %p316 = scmp.eq.s32.totalorder %s28, 1
      %p317 = por %p315, %p316
      %p318 = scmp.ne.s32.totalorder %s310, %s313
      %p319 = scmp.eq.s32.totalorder %s28, 0
      %p320 = por %p318, %p319
      %p321 = scmp.ne.s32.totalorder %s310, %s313
      %p322 = scmp.eq.s32.totalorder %s33, 1
      %p323 = por %p321, %p322
      %p324 = scmp.ne.s32.totalorder %s313, %s314
      %p325 = scmp.eq.s32.totalorder %s33, 0
      %p326 = por %p324, %p325
      %p327 = scmp.ne.s32.totalorder %s313, %s314
      %p328 = scmp.eq.s32.totalorder %s34, 1
      %p329 = por %p327, %p328
      %p331 = scmp.ne.s32.totalorder %s314, %s330
      %p332 = scmp.eq.s32.totalorder %s34, 0
      %p333 = por %p331, %p332
      %s334 = ssub.s32 %s36, %s43
      %p335 = scmp.eq.s32.totalorder %s334, 0
      %s337 = sadd.s32 %s336, 1
      %s338 = scalar_select %p335, %s336, %s337
      %p341 = pneg %p335
      %p342 = scmp.eq.s32.totalorder %s28, 1
      %p343 = por %p341, %p342
      %p344 = scmp.ne.s32.totalorder %s336, %s339
      %p345 = scmp.eq.s32.totalorder %s28, 0
      %p346 = por %p344, %p345
      %p347 = scmp.ne.s32.totalorder %s336, %s339
      %p348 = scmp.eq.s32.totalorder %s33, 1
      %p349 = por %p347, %p348
      %p350 = scmp.ne.s32.totalorder %s339, %s340
      %p351 = scmp.eq.s32.totalorder %s33, 0
      %p352 = por %p350, %p351
      %p353 = scmp.ne.s32.totalorder %s339, %s340
      %p354 = scmp.eq.s32.totalorder %s34, 1
      %p355 = por %p353, %p354
      %p357 = scmp.ne.s32.totalorder %s340, %s356
      %p358 = scmp.eq.s32.totalorder %s34, 0
      %p359 = por %p357, %p358
      %s360 = ssub.s32 %s36, %s43
      %p361 = scmp.eq.s32.totalorder %s360, 0
      %s363 = sadd.s32 %s362, 1
      %s364 = scalar_select %p361, %s362, %s363
      %p367 = pneg %p361
      %p368 = scmp.eq.s32.totalorder %s28, 1
      %p369 = por %p367, %p368
      %p370 = scmp.ne.s32.totalorder %s362, %s365
      %p371 = scmp.eq.s32.totalorder %s28, 0
      %p372 = por %p370, %p371
      %p373 = scmp.ne.s32.totalorder %s362, %s365
      %p374 = scmp.eq.s32.totalorder %s33, 1
      %p375 = por %p373, %p374
      %p376 = scmp.ne.s32.totalorder %s365, %s366
      %p377 = scmp.eq.s32.totalorder %s33, 0
      %p378 = por %p376, %p377
      %p379 = scmp.ne.s32.totalorder %s365, %s366
      %p380 = scmp.eq.s32.totalorder %s34, 1
      %p381 = por %p379, %p380
      %p383 = scmp.ne.s32.totalorder %s366, %s382
      %p384 = scmp.eq.s32.totalorder %s34, 0
      %p385 = por %p383, %p384
      %s386 = ssub.s32 %s36, %s43
      %p387 = scmp.eq.s32.totalorder %s386, 0
      %s389 = sadd.s32 %s388, 1
      %s390 = scalar_select %p387, %s388, %s389
      %p393 = pneg %p387
      %p394 = scmp.eq.s32.totalorder %s28, 1
      %p395 = por %p393, %p394
      %p396 = scmp.ne.s32.totalorder %s388, %s391
      %p397 = scmp.eq.s32.totalorder %s28, 0
      %p398 = por %p396, %p397
      %p399 = scmp.ne.s32.totalorder %s388, %s391
      %p400 = scmp.eq.s32.totalorder %s33, 1
      %p401 = por %p399, %p400
      %p402 = scmp.ne.s32.totalorder %s391, %s392
      %p403 = scmp.eq.s32.totalorder %s33, 0
      %p404 = por %p402, %p403
      %p405 = scmp.ne.s32.totalorder %s391, %s392
      %p406 = scmp.eq.s32.totalorder %s34, 1
      %p407 = por %p405, %p406
      %p409 = scmp.ne.s32.totalorder %s392, %s408
      %p410 = scmp.eq.s32.totalorder %s34, 0
      %p411 = por %p409, %p410
      %s413 = sadd.s32 %s412, 1
      %p416 = scmp.eq.s32.totalorder %s28, 1
      %p417 = scmp.ne.s32.totalorder %s412, %s414
      %p418 = scmp.eq.s32.totalorder %s28, 0
      %p419 = por %p417, %p418
      %p420 = scmp.ne.s32.totalorder %s412, %s414
      %p421 = scmp.eq.s32.totalorder %s33, 1
      %p422 = por %p420, %p421
      %p423 = scmp.ne.s32.totalorder %s414, %s415
      %p424 = scmp.eq.s32.totalorder %s33, 0
      %p425 = por %p423, %p424
      %p426 = scmp.ne.s32.totalorder %s414, %s415
      %p427 = scmp.eq.s32.totalorder %s34, 1
      %p428 = por %p426, %p427
      %p430 = scmp.ne.s32.totalorder %s415, %s429
      %p431 = scmp.eq.s32.totalorder %s34, 0
      %p432 = por %p430, %p431
      %s434 = sadd.s32 %s433, 1
      %p437 = scmp.eq.s32.totalorder %s28, 1
      %p438 = scmp.ne.s32.totalorder %s433, %s435
      %p439 = scmp.eq.s32.totalorder %s28, 0
      %p440 = por %p438, %p439
      %p441 = scmp.ne.s32.totalorder %s433, %s435
      %p442 = scmp.eq.s32.totalorder %s33, 1
      %p443 = por %p441, %p442
      %p444 = scmp.ne.s32.totalorder %s435, %s436
      %p445 = scmp.eq.s32.totalorder %s33, 0
      %p446 = por %p444, %p445
      %p447 = scmp.ne.s32.totalorder %s435, %s436
      %p448 = scmp.eq.s32.totalorder %s34, 1
      %p449 = por %p447, %p448
      %p451 = scmp.ne.s32.totalorder %s436, %s450
      %p452 = scmp.eq.s32.totalorder %s34, 0
      %p453 = por %p451, %p452
      %s455 = sadd.s32 %s454, 1
      %p458 = scmp.eq.s32.totalorder %s28, 1
      %p459 = scmp.ne.s32.totalorder %s454, %s456
      %p460 = scmp.eq.s32.totalorder %s28, 0
      %p461 = por %p459, %p460
      %p462 = scmp.ne.s32.totalorder %s454, %s456
      %p463 = scmp.eq.s32.totalorder %s33, 1
      %p464 = por %p462, %p463
      %p465 = scmp.ne.s32.totalorder %s456, %s457
      %p466 = scmp.eq.s32.totalorder %s33, 0
      %p467 = por %p465, %p466
      %p468 = scmp.ne.s32.totalorder %s456, %s457
      %p469 = scmp.eq.s32.totalorder %s34, 1
      %p470 = por %p468, %p469
      %p472 = scmp.ne.s32.totalorder %s457, %s471
      %p473 = scmp.eq.s32.totalorder %s34, 0
      %p474 = por %p472, %p473
      %s476 = sadd.s32 %s475, 1
      %p479 = scmp.eq.s32.totalorder %s28, 1
      %p480 = scmp.ne.s32.totalorder %s475, %s477
      %p481 = scmp.eq.s32.totalorder %s28, 0
      %p482 = por %p480, %p481
      %p483 = scmp.ne.s32.totalorder %s475, %s477
      %p484 = scmp.eq.s32.totalorder %s33, 1
      %p485 = por %p483, %p484
      %p486 = scmp.ne.s32.totalorder %s477, %s478
      %p487 = scmp.eq.s32.totalorder %s33, 0
      %p488 = por %p486, %p487
      %p489 = scmp.ne.s32.totalorder %s477, %s478
      %p490 = scmp.eq.s32.totalorder %s34, 1
      %p491 = por %p489, %p490
      %p493 = scmp.ne.s32.totalorder %s478, %s492
      %p494 = scmp.eq.s32.totalorder %s34, 0
      %p495 = por %p493, %p494
      %s496 = ssub.s32 %s35, %s47
      %p497 = scmp.eq.s32.totalorder %s496, 0
      %s499 = sadd.s32 %s498, 1
      %s500 = scalar_select %p497, %s498, %s499
      %p503 = pneg %p497
      %p504 = scmp.eq.s32.totalorder %s28, 1
      %p505 = por %p503, %p504
      %p506 = scmp.ne.s32.totalorder %s498, %s501
      %p507 = scmp.eq.s32.totalorder %s28, 0
      %p508 = por %p506, %p507
      %p509 = scmp.ne.s32.totalorder %s498, %s501
      %p510 = scmp.eq.s32.totalorder %s33, 1
      %p511 = por %p509, %p510
      %p512 = scmp.ne.s32.totalorder %s501, %s502
      %p513 = scmp.eq.s32.totalorder %s33, 0
      %p514 = por %p512, %p513
      %p515 = scmp.ne.s32.totalorder %s501, %s502
      %p516 = scmp.eq.s32.totalorder %s34, 1
      %p517 = por %p515, %p516
      %p519 = scmp.ne.s32.totalorder %s502, %s518
      %p520 = scmp.eq.s32.totalorder %s34, 0
      %p521 = por %p519, %p520
      %s522 = ssub.s32 %s35, %s47
      %p523 = scmp.eq.s32.totalorder %s522, 0
      %s525 = sadd.s32 %s524, 1
      %s526 = scalar_select %p523, %s524, %s525
      %p529 = pneg %p523
      %p530 = scmp.eq.s32.totalorder %s28, 1
      %p531 = por %p529, %p530
      %p532 = scmp.ne.s32.totalorder %s524, %s527
      %p533 = scmp.eq.s32.totalorder %s28, 0
      %p534 = por %p532, %p533
      %p535 = scmp.ne.s32.totalorder %s524, %s527
      %p536 = scmp.eq.s32.totalorder %s33, 1
      %p537 = por %p535, %p536
      %p538 = scmp.ne.s32.totalorder %s527, %s528
      %p539 = scmp.eq.s32.totalorder %s33, 0
      %p540 = por %p538, %p539
      %p541 = scmp.ne.s32.totalorder %s527, %s528
      %p542 = scmp.eq.s32.totalorder %s34, 1
      %p543 = por %p541, %p542
      %p545 = scmp.ne.s32.totalorder %s528, %s544
      %p546 = scmp.eq.s32.totalorder %s34, 0
      %p547 = por %p545, %p546
      %p548 = scmp.le.s32.totalorder 1, %s28
      %p549 = scmp.lt.s32.totalorder %s28, 3
      %p550 = pnand %p548, %p549
      %p551 = pneg %p550
      // Predicated region
      $region9: #{fwd.5} parent=5 // pred_check
        _
      $region10: #{fwd.5} parent=5 // pred_check_branch
        %553 = sbr.rel (%p550) target = $region12
      $region11: #{fwd.5} parent=5 // pred_region
        %s554 = ssub.s32 %s28, 1
        // Predicated region
        $region13: #{fwd.5} parent=11 // pred_check
          %p555 = pneg %p66
        $region14: #{fwd.5} parent=11 // pred_check_branch
          %557 = sbr.rel (%p555) target = $region16
        $region15: #{fwd.5} parent=11 // pred_region
          %s558 = smul.u32 2, %s37
          %p559 = scmp.lt.s32.totalorder %s558, 1
          %s560 = scalar_select %p559, %s558, 1
          %s561 = smul.addr %s560, 4
          %s562 = scalar_lea.vmem %s0, %s561
          %s563 = smul.u32 2, %s37
        $region16: #{fwd.5} parent=11 // pred_fallthru
          _
        // Predicated region
        $region17: #{fwd.5} parent=11 // pred_check
          %p564 = pneg %p92
        $region18: #{fwd.5} parent=11 // pred_check_branch
          %566 = sbr.rel (%p564) target = $region20
        $region19: #{fwd.5} parent=11 // pred_region
          %s567 = smul.u32 2, %s37
          %p568 = scmp.lt.s32.totalorder %s567, 1
          %s569 = scalar_select %p568, %s567, 1
          %s570 = smul.addr %s569, 4
          %s571 = scalar_lea.vmem %s1, %s570
          %s572 = smul.u32 2, %s37
        $region20: #{fwd.5} parent=11 // pred_fallthru
          _
        // Predicated region
        $region21: #{fwd.5} parent=11 // pred_check
          %p573 = pneg %p425
        $region22: #{fwd.5} parent=11 // pred_check_branch
          %575 = sbr.rel (%p573) target = $region24
        $region23: #{fwd.5} parent=11 // pred_region
          _
        $region24: #{fwd.5} parent=11 // pred_fallthru
          _
        // Predicated region
        $region25: #{fwd.5} parent=11 // pred_check
          %p576 = pneg %p446
        $region26: #{fwd.5} parent=11 // pred_check_branch
          %578 = sbr.rel (%p576) target = $region28
        $region27: #{fwd.5} parent=11 // pred_region
          _
        $region28: #{fwd.5} parent=11 // pred_fallthru
          _
        // Predicated region
        $region29: #{fwd.5} parent=11 // pred_check
          %p579 = pneg %p467
        $region30: #{fwd.5} parent=11 // pred_check_branch
          %581 = sbr.rel (%p579) target = $region32
        $region31: #{fwd.5} parent=11 // pred_region
          _
        $region32: #{fwd.5} parent=11 // pred_fallthru
          _
        // Predicated region
        $region33: #{fwd.5} parent=11 // pred_check
          %p582 = pneg %p488
        $region34: #{fwd.5} parent=11 // pred_check_branch
          %584 = sbr.rel (%p582) target = $region36
        $region35: #{fwd.5} parent=11 // pred_region
          _
        $region36: #{fwd.5} parent=11 // pred_fallthru
          _
      $region12: #{fwd.5} parent=5 // pred_fallthru
        _
      %p585 = scmp.lt.s32.totalorder %s28, 2
      // Predicated region
      $region37: #{fwd.5} parent=5 // pred_check
        %p586 = pneg %p585
      $region38: #{fwd.5} parent=5 // pred_check_branch
        %588 = sbr.rel (%p586) target = $region40
      $region39: #{fwd.5} parent=5 // pred_region
        // Predicated region
        $region41: #{fwd.5} parent=39 // pred_check
          %p589 = pneg %p112
        $region42: #{fwd.5} parent=39 // pred_check_branch
          %591 = sbr.rel (%p589) target = $region44
        $region43: #{fwd.5} parent=39 // pred_region
          %p592 = scmp.lt.s32.totalorder %s36, 1
          %s593 = scalar_select %p592, %s36, 1
          %s594 = scalar_lea.vmem %s2, %s593
        $region44: #{fwd.5} parent=39 // pred_fallthru
          _
        // Predicated region
        $region45: #{fwd.5} parent=39 // pred_check
          %p595 = pneg %p138
        $region46: #{fwd.5} parent=39 // pred_check_branch
          %597 = sbr.rel (%p595) target = $region48
        $region47: #{fwd.5} parent=39 // pred_region
          %p598 = scmp.lt.s32.totalorder %s36, 1
          %s599 = scalar_select %p598, %s36, 1
          %s600 = scalar_lea.vmem %s3, %s599
        $region48: #{fwd.5} parent=39 // pred_fallthru
          _
        // Predicated region
        $region49: #{fwd.5} parent=39 // pred_check
          %p601 = pneg %p164
        $region50: #{fwd.5} parent=39 // pred_check_branch
          %603 = sbr.rel (%p601) target = $region52
        $region51: #{fwd.5} parent=39 // pred_region
          %p604 = scmp.lt.s32.totalorder %s36, 1
          %s605 = scalar_select %p604, %s36, 1
          %s606 = smul.addr %s605, 4
          %s607 = smul.addr %s606, 4
          %s608 = scalar_lea.vmem %s4, %s607
        $region52: #{fwd.5} parent=39 // pred_fallthru
          _
        // Predicated region
        $region53: #{fwd.5} parent=39 // pred_check
          %p609 = pneg %p190
        $region54: #{fwd.5} parent=39 // pred_check_branch
          %611 = sbr.rel (%p609) target = $region56
        $region55: #{fwd.5} parent=39 // pred_region
          %p612 = scmp.lt.s32.totalorder %s36, 1
          %s613 = scalar_select %p612, %s36, 1
          %s614 = scalar_lea.vmem %s5, %s613
        $region56: #{fwd.5} parent=39 // pred_fallthru
          _
        // Predicated region
        $region57: #{fwd.5} parent=39 // pred_check
          %p615 = pneg %p216
        $region58: #{fwd.5} parent=39 // pred_check_branch
          %617 = sbr.rel (%p615) target = $region60
        $region59: #{fwd.5} parent=39 // pred_region
          %p618 = scmp.lt.s32.totalorder %s36, 1
          %s619 = scalar_select %p618, %s36, 1
          %s620 = smul.addr %s619, 4
          %s621 = smul.addr %s620, 4
          %s622 = scalar_lea.vmem %s6, %s621
        $region60: #{fwd.5} parent=39 // pred_fallthru
          _
        // Predicated region
        $region61: #{fwd.5} parent=39 // pred_check
          %p623 = pneg %p242
        $region62: #{fwd.5} parent=39 // pred_check_branch
          %625 = sbr.rel (%p623) target = $region64
        $region63: #{fwd.5} parent=39 // pred_region
          %p626 = scmp.lt.s32.totalorder %s36, 1
          %s627 = scalar_select %p626, %s36, 1
          %s628 = scalar_lea.vmem %s7, %s627
        $region64: #{fwd.5} parent=39 // pred_fallthru
          _
        // Predicated region
        $region65: #{fwd.5} parent=39 // pred_check
          %p629 = pneg %p268
        $region66: #{fwd.5} parent=39 // pred_check_branch
          %631 = sbr.rel (%p629) target = $region68
        $region67: #{fwd.5} parent=39 // pred_region
          %p632 = scmp.lt.s32.totalorder %s36, 1
          %s633 = scalar_select %p632, %s36, 1
          %s634 = scalar_lea.vmem %s8, %s633
        $region68: #{fwd.5} parent=39 // pred_fallthru
          _
        // Predicated region
        $region69: #{fwd.5} parent=39 // pred_check
          %p635 = pneg %p294
        $region70: #{fwd.5} parent=39 // pred_check_branch
          %637 = sbr.rel (%p635) target = $region72
        $region71: #{fwd.5} parent=39 // pred_region
          %p638 = scmp.lt.s32.totalorder %s36, 1
          %s639 = scalar_select %p638, %s36, 1
          %s640 = scalar_lea.vmem %s9, %s639
        $region72: #{fwd.5} parent=39 // pred_fallthru
          _
        // Predicated region
        $region73: #{fwd.5} parent=39 // pred_check
          %p641 = pneg %p320
        $region74: #{fwd.5} parent=39 // pred_check_branch
          %643 = sbr.rel (%p641) target = $region76
        $region75: #{fwd.5} parent=39 // pred_region
          %p644 = scmp.lt.s32.totalorder %s36, 1
          %s645 = scalar_select %p644, %s36, 1
          %s646 = smul.addr %s645, 4
          %s647 = smul.addr %s646, 4
          %s648 = scalar_lea.vmem %s10, %s647
        $region76: #{fwd.5} parent=39 // pred_fallthru
          _
        // Predicated region
        $region77: #{fwd.5} parent=39 // pred_check
          %p649 = pneg %p346
        $region78: #{fwd.5} parent=39 // pred_check_branch
          %651 = sbr.rel (%p649) target = $region80
        $region79: #{fwd.5} parent=39 // pred_region
          %p652 = scmp.lt.s32.totalorder %s36, 1
          %s653 = scalar_select %p652, %s36, 1
          %s654 = scalar_lea.vmem %s11, %s653
        $region80: #{fwd.5} parent=39 // pred_fallthru
          _
        // Predicated region
        $region81: #{fwd.5} parent=39 // pred_check
          %p655 = pneg %p372
        $region82: #{fwd.5} parent=39 // pred_check_branch
          %657 = sbr.rel (%p655) target = $region84
        $region83: #{fwd.5} parent=39 // pred_region
          %p658 = scmp.lt.s32.totalorder %s36, 1
          %s659 = scalar_select %p658, %s36, 1
          %s660 = smul.addr %s659, 16
          %s661 = smul.addr %s660, 4
          %s662 = scalar_lea.vmem %s12, %s661
        $region84: #{fwd.5} parent=39 // pred_fallthru
          _
        // Predicated region
        $region85: #{fwd.5} parent=39 // pred_check
          %p663 = pneg %p398
        $region86: #{fwd.5} parent=39 // pred_check_branch
          %665 = sbr.rel (%p663) target = $region88
        $region87: #{fwd.5} parent=39 // pred_region
          %p666 = scmp.lt.s32.totalorder %s36, 1
          %s667 = scalar_select %p666, %s36, 1
          %s668 = scalar_lea.vmem %s13, %s667
        $region88: #{fwd.5} parent=39 // pred_fallthru
          _
      $region40: #{fwd.5} parent=5 // pred_fallthru
        _
      %p669 = scmp.le.s32.totalorder 1, %s28
      %p670 = scmp.lt.s32.totalorder %s28, 3
      %p671 = pnand %p669, %p670
      %p672 = pneg %p671
      // Predicated region
      $region89: #{fwd.5} parent=5 // pred_check
        _
      $region90: #{fwd.5} parent=5 // pred_check_branch
        %674 = sbr.rel (%p671) target = $region92
      $region91: #{fwd.5} parent=5 // pred_region
        %s675 = ssub.s32 %s28, 1
        %s676 = smul.u32 2, %s37
        %p677 = scmp.lt.s32.totalorder %s676, 1
        %s678 = scalar_select %p677, %s676, 1
        %s679 = smul.addr %s678, 4
        %s680 = scalar_lea.vmem %s0, %s679
        %p681 = pneg %p66
        %p682 = pneg %p63
        %s683 = smul.u32 2, %s37
        %p684 = scmp.lt.s32.totalorder %s683, 1
        %s685 = scalar_select %p684, %s683, 1
        %s686 = smul.addr %s685, 4
        %s687 = scalar_lea.vmem %s1, %s686
        %p688 = pneg %p92
        %p689 = pneg %p89
        %p690 = scmp.lt.s32.totalorder %s38, 1
        %s691 = scalar_select %p690, %s38, 1
        %s692 = scalar_lea.vmem %s2, %s691
        %p693 = pneg %p118
        %p694 = pneg %p115
        %p695 = scmp.lt.s32.totalorder %s38, 1
        %s696 = scalar_select %p695, %s38, 1
        %s697 = scalar_lea.vmem %s3, %s696
        %p698 = pneg %p144
        %p699 = pneg %p141
        %p700 = scmp.lt.s32.totalorder %s38, 1
        %s701 = scalar_select %p700, %s38, 1
        %s702 = smul.addr %s701, 4
        %s703 = smul.addr %s702, 4
        %s704 = scalar_lea.vmem %s4, %s703
        %p705 = pneg %p170
        %p706 = pneg %p167
        %p707 = scmp.lt.s32.totalorder %s38, 1
        %s708 = scalar_select %p707, %s38, 1
        %s709 = scalar_lea.vmem %s5, %s708
        %p710 = pneg %p196
        %p711 = pneg %p193
        %p712 = scmp.lt.s32.totalorder %s38, 1
        %s713 = scalar_select %p712, %s38, 1
        %s714 = smul.addr %s713, 4
        %s715 = smul.addr %s714, 4
        %s716 = scalar_lea.vmem %s6, %s715
        %p717 = pneg %p222
        %p718 = pneg %p219
        %p719 = scmp.lt.s32.totalorder %s38, 1
        %s720 = scalar_select %p719, %s38, 1
        %s721 = scalar_lea.vmem %s7, %s720
        %p722 = pneg %p248
        %p723 = pneg %p245
        %p724 = scmp.lt.s32.totalorder %s38, 1
        %s725 = scalar_select %p724, %s38, 1
        %s726 = scalar_lea.vmem %s8, %s725
        %p727 = pneg %p274
        %p728 = pneg %p271
        %p729 = scmp.lt.s32.totalorder %s38, 1
        %s730 = scalar_select %p729, %s38, 1
        %s731 = scalar_lea.vmem %s9, %s730
        %p732 = pneg %p300
        %p733 = pneg %p297
        %p734 = scmp.lt.s32.totalorder %s38, 1
        %s735 = scalar_select %p734, %s38, 1
        %s736 = smul.addr %s735, 4
        %s737 = smul.addr %s736, 4
        %s738 = scalar_lea.vmem %s10, %s737
        %p739 = pneg %p326
        %p740 = pneg %p323
        %p741 = scmp.lt.s32.totalorder %s38, 1
        %s742 = scalar_select %p741, %s38, 1
        %s743 = scalar_lea.vmem %s11, %s742
        %p744 = pneg %p352
        %p745 = pneg %p349
        %p746 = scmp.lt.s32.totalorder %s38, 1
        %s747 = scalar_select %p746, %s38, 1
        %s748 = smul.addr %s747, 16
        %s749 = smul.addr %s748, 4
        %s750 = scalar_lea.vmem %s12, %s749
        %p751 = pneg %p378
        %p752 = pneg %p375
        %p753 = scmp.lt.s32.totalorder %s38, 1
        %s754 = scalar_select %p753, %s38, 1
        %s755 = scalar_lea.vmem %s13, %s754
        %p756 = pneg %p404
        %p757 = pneg %p401
        %p758 = pneg %p425
        %p759 = pneg %p422
        %p760 = pneg %p446
        %p761 = pneg %p443
        %p762 = pneg %p467
        %p763 = pneg %p464
        %p764 = pneg %p488
        %p765 = pneg %p485
        %p766 = pneg %p514
        %p767 = pneg %p511
        %p768 = pneg %p540
        %p769 = pneg %p537
        %s770 = smul.u32 2, %s37
        %p771 = scmp.lt.s32.totalorder %s770, 1
        %s772 = scalar_select %p771, %s770, 1
        %s773 = smul.addr %s772, 4
        %s774 = scalar_lea.vmem %s0, %s773
        %s775 = smul.u32 2, %s37
        %s776 = smul.u32 2, %s37
        %p777 = scmp.lt.s32.totalorder %s776, 1
        %s778 = scalar_select %p777, %s776, 1
        %s779 = smul.addr %s778, 4
        %s780 = scalar_lea.vmem %s1, %s779
        %s781 = smul.u32 2, %s37
        %p782 = scmp.lt.s32.totalorder %s38, 1
        %s783 = scalar_select %p782, %s38, 1
        %s784 = scalar_lea.vmem %s2, %s783
        %p785 = scmp.lt.s32.totalorder %s38, 1
        %s786 = scalar_select %p785, %s38, 1
        %s787 = scalar_lea.vmem %s3, %s786
        %p788 = scmp.lt.s32.totalorder %s38, 1
        %s789 = scalar_select %p788, %s38, 1
        %s790 = smul.addr %s789, 4
        %s791 = smul.addr %s790, 4
        %s792 = scalar_lea.vmem %s4, %s791
        %p793 = scmp.lt.s32.totalorder %s38, 1
        %s794 = scalar_select %p793, %s38, 1
        %s795 = scalar_lea.vmem %s5, %s794
        %p796 = scmp.lt.s32.totalorder %s38, 1
        %s797 = scalar_select %p796, %s38, 1
        %s798 = smul.addr %s797, 4
        %s799 = smul.addr %s798, 4
        %s800 = scalar_lea.vmem %s6, %s799
        %p801 = scmp.lt.s32.totalorder %s38, 1
        %s802 = scalar_select %p801, %s38, 1
        %s803 = scalar_lea.vmem %s7, %s802
        %p804 = scmp.lt.s32.totalorder %s38, 1
        %s805 = scalar_select %p804, %s38, 1
        %s806 = scalar_lea.vmem %s8, %s805
        %p807 = scmp.lt.s32.totalorder %s38, 1
        %s808 = scalar_select %p807, %s38, 1
        %s809 = scalar_lea.vmem %s9, %s808
        %p810 = scmp.lt.s32.totalorder %s38, 1
        %s811 = scalar_select %p810, %s38, 1
        %s812 = smul.addr %s811, 4
        %s813 = smul.addr %s812, 4
        %s814 = scalar_lea.vmem %s10, %s813
        %p815 = scmp.lt.s32.totalorder %s38, 1
        %s816 = scalar_select %p815, %s38, 1
        %s817 = scalar_lea.vmem %s11, %s816
        %p818 = scmp.lt.s32.totalorder %s38, 1
        %s819 = scalar_select %p818, %s38, 1
        %s820 = smul.addr %s819, 16
        %s821 = smul.addr %s820, 4
        %s822 = scalar_lea.vmem %s12, %s821
        %p823 = scmp.lt.s32.totalorder %s38, 1
        %s824 = scalar_select %p823, %s38, 1
        %s825 = scalar_lea.vmem %s13, %s824
        %s826 = smul.u32 2, %s37
        %s827 = smul.u32 2, %s37
        %p829 = scmp.eq.s32.totalorder %s38, 0
        // Predicated region
        $region93: #{fwd.5} parent=91 // pred_check
          %p830 = pneg %p829
        $region94: #{fwd.5} parent=91 // pred_check_branch
          %832 = sbr.rel (%p830) target = $region96
        $region95: #{fwd.5} parent=91 // pred_region
          %v833 = vld [vmem:[%s774] sm:$0xf]
          %v834 = vld [vmem:[%s774 + $0x4] sm:$0xf]
          %vm835 = vcmask 257024
          %836 = vst.msk [vmem:[#allocation2] sm:$0xf] %vm835, %v833
          %837 = vst.msk [vmem:[#allocation2 + $0x8] sm:$0xf] %vm835, %v834
          %v838 = vld [vmem:[%s780] sm:$0xf]
          %v839 = vld [vmem:[%s780 + $0x4] sm:$0xf]
          %840 = vst.msk [vmem:[#allocation2 + $0x4] sm:$0xf] %vm835, %v838
          %841 = vst.msk [vmem:[#allocation2 + $0xc] sm:$0xf] %vm835, %v839
        $region96: #{fwd.5} parent=91 // pred_fallthru
          _
        %v842 = vld [vmem:[#allocation2] sm:$0xff]
        %v843 = vld [vmem:[#allocation2 + $0x8] sm:$0xff]
        %v844 = vld [vmem:[%s784] sm:$0x1]
        %v845 = vld [vmem:[%s787] sm:$0x1]
        %vm846 = vcmask 261120
        %v847 = vsel %vm846, %v842, 0.0
        %848 = vadd.xlane.f32.xlu0 %v847
        %v849 = vpop.xlane.xlu0 %848
        %v850 = vsel %vm846, %v843, 0.0
        %851 = vadd.xlane.f32.xlu0 %v850
        %v852 = vpop.xlane.xlu0 %851
        %v853 = vrcp.pop 32.0
        %v854 = vmul.f32 %v849, %v853
        %v855 = vmul.f32 %v852, %v853
        %v856 = vsub.f32 %v842, %v854
        %v857 = vsub.f32 %v843, %v855
        %v858 = vmul.f32 %v856, %v856
        %v859 = vmul.f32 %v857, %v857
        %v860 = vsel %vm846, %v858, 0.0
        %861 = vadd.xlane.f32.xlu0 %v860
        %v862 = vpop.xlane.xlu0 %861
        %v863 = vsel %vm846, %v859, 0.0
        %864 = vadd.xlane.f32.xlu0 %v863
        %v865 = vpop.xlane.xlu0 %864
        %v866 = vmul.f32 %v862, %v853
        %v867 = vmul.f32 %v865, %v853
        %v868 = vadd.f32 %v866, 1e-06
        %v869 = vadd.f32 %v867, 1e-06
        %v870 = vrsqrt.pop %v868
        %v871 = vrsqrt.pop %v869
        %v872 = vmul.f32 %v856, %v870
        %v873 = vmul.f32 %v857, %v871
        %v875 = vlaneseq
        %v876 = vshrl.u32 %v875, 7
        %v877 = vsub.s32 0, %v876
        %v878 = vrot.slane %v844, %v877
        %v880 = vmul.f32 %v872, %v878
        %v881 = vmul.f32 %v873, %v878
        %v883 = vlaneseq
        %v884 = vshrl.u32 %v883, 7
        %v885 = vsub.s32 0, %v884
        %v886 = vrot.slane %v845, %v885
        %v888 = vadd.f32 %v880, %v886
        %v889 = vadd.f32 %v881, %v886
        %v890 = vpack.c.bf16 %v889, %v888
        %v891 = vld [vmem:[%s792] sm:$0xf]
        %v892 = vld [vmem:[%s792 + $0x4] sm:$0xf]
        %v893 = vld [vmem:[%s792 + $0x8] sm:$0xf]
        %v894 = vld [vmem:[%s792 + $0xc] sm:$0xf]
        %v895 = vld [vmem:[%s795] sm:$0x1]
        %v897 = vlaneseq
        %v898 = vshrl.u32 %v897, 7
        %v899 = vsub.s32 0, %v898
        %v900 = vrot.slane %v895, %v899
        %v906 = vunpack.c.l.b16 %v891
        %v907 = vunpack.c.l.b16 %v892
        %v908 = vunpack.c.l.b16 %v893
        %v909 = vunpack.c.l.b16 %v894
        %v910 = vpack.c.b16 %v907, %v906
        %v911 = vpack.c.b16 %v909, %v908
        %v915 = vsel %vm846, %v890, 0
        %917 = vmatprep.subr.bf16.mxu0 0
        %918 = vmatpush1.bf16.msra.mxu0 %v910
        %919 = vmatprep.subr.bf16.mxu0 0
        %920 = vmatpush1.bf16.msra.mxu0 %v911
        %921 = vmatprep.subr.bf16.mxu0 0
        %922 = vmatpush1.bf16.msra.mxu0 0
        %923 = vmatprep.subr.bf16.mxu0 0
        %924 = vmatpush1.bf16.msra.mxu0 0
        %925 = vmatprep.subr.bf16.mxu0 0
        %926 = vmatpush1.bf16.msra.mxu0 0
        %927 = vmatprep.subr.bf16.mxu0 0
        %928 = vmatpush1.bf16.msra.mxu0 0
        %929 = vmatprep.subr.bf16.mxu0 0
        %930 = vmatpush1.bf16.msra.mxu0 0
        %931 = vmatprep.subr.bf16.mxu0 0
        %932 = vmatpush1.bf16.msra.mxu0 0
        %933 = vmatprep.subr.bf16.mxu0 0
        %934 = vmatpush1.bf16.msra.mxu0 0
        %935 = vmatprep.subr.bf16.mxu0 0
        %936 = vmatpush1.bf16.msra.mxu0 0
        %937 = vmatprep.subr.bf16.mxu0 0
        %938 = vmatpush1.bf16.msra.mxu0 0
        %939 = vmatprep.subr.bf16.mxu0 0
        %940 = vmatpush1.bf16.msra.mxu0 0
        %941 = vmatprep.subr.bf16.mxu0 0
        %942 = vmatpush1.bf16.msra.mxu0 0
        %943 = vmatprep.subr.bf16.mxu0 0
        %944 = vmatpush1.bf16.msra.mxu0 0
        %945 = vmatprep.subr.bf16.mxu0 0
        %946 = vmatpush1.bf16.msra.mxu0 0
        %947 = vmatprep.subr.bf16.mxu0 0
        %948 = vmatpush1.bf16.msra.mxu0 0
        %949 = vmatprep.mubr.bf16.mxu0 0
        %950 = vmatmul.mubr.bf16.gmra.mrb[0].mxu0 %v915
        %v951 = vpop.f32.mrb[0].mxu0
        %v952 = vadd.f32 %v900, %v951
        %v953 = vpop.f32.mrb[0].mxu0
        %v954 = vpop.f32.mrb[0].mxu0
        %v955 = vadd.f32 %v900, %v954
        %v956 = vpop.f32.mrb[0].mxu0
        %957 = vdwg.mxu0
        %vm958 = vcmask 785408
        %959 = vst.msk [vmem:[#allocation3] sm:$0xff] %vm958, %v952
        %960 = vst.msk [vmem:[#allocation3 + $0x8] sm:$0xff] %vm958, %v955
        %v961 = vld [vmem:[#allocation3] sm:$0xff]
        %v962 = vld [vmem:[#allocation3 + $0x8] sm:$0xff]
        %v963 = vpack.c.bf16 %v961, %v961
        %v964 = vpack.c.bf16 %v962, %v962
        %966 = vrot.lane.b32.xlu0 %v963, 96
        %v967 = vpop.permute.xlu0 %966
        %vm968 = vcmask 64512
        %v970 = vsel %vm968, %v963, 0
        %v973 = vsel %vm968, %v967, 0
        %975 = vmatprep.subr.bf16.mxu0 0
        %976 = vmatpush1.bf16.xpose.msra.mxu0 %v973
        %977 = vmatprep.subr.bf16.mxu0 0
        %978 = vmatpush1.bf16.xpose.msra.mxu0 0
        %979 = vmatprep.subr.bf16.mxu0 0
        %980 = vmatpush1.bf16.xpose.msra.mxu0 0
        %981 = vmatprep.subr.bf16.mxu0 0
        %982 = vmatpush1.bf16.xpose.msra.mxu0 0
        %983 = vmatprep.subr.bf16.mxu0 0
        %984 = vmatpush1.bf16.xpose.msra.mxu0 0
        %985 = vmatprep.subr.bf16.mxu0 0
        %986 = vmatpush1.bf16.xpose.msra.mxu0 0
        %987 = vmatprep.subr.bf16.mxu0 0
        %988 = vmatpush1.bf16.xpose.msra.mxu0 0
        %989 = vmatprep.subr.bf16.mxu0 0
        %990 = vmatpush1.bf16.xpose.msra.mxu0 0
        %991 = vmatprep.subr.bf16.mxu0 0
        %992 = vmatpush1.bf16.xpose.msra.mxu0 0
        %993 = vmatprep.subr.bf16.mxu0 0
        %994 = vmatpush1.bf16.xpose.msra.mxu0 0
        %995 = vmatprep.subr.bf16.mxu0 0
        %996 = vmatpush1.bf16.xpose.msra.mxu0 0
        %997 = vmatprep.subr.bf16.mxu0 0
        %998 = vmatpush1.bf16.xpose.msra.mxu0 0
        %999 = vmatprep.subr.bf16.mxu0 0
        %1000 = vmatpush1.bf16.xpose.msra.mxu0 0
        %1001 = vmatprep.subr.bf16.mxu0 0
        %1002 = vmatpush1.bf16.xpose.msra.mxu0 0
        %1003 = vmatprep.subr.bf16.mxu0 0
        %1004 = vmatpush1.bf16.xpose.msra.mxu0 0
        %1005 = vmatprep.subr.bf16.mxu0 0
        %1006 = vmatpush1.bf16.xpose.msra.mxu0 0
        %1007 = vmatprep.mubr.bf16.mxu0 0
        %1008 = vmatmul.mubr.bf16.gmra.mrb[0].mxu0 %v970
        %v1009 = vpop.f32.mrb[0].mxu0
        %v1010 = vadd.f32 0.0, %v1009
        %v1011 = vpop.f32.mrb[0].mxu0
        %v1012 = vpop.f32.mrb[0].mxu0
        %v1013 = vpop.f32.mrb[0].mxu0
        %1014 = vdwg.mxu0
        %1016 = vrot.lane.b32.xlu0 %v964, 96
        %v1017 = vpop.permute.xlu0 %1016
        %v1019 = vsel %vm968, %v964, 0
        %v1022 = vsel %vm968, %v1017, 0
        %1024 = vmatprep.subr.bf16.mxu0 0
        %1025 = vmatpush1.bf16.xpose.msra.mxu0 %v1022
        %1026 = vmatprep.subr.bf16.mxu0 0
        %1027 = vmatpush1.bf16.xpose.msra.mxu0 0
        %1028 = vmatprep.subr.bf16.mxu0 0
        %1029 = vmatpush1.bf16.xpose.msra.mxu0 0
        %1030 = vmatprep.subr.bf16.mxu0 0
        %1031 = vmatpush1.bf16.xpose.msra.mxu0 0
        %1032 = vmatprep.subr.bf16.mxu0 0
        %1033 = vmatpush1.bf16.xpose.msra.mxu0 0
        %1034 = vmatprep.subr.bf16.mxu0 0
        %1035 = vmatpush1.bf16.xpose.msra.mxu0 0
        %1036 = vmatprep.subr.bf16.mxu0 0
        %1037 = vmatpush1.bf16.xpose.msra.mxu0 0
        %1038 = vmatprep.subr.bf16.mxu0 0
        %1039 = vmatpush1.bf16.xpose.msra.mxu0 0
        %1040 = vmatprep.subr.bf16.mxu0 0
        %1041 = vmatpush1.bf16.xpose.msra.mxu0 0
        %1042 = vmatprep.subr.bf16.mxu0 0
        %1043 = vmatpush1.bf16.xpose.msra.mxu0 0
        %1044 = vmatprep.subr.bf16.mxu0 0
        %1045 = vmatpush1.bf16.xpose.msra.mxu0 0
        %1046 = vmatprep.subr.bf16.mxu0 0
        %1047 = vmatpush1.bf16.xpose.msra.mxu0 0
        %1048 = vmatprep.subr.bf16.mxu0 0
        %1049 = vmatpush1.bf16.xpose.msra.mxu0 0
        %1050 = vmatprep.subr.bf16.mxu0 0
        %1051 = vmatpush1.bf16.xpose.msra.mxu0 0
        %1052 = vmatprep.subr.bf16.mxu0 0
        %1053 = vmatpush1.bf16.xpose.msra.mxu0 0
        %1054 = vmatprep.subr.bf16.mxu0 0
        %1055 = vmatpush1.bf16.xpose.msra.mxu0 0
        %1056 = vmatprep.mubr.bf16.mxu0 0
        %1057 = vmatmul.mubr.bf16.gmra.mrb[0].mxu0 %v1019
        %v1058 = vpop.f32.mrb[0].mxu0
        %v1059 = vadd.f32 0.0, %v1058
        %v1060 = vpop.f32.mrb[0].mxu0
        %v1061 = vpop.f32.mrb[0].mxu0
        %v1062 = vpop.f32.mrb[0].mxu0
        %1063 = vdwg.mxu0
        %v1064 = vmul.f32 %v1010, 0.35355338
        %v1065 = vmul.f32 %v1059, 0.35355338
        %v1066 = vsel %vm968, %v1064, -inf
        %1067 = vmax.xlane.f32.xlu0 %v1066
        %v1068 = vpop.xlane.xlu0 %1067
        %v1069 = vsel %vm968, %v1065, -inf
        %1070 = vmax.xlane.f32.xlu0 %v1069
        %v1071 = vpop.xlane.xlu0 %1070
        %v1072 = vsub.f32 %v1064, %v1068
        %v1073 = vsub.f32 %v1065, %v1071
        %v1074 = vmul.f32 %v1072, 1.442695
        %v1075 = vpow.pop %v1074
        %v1076 = vmul.f32 %v1073, 1.442695
        %v1077 = vpow.pop %v1076
        %v1078 = vsel %vm968, %v1075, 0.0
        %1079 = vadd.xlane.f32.xlu0 %v1078
        %v1080 = vpop.xlane.xlu0 %1079
        %v1081 = vsel %vm968, %v1077, 0.0
        %1082 = vadd.xlane.f32.xlu0 %v1081
        %v1083 = vpop.xlane.xlu0 %1082
        %v1084 = vrcp.pop %v1080
        %v1085 = vrcp.pop %v1083
        %v1086 = vmul.f32 %v1075, %v1084
        %v1087 = vmul.f32 %v1077, %v1085
        %v1088 = vpack.c.bf16 %v1086, %v1086
        %v1089 = vpack.c.bf16 %v1087, %v1087
        %1090 = vrot.lane.b32.xlu0 %v963, 64
        %v1091 = vpop.permute.xlu0 %1090
        %v1093 = vsel %vm968, %v1088, 0
        %vm1095 = vcmask 1043456
        %v1097 = vsel %vm1095, %v1091, 0
        %1099 = vmatprep.subr.bf16.mxu0 0
        %1100 = vmatpush1.bf16.msra.mxu0 %v1097
        %1101 = vmatprep.subr.bf16.mxu0 0
        %1102 = vmatpush1.bf16.msra.mxu0 0
        %1103 = vmatprep.subr.bf16.mxu0 0
        %1104 = vmatpush1.bf16.msra.mxu0 0
        %1105 = vmatprep.subr.bf16.mxu0 0
        %1106 = vmatpush1.bf16.msra.mxu0 0
        %1107 = vmatprep.subr.bf16.mxu0 0
        %1108 = vmatpush1.bf16.msra.mxu0 0
        %1109 = vmatprep.subr.bf16.mxu0 0
        %1110 = vmatpush1.bf16.msra.mxu0 0
        %1111 = vmatprep.subr.bf16.mxu0 0
        %1112 = vmatpush1.bf16.msra.mxu0 0
        %1113 = vmatprep.subr.bf16.mxu0 0
        %1114 = vmatpush1.bf16.msra.mxu0 0
        %1115 = vmatprep.subr.bf16.mxu0 0
        %1116 = vmatpush1.bf16.msra.mxu0 0
        %1117 = vmatprep.subr.bf16.mxu0 0
        %1118 = vmatpush1.bf16.msra.mxu0 0
        %1119 = vmatprep.subr.bf16.mxu0 0
        %1120 = vmatpush1.bf16.msra.mxu0 0
        %1121 = vmatprep.subr.bf16.mxu0 0
        %1122 = vmatpush1.bf16.msra.mxu0 0
        %1123 = vmatprep.subr.bf16.mxu0 0
        %1124 = vmatpush1.bf16.msra.mxu0 0
        %1125 = vmatprep.subr.bf16.mxu0 0
        %1126 = vmatpush1.bf16.msra.mxu0 0
        %1127 = vmatprep.subr.bf16.mxu0 0
        %1128 = vmatpush1.bf16.msra.mxu0 0
        %1129 = vmatprep.subr.bf16.mxu0 0
        %1130 = vmatpush1.bf16.msra.mxu0 0
        %1131 = vmatprep.mubr.bf16.mxu0 0
        %1132 = vmatmul.mubr.bf16.gmra.mrb[0].mxu0 %v1093
        %v1133 = vpop.f32.mrb[0].mxu0
        %v1134 = vadd.f32 0.0, %v1133
        %v1135 = vpop.f32.mrb[0].mxu0
        %v1136 = vpop.f32.mrb[0].mxu0
        %v1137 = vpop.f32.mrb[0].mxu0
        %1138 = vdwg.mxu0
        %1139 = vrot.lane.b32.xlu0 %v964, 64
        %v1140 = vpop.permute.xlu0 %1139
        %v1142 = vsel %vm968, %v1089, 0
        %v1145 = vsel %vm1095, %v1140, 0
        %1147 = vmatprep.subr.bf16.mxu0 0
        %1148 = vmatpush1.bf16.msra.mxu0 %v1145
        %1149 = vmatprep.subr.bf16.mxu0 0
        %1150 = vmatpush1.bf16.msra.mxu0 0
        %1151 = vmatprep.subr.bf16.mxu0 0
        %1152 = vmatpush1.bf16.msra.mxu0 0
        %1153 = vmatprep.subr.bf16.mxu0 0
        %1154 = vmatpush1.bf16.msra.mxu0 0
        %1155 = vmatprep.subr.bf16.mxu0 0
        %1156 = vmatpush1.bf16.msra.mxu0 0
        %1157 = vmatprep.subr.bf16.mxu0 0
        %1158 = vmatpush1.bf16.msra.mxu0 0
        %1159 = vmatprep.subr.bf16.mxu0 0
        %1160 = vmatpush1.bf16.msra.mxu0 0
        %1161 = vmatprep.subr.bf16.mxu0 0
        %1162 = vmatpush1.bf16.msra.mxu0 0
        %1163 = vmatprep.subr.bf16.mxu0 0
        %1164 = vmatpush1.bf16.msra.mxu0 0
        %1165 = vmatprep.subr.bf16.mxu0 0
        %1166 = vmatpush1.bf16.msra.mxu0 0
        %1167 = vmatprep.subr.bf16.mxu0 0
        %1168 = vmatpush1.bf16.msra.mxu0 0
        %1169 = vmatprep.subr.bf16.mxu0 0
        %1170 = vmatpush1.bf16.msra.mxu0 0
        %1171 = vmatprep.subr.bf16.mxu0 0
        %1172 = vmatpush1.bf16.msra.mxu0 0
        %1173 = vmatprep.subr.bf16.mxu0 0
        %1174 = vmatpush1.bf16.msra.mxu0 0
        %1175 = vmatprep.subr.bf16.mxu0 0
        %1176 = vmatpush1.bf16.msra.mxu0 0
        %1177 = vmatprep.subr.bf16.mxu0 0
        %1178 = vmatpush1.bf16.msra.mxu0 0
        %1179 = vmatprep.mubr.bf16.mxu0 0
        %1180 = vmatmul.mubr.bf16.gmra.mrb[0].mxu0 %v1142
        %v1181 = vpop.f32.mrb[0].mxu0
        %v1182 = vadd.f32 0.0, %v1181
        %v1183 = vpop.f32.mrb[0].mxu0
        %v1184 = vpop.f32.mrb[0].mxu0
        %v1185 = vpop.f32.mrb[0].mxu0
        %1186 = vdwg.mxu0
        %1187 = vst.msk [vmem:[#allocation4] sm:$0xff] %vm968, %v1134
        %1188 = vst.msk [vmem:[#allocation4 + $0x8] sm:$0xff] %vm968, %v1182
        %v1189 = vld [vmem:[#allocation3] sm:$0xff]
        %v1190 = vld [vmem:[#allocation3 + $0x8] sm:$0xff]
        %v1191 = vpack.c.bf16 %v1189, %v1189
        %v1192 = vpack.c.bf16 %v1190, %v1190
        %1194 = vrot.lane.b32.xlu0 %v1191, 120
        %v1195 = vpop.permute.xlu0 %1194
        %1196 = vrot.lane.b32.xlu0 %v1191, 88
        %v1197 = vpop.permute.xlu0 %1196
        %v1199 = vsel %vm968, %v1195, 0
        %v1202 = vsel %vm968, %v1197, 0
        %1204 = vmatprep.subr.bf16.mxu0 0
        %1205 = vmatpush1.bf16.xpose.msra.mxu0 %v1202
        %1206 = vmatprep.subr.bf16.mxu0 0
        %1207 = vmatpush1.bf16.xpose.msra.mxu0 0
        %1208 = vmatprep.subr.bf16.mxu0 0
        %1209 = vmatpush1.bf16.xpose.msra.mxu0 0
        %1210 = vmatprep.subr.bf16.mxu0 0
        %1211 = vmatpush1.bf16.xpose.msra.mxu0 0
        %1212 = vmatprep.subr.bf16.mxu0 0
        %1213 = vmatpush1.bf16.xpose.msra.mxu0 0
        %1214 = vmatprep.subr.bf16.mxu0 0
        %1215 = vmatpush1.bf16.xpose.msra.mxu0 0
        %1216 = vmatprep.subr.bf16.mxu0 0
        %1217 = vmatpush1.bf16.xpose.msra.mxu0 0
        %1218 = vmatprep.subr.bf16.mxu0 0
        %1219 = vmatpush1.bf16.xpose.msra.mxu0 0
        %1220 = vmatprep.subr.bf16.mxu0 0
        %1221 = vmatpush1.bf16.xpose.msra.mxu0 0
        %1222 = vmatprep.subr.bf16.mxu0 0
        %1223 = vmatpush1.bf16.xpose.msra.mxu0 0
        %1224 = vmatprep.subr.bf16.mxu0 0
        %1225 = vmatpush1.bf16.xpose.msra.mxu0 0
        %1226 = vmatprep.subr.bf16.mxu0 0
        %1227 = vmatpush1.bf16.xpose.msra.mxu0 0
        %1228 = vmatprep.subr.bf16.mxu0 0
        %1229 = vmatpush1.bf16.xpose.msra.mxu0 0
        %1230 = vmatprep.subr.bf16.mxu0 0
        %1231 = vmatpush1.bf16.xpose.msra.mxu0 0
        %1232 = vmatprep.subr.bf16.mxu0 0
        %1233 = vmatpush1.bf16.xpose.msra.mxu0 0
        %1234 = vmatprep.subr.bf16.mxu0 0
        %1235 = vmatpush1.bf16.xpose.msra.mxu0 0
        %1236 = vmatprep.mubr.bf16.mxu0 0
        %1237 = vmatmul.mubr.bf16.gmra.mrb[0].mxu0 %v1199
        %v1238 = vpop.f32.mrb[0].mxu0
        %v1239 = vadd.f32 0.0, %v1238
        %v1240 = vpop.f32.mrb[0].mxu0
        %v1241 = vpop.f32.mrb[0].mxu0
        %v1242 = vpop.f32.mrb[0].mxu0
        %1243 = vdwg.mxu0
        %1245 = vrot.lane.b32.xlu0 %v1192, 120
        %v1246 = vpop.permute.xlu0 %1245
        %1247 = vrot.lane.b32.xlu0 %v1192, 88
        %v1248 = vpop.permute.xlu0 %1247
        %v1250 = vsel %vm968, %v1246, 0
        %v1253 = vsel %vm968, %v1248, 0
        %1255 = vmatprep.subr.bf16.mxu0 0
        %1256 = vmatpush1.bf16.xpose.msra.mxu0 %v1253
        %1257 = vmatprep.subr.bf16.mxu0 0
        %1258 = vmatpush1.bf16.xpose.msra.mxu0 0
        %1259 = vmatprep.subr.bf16.mxu0 0
        %1260 = vmatpush1.bf16.xpose.msra.mxu0 0
        %1261 = vmatprep.subr.bf16.mxu0 0
        %1262 = vmatpush1.bf16.xpose.msra.mxu0 0
        %1263 = vmatprep.subr.bf16.mxu0 0
        %1264 = vmatpush1.bf16.xpose.msra.mxu0 0
        %1265 = vmatprep.subr.bf16.mxu0 0
        %1266 = vmatpush1.bf16.xpose.msra.mxu0 0
        %1267 = vmatprep.subr.bf16.mxu0 0
        %1268 = vmatpush1.bf16.xpose.msra.mxu0 0
        %1269 = vmatprep.subr.bf16.mxu0 0
        %1270 = vmatpush1.bf16.xpose.msra.mxu0 0
        %1271 = vmatprep.subr.bf16.mxu0 0
        %1272 = vmatpush1.bf16.xpose.msra.mxu0 0
        %1273 = vmatprep.subr.bf16.mxu0 0
        %1274 = vmatpush1.bf16.xpose.msra.mxu0 0
        %1275 = vmatprep.subr.bf16.mxu0 0
        %1276 = vmatpush1.bf16.xpose.msra.mxu0 0
        %1277 = vmatprep.subr.bf16.mxu0 0
        %1278 = vmatpush1.bf16.xpose.msra.mxu0 0
        %1279 = vmatprep.subr.bf16.mxu0 0
        %1280 = vmatpush1.bf16.xpose.msra.mxu0 0
        %1281 = vmatprep.subr.bf16.mxu0 0
        %1282 = vmatpush1.bf16.xpose.msra.mxu0 0
        %1283 = vmatprep.subr.bf16.mxu0 0
        %1284 = vmatpush1.bf16.xpose.msra.mxu0 0
        %1285 = vmatprep.subr.bf16.mxu0 0
        %1286 = vmatpush1.bf16.xpose.msra.mxu0 0
        %1287 = vmatprep.mubr.bf16.mxu0 0
        %1288 = vmatmul.mubr.bf16.gmra.mrb[0].mxu0 %v1250
        %v1289 = vpop.f32.mrb[0].mxu0
        %v1290 = vadd.f32 0.0, %v1289
        %v1291 = vpop.f32.mrb[0].mxu0
        %v1292 = vpop.f32.mrb[0].mxu0
        %v1293 = vpop.f32.mrb[0].mxu0
        %1294 = vdwg.mxu0
        %v1295 = vmul.f32 %v1239, 0.35355338
        %v1296 = vmul.f32 %v1290, 0.35355338
        %v1297 = vsel %vm968, %v1295, -inf
        %1298 = vmax.xlane.f32.xlu0 %v1297
        %v1299 = vpop.xlane.xlu0 %1298
        %v1300 = vsel %vm968, %v1296, -inf
        %1301 = vmax.xlane.f32.xlu0 %v1300
        %v1302 = vpop.xlane.xlu0 %1301
        %v1303 = vsub.f32 %v1295, %v1299
        %v1304 = vsub.f32 %v1296, %v1302
        %v1305 = vmul.f32 %v1303, 1.442695
        %v1306 = vpow.pop %v1305
        %v1307 = vmul.f32 %v1304, 1.442695
        %v1308 = vpow.pop %v1307
        %v1309 = vsel %vm968, %v1306, 0.0
        %1310 = vadd.xlane.f32.xlu0 %v1309
        %v1311 = vpop.xlane.xlu0 %1310
        %v1312 = vsel %vm968, %v1308, 0.0
        %1313 = vadd.xlane.f32.xlu0 %v1312
        %v1314 = vpop.xlane.xlu0 %1313
        %v1315 = vrcp.pop %v1311
        %v1316 = vrcp.pop %v1314
        %v1317 = vmul.f32 %v1306, %v1315
        %v1318 = vmul.f32 %v1308, %v1316
        %v1319 = vpack.c.bf16 %v1317, %v1317
        %v1320 = vpack.c.bf16 %v1318, %v1318
        %1321 = vrot.lane.b32.xlu0 %v1191, 56
        %v1322 = vpop.permute.xlu0 %1321
        %v1324 = vsel %vm968, %v1319, 0
        %v1327 = vsel %vm1095, %v1322, 0
        %1329 = vmatprep.subr.bf16.mxu0 0
        %1330 = vmatpush1.bf16.msra.mxu0 %v1327
        %1331 = vmatprep.subr.bf16.mxu0 0
        %1332 = vmatpush1.bf16.msra.mxu0 0
        %1333 = vmatprep.subr.bf16.mxu0 0
        %1334 = vmatpush1.bf16.msra.mxu0 0
        %1335 = vmatprep.subr.bf16.mxu0 0
        %1336 = vmatpush1.bf16.msra.mxu0 0
        %1337 = vmatprep.subr.bf16.mxu0 0
        %1338 = vmatpush1.bf16.msra.mxu0 0
        %1339 = vmatprep.subr.bf16.mxu0 0
        %1340 = vmatpush1.bf16.msra.mxu0 0
        %1341 = vmatprep.subr.bf16.mxu0 0
        %1342 = vmatpush1.bf16.msra.mxu0 0
        %1343 = vmatprep.subr.bf16.mxu0 0
        %1344 = vmatpush1.bf16.msra.mxu0 0
        %1345 = vmatprep.subr.bf16.mxu0 0
        %1346 = vmatpush1.bf16.msra.mxu0 0
        %1347 = vmatprep.subr.bf16.mxu0 0
        %1348 = vmatpush1.bf16.msra.mxu0 0
        %1349 = vmatprep.subr.bf16.mxu0 0
        %1350 = vmatpush1.bf16.msra.mxu0 0
        %1351 = vmatprep.subr.bf16.mxu0 0
        %1352 = vmatpush1.bf16.msra.mxu0 0
        %1353 = vmatprep.subr.bf16.mxu0 0
        %1354 = vmatpush1.bf16.msra.mxu0 0
        %1355 = vmatprep.subr.bf16.mxu0 0
        %1356 = vmatpush1.bf16.msra.mxu0 0
        %1357 = vmatprep.subr.bf16.mxu0 0
        %1358 = vmatpush1.bf16.msra.mxu0 0
        %1359 = vmatprep.subr.bf16.mxu0 0
        %1360 = vmatpush1.bf16.msra.mxu0 0
        %1361 = vmatprep.mubr.bf16.mxu0 0
        %1362 = vmatmul.mubr.bf16.gmra.mrb[0].mxu0 %v1324
        %v1363 = vpop.f32.mrb[0].mxu0
        %v1364 = vadd.f32 0.0, %v1363
        %v1365 = vpop.f32.mrb[0].mxu0
        %v1366 = vpop.f32.mrb[0].mxu0
        %v1367 = vpop.f32.mrb[0].mxu0
        %1368 = vdwg.mxu0
        %1369 = vrot.lane.b32.xlu0 %v1192, 56
        %v1370 = vpop.permute.xlu0 %1369
        %v1372 = vsel %vm968, %v1320, 0
        %v1375 = vsel %vm1095, %v1370, 0
        %1377 = vmatprep.subr.bf16.mxu0 0
        %1378 = vmatpush1.bf16.msra.mxu0 %v1375
        %1379 = vmatprep.subr.bf16.mxu0 0
        %1380 = vmatpush1.bf16.msra.mxu0 0
        %1381 = vmatprep.subr.bf16.mxu0 0
        %1382 = vmatpush1.bf16.msra.mxu0 0
        %1383 = vmatprep.subr.bf16.mxu0 0
        %1384 = vmatpush1.bf16.msra.mxu0 0
        %1385 = vmatprep.subr.bf16.mxu0 0
        %1386 = vmatpush1.bf16.msra.mxu0 0
        %1387 = vmatprep.subr.bf16.mxu0 0
        %1388 = vmatpush1.bf16.msra.mxu0 0
        %1389 = vmatprep.subr.bf16.mxu0 0
        %1390 = vmatpush1.bf16.msra.mxu0 0
        %1391 = vmatprep.subr.bf16.mxu0 0
        %1392 = vmatpush1.bf16.msra.mxu0 0
        %1393 = vmatprep.subr.bf16.mxu0 0
        %1394 = vmatpush1.bf16.msra.mxu0 0
        %1395 = vmatprep.subr.bf16.mxu0 0
        %1396 = vmatpush1.bf16.msra.mxu0 0
        %1397 = vmatprep.subr.bf16.mxu0 0
        %1398 = vmatpush1.bf16.msra.mxu0 0
        %1399 = vmatprep.subr.bf16.mxu0 0
        %1400 = vmatpush1.bf16.msra.mxu0 0
        %1401 = vmatprep.subr.bf16.mxu0 0
        %1402 = vmatpush1.bf16.msra.mxu0 0
        %1403 = vmatprep.subr.bf16.mxu0 0
        %1404 = vmatpush1.bf16.msra.mxu0 0
        %1405 = vmatprep.subr.bf16.mxu0 0
        %1406 = vmatpush1.bf16.msra.mxu0 0
        %1407 = vmatprep.subr.bf16.mxu0 0
        %1408 = vmatpush1.bf16.msra.mxu0 0
        %1409 = vmatprep.mubr.bf16.mxu0 0
        %1410 = vmatmul.mubr.bf16.gmra.mrb[0].mxu0 %v1372
        %v1411 = vpop.f32.mrb[0].mxu0
        %v1412 = vadd.f32 0.0, %v1411
        %v1413 = vpop.f32.mrb[0].mxu0
        %v1414 = vpop.f32.mrb[0].mxu0
        %v1415 = vpop.f32.mrb[0].mxu0
        %1416 = vdwg.mxu0
        %1419 = vrot.lane.b32.xlu0 %v1364, 8
        %v1420 = vpop.permute.xlu0 %1419
        %1421 = vrot.lane.b32.xlu0 %v1412, 8
        %v1422 = vpop.permute.xlu0 %1421
        %vm1425 = vcmask 130112
        %1426 = vst.msk [vmem:[#allocation4] sm:$0xff] %vm1425, %v1420
        %1427 = vst.msk [vmem:[#allocation4 + $0x8] sm:$0xff] %vm1425, %v1422
        %v1428 = vld [vmem:[#allocation3] sm:$0xff]
        %v1429 = vld [vmem:[#allocation3 + $0x8] sm:$0xff]
        %v1430 = vpack.c.bf16 %v1428, %v1428
        %v1431 = vpack.c.bf16 %v1429, %v1429
        %1433 = vrot.lane.b32.xlu0 %v1430, 112
        %v1434 = vpop.permute.xlu0 %1433
        %1435 = vrot.lane.b32.xlu0 %v1430, 80
        %v1436 = vpop.permute.xlu0 %1435
        %v1438 = vsel %vm968, %v1434, 0
        %v1441 = vsel %vm968, %v1436, 0
        %1443 = vmatprep.subr.bf16.mxu0 0
        %1444 = vmatpush1.bf16.xpose.msra.mxu0 %v1441
        %1445 = vmatprep.subr.bf16.mxu0 0
        %1446 = vmatpush1.bf16.xpose.msra.mxu0 0
        %1447 = vmatprep.subr.bf16.mxu0 0
        %1448 = vmatpush1.bf16.xpose.msra.mxu0 0
        %1449 = vmatprep.subr.bf16.mxu0 0
        %1450 = vmatpush1.bf16.xpose.msra.mxu0 0
        %1451 = vmatprep.subr.bf16.mxu0 0
        %1452 = vmatpush1.bf16.xpose.msra.mxu0 0
        %1453 = vmatprep.subr.bf16.mxu0 0
        %1454 = vmatpush1.bf16.xpose.msra.mxu0 0
        %1455 = vmatprep.subr.bf16.mxu0 0
        %1456 = vmatpush1.bf16.xpose.msra.mxu0 0
        %1457 = vmatprep.subr.bf16.mxu0 0
        %1458 = vmatpush1.bf16.xpose.msra.mxu0 0
        %1459 = vmatprep.subr.bf16.mxu0 0
        %1460 = vmatpush1.bf16.xpose.msra.mxu0 0
        %1461 = vmatprep.subr.bf16.mxu0 0
        %1462 = vmatpush1.bf16.xpose.msra.mxu0 0
        %1463 = vmatprep.subr.bf16.mxu0 0
        %1464 = vmatpush1.bf16.xpose.msra.mxu0 0
        %1465 = vmatprep.subr.bf16.mxu0 0
        %1466 = vmatpush1.bf16.xpose.msra.mxu0 0
        %1467 = vmatprep.subr.bf16.mxu0 0
        %1468 = vmatpush1.bf16.xpose.msra.mxu0 0
        %1469 = vmatprep.subr.bf16.mxu0 0
        %1470 = vmatpush1.bf16.xpose.msra.mxu0 0
        %1471 = vmatprep.subr.bf16.mxu0 0
        %1472 = vmatpush1.bf16.xpose.msra.mxu0 0
        %1473 = vmatprep.subr.bf16.mxu0 0
        %1474 = vmatpush1.bf16.xpose.msra.mxu0 0
        %1475 = vmatprep.mubr.bf16.mxu0 0
        %1476 = vmatmul.mubr.bf16.gmra.mrb[0].mxu0 %v1438
        %v1477 = vpop.f32.mrb[0].mxu0
        %v1478 = vadd.f32 0.0, %v1477
        %v1479 = vpop.f32.mrb[0].mxu0
        %v1480 = vpop.f32.mrb[0].mxu0
        %v1481 = vpop.f32.mrb[0].mxu0
        %1482 = vdwg.mxu0
        %1484 = vrot.lane.b32.xlu0 %v1431, 112
        %v1485 = vpop.permute.xlu0 %1484
        %1486 = vrot.lane.b32.xlu0 %v1431, 80
        %v1487 = vpop.permute.xlu0 %1486
        %v1489 = vsel %vm968, %v1485, 0
        %v1492 = vsel %vm968, %v1487, 0
        %1494 = vmatprep.subr.bf16.mxu0 0
        %1495 = vmatpush1.bf16.xpose.msra.mxu0 %v1492
        %1496 = vmatprep.subr.bf16.mxu0 0
        %1497 = vmatpush1.bf16.xpose.msra.mxu0 0
        %1498 = vmatprep.subr.bf16.mxu0 0
        %1499 = vmatpush1.bf16.xpose.msra.mxu0 0
        %1500 = vmatprep.subr.bf16.mxu0 0
        %1501 = vmatpush1.bf16.xpose.msra.mxu0 0
        %1502 = vmatprep.subr.bf16.mxu0 0
        %1503 = vmatpush1.bf16.xpose.msra.mxu0 0
        %1504 = vmatprep.subr.bf16.mxu0 0
        %1505 = vmatpush1.bf16.xpose.msra.mxu0 0
        %1506 = vmatprep.subr.bf16.mxu0 0
        %1507 = vmatpush1.bf16.xpose.msra.mxu0 0
        %1508 = vmatprep.subr.bf16.mxu0 0
        %1509 = vmatpush1.bf16.xpose.msra.mxu0 0
        %1510 = vmatprep.subr.bf16.mxu0 0
        %1511 = vmatpush1.bf16.xpose.msra.mxu0 0
        %1512 = vmatprep.subr.bf16.mxu0 0
        %1513 = vmatpush1.bf16.xpose.msra.mxu0 0
        %1514 = vmatprep.subr.bf16.mxu0 0
        %1515 = vmatpush1.bf16.xpose.msra.mxu0 0
        %1516 = vmatprep.subr.bf16.mxu0 0
        %1517 = vmatpush1.bf16.xpose.msra.mxu0 0
        %1518 = vmatprep.subr.bf16.mxu0 0
        %1519 = vmatpush1.bf16.xpose.msra.mxu0 0
        %1520 = vmatprep.subr.bf16.mxu0 0
        %1521 = vmatpush1.bf16.xpose.msra.mxu0 0
        %1522 = vmatprep.subr.bf16.mxu0 0
        %1523 = vmatpush1.bf16.xpose.msra.mxu0 0
        %1524 = vmatprep.subr.bf16.mxu0 0
        %1525 = vmatpush1.bf16.xpose.msra.mxu0 0
        %1526 = vmatprep.mubr.bf16.mxu0 0
        %1527 = vmatmul.mubr.bf16.gmra.mrb[0].mxu0 %v1489
        %v1528 = vpop.f32.mrb[0].mxu0
        %v1529 = vadd.f32 0.0, %v1528
        %v1530 = vpop.f32.mrb[0].mxu0
        %v1531 = vpop.f32.mrb[0].mxu0
        %v1532 = vpop.f32.mrb[0].mxu0
        %1533 = vdwg.mxu0
        %v1534 = vmul.f32 %v1478, 0.35355338
        %v1535 = vmul.f32 %v1529, 0.35355338
        %v1536 = vsel %vm968, %v1534, -inf
        %1537 = vmax.xlane.f32.xlu0 %v1536
        %v1538 = vpop.xlane.xlu0 %1537
        %v1539 = vsel %vm968, %v1535, -inf
        %1540 = vmax.xlane.f32.xlu0 %v1539
        %v1541 = vpop.xlane.xlu0 %1540
        %v1542 = vsub.f32 %v1534, %v1538
        %v1543 = vsub.f32 %v1535, %v1541
        %v1544 = vmul.f32 %v1542, 1.442695
        %v1545 = vpow.pop %v1544
        %v1546 = vmul.f32 %v1543, 1.442695
        %v1547 = vpow.pop %v1546
        %v1548 = vsel %vm968, %v1545, 0.0
        %1549 = vadd.xlane.f32.xlu0 %v1548
        %v1550 = vpop.xlane.xlu0 %1549
        %v1551 = vsel %vm968, %v1547, 0.0
        %1552 = vadd.xlane.f32.xlu0 %v1551
        %v1553 = vpop.xlane.xlu0 %1552
        %v1554 = vrcp.pop %v1550
        %v1555 = vrcp.pop %v1553
        %v1556 = vmul.f32 %v1545, %v1554
        %v1557 = vmul.f32 %v1547, %v1555
        %v1558 = vpack.c.bf16 %v1556, %v1556
        %v1559 = vpack.c.bf16 %v1557, %v1557
        %1560 = vrot.lane.b32.xlu0 %v1430, 48
        %v1561 = vpop.permute.xlu0 %1560
        %v1563 = vsel %vm968, %v1558, 0
        %v1566 = vsel %vm1095, %v1561, 0
        %1568 = vmatprep.subr.bf16.mxu0 0
        %1569 = vmatpush1.bf16.msra.mxu0 %v1566
        %1570 = vmatprep.subr.bf16.mxu0 0
        %1571 = vmatpush1.bf16.msra.mxu0 0
        %1572 = vmatprep.subr.bf16.mxu0 0
        %1573 = vmatpush1.bf16.msra.mxu0 0
        %1574 = vmatprep.subr.bf16.mxu0 0
        %1575 = vmatpush1.bf16.msra.mxu0 0
        %1576 = vmatprep.subr.bf16.mxu0 0
        %1577 = vmatpush1.bf16.msra.mxu0 0
        %1578 = vmatprep.subr.bf16.mxu0 0
        %1579 = vmatpush1.bf16.msra.mxu0 0
        %1580 = vmatprep.subr.bf16.mxu0 0
        %1581 = vmatpush1.bf16.msra.mxu0 0
        %1582 = vmatprep.subr.bf16.mxu0 0
        %1583 = vmatpush1.bf16.msra.mxu0 0
        %1584 = vmatprep.subr.bf16.mxu0 0
        %1585 = vmatpush1.bf16.msra.mxu0 0
        %1586 = vmatprep.subr.bf16.mxu0 0
        %1587 = vmatpush1.bf16.msra.mxu0 0
        %1588 = vmatprep.subr.bf16.mxu0 0
        %1589 = vmatpush1.bf16.msra.mxu0 0
        %1590 = vmatprep.subr.bf16.mxu0 0
        %1591 = vmatpush1.bf16.msra.mxu0 0
        %1592 = vmatprep.subr.bf16.mxu0 0
        %1593 = vmatpush1.bf16.msra.mxu0 0
        %1594 = vmatprep.subr.bf16.mxu0 0
        %1595 = vmatpush1.bf16.msra.mxu0 0
        %1596 = vmatprep.subr.bf16.mxu0 0
        %1597 = vmatpush1.bf16.msra.mxu0 0
        %1598 = vmatprep.subr.bf16.mxu0 0
        %1599 = vmatpush1.bf16.msra.mxu0 0
        %1600 = vmatprep.mubr.bf16.mxu0 0
        %1601 = vmatmul.mubr.bf16.gmra.mrb[0].mxu0 %v1563
        %v1602 = vpop.f32.mrb[0].mxu0
        %v1603 = vadd.f32 0.0, %v1602
        %v1604 = vpop.f32.mrb[0].mxu0
        %v1605 = vpop.f32.mrb[0].mxu0
        %v1606 = vpop.f32.mrb[0].mxu0
        %1607 = vdwg.mxu0
        %1608 = vrot.lane.b32.xlu0 %v1431, 48
        %v1609 = vpop.permute.xlu0 %1608
        %v1611 = vsel %vm968, %v1559, 0
        %v1614 = vsel %vm1095, %v1609, 0
        %1616 = vmatprep.subr.bf16.mxu0 0
        %1617 = vmatpush1.bf16.msra.mxu0 %v1614
        %1618 = vmatprep.subr.bf16.mxu0 0
        %1619 = vmatpush1.bf16.msra.mxu0 0
        %1620 = vmatprep.subr.bf16.mxu0 0
        %1621 = vmatpush1.bf16.msra.mxu0 0
        %1622 = vmatprep.subr.bf16.mxu0 0
        %1623 = vmatpush1.bf16.msra.mxu0 0
        %1624 = vmatprep.subr.bf16.mxu0 0
        %1625 = vmatpush1.bf16.msra.mxu0 0
        %1626 = vmatprep.subr.bf16.mxu0 0
        %1627 = vmatpush1.bf16.msra.mxu0 0
        %1628 = vmatprep.subr.bf16.mxu0 0
        %1629 = vmatpush1.bf16.msra.mxu0 0
        %1630 = vmatprep.subr.bf16.mxu0 0
        %1631 = vmatpush1.bf16.msra.mxu0 0
        %1632 = vmatprep.subr.bf16.mxu0 0
        %1633 = vmatpush1.bf16.msra.mxu0 0
        %1634 = vmatprep.subr.bf16.mxu0 0
        %1635 = vmatpush1.bf16.msra.mxu0 0
        %1636 = vmatprep.subr.bf16.mxu0 0
        %1637 = vmatpush1.bf16.msra.mxu0 0
        %1638 = vmatprep.subr.bf16.mxu0 0
        %1639 = vmatpush1.bf16.msra.mxu0 0
        %1640 = vmatprep.subr.bf16.mxu0 0
        %1641 = vmatpush1.bf16.msra.mxu0 0
        %1642 = vmatprep.subr.bf16.mxu0 0
        %1643 = vmatpush1.bf16.msra.mxu0 0
        %1644 = vmatprep.subr.bf16.mxu0 0
        %1645 = vmatpush1.bf16.msra.mxu0 0
        %1646 = vmatprep.subr.bf16.mxu0 0
        %1647 = vmatpush1.bf16.msra.mxu0 0
        %1648 = vmatprep.mubr.bf16.mxu0 0
        %1649 = vmatmul.mubr.bf16.gmra.mrb[0].mxu0 %v1611
        %v1650 = vpop.f32.mrb[0].mxu0
        %v1651 = vadd.f32 0.0, %v1650
        %v1652 = vpop.f32.mrb[0].mxu0
        %v1653 = vpop.f32.mrb[0].mxu0
        %v1654 = vpop.f32.mrb[0].mxu0
        %1655 = vdwg.mxu0
        %1658 = vrot.lane.b32.xlu0 %v1603, 16
        %v1659 = vpop.permute.xlu0 %1658
        %1660 = vrot.lane.b32.xlu0 %v1651, 16
        %v1661 = vpop.permute.xlu0 %1660
        %vm1664 = vcmask 195712
        %1665 = vst.msk [vmem:[#allocation4] sm:$0xff] %vm1664, %v1659
        %1666 = vst.msk [vmem:[#allocation4 + $0x8] sm:$0xff] %vm1664, %v1661
        %v1667 = vld [vmem:[#allocation3] sm:$0xff]
        %v1668 = vld [vmem:[#allocation3 + $0x8] sm:$0xff]
        %v1669 = vpack.c.bf16 %v1667, %v1667
        %v1670 = vpack.c.bf16 %v1668, %v1668
        %1672 = vrot.lane.b32.xlu0 %v1669, 104
        %v1673 = vpop.permute.xlu0 %1672
        %1674 = vrot.lane.b32.xlu0 %v1669, 72
        %v1675 = vpop.permute.xlu0 %1674
        %v1677 = vsel %vm968, %v1673, 0
        %v1680 = vsel %vm968, %v1675, 0
        %1682 = vmatprep.subr.bf16.mxu0 0
        %1683 = vmatpush1.bf16.xpose.msra.mxu0 %v1680
        %1684 = vmatprep.subr.bf16.mxu0 0
        %1685 = vmatpush1.bf16.xpose.msra.mxu0 0
        %1686 = vmatprep.subr.bf16.mxu0 0
        %1687 = vmatpush1.bf16.xpose.msra.mxu0 0
        %1688 = vmatprep.subr.bf16.mxu0 0
        %1689 = vmatpush1.bf16.xpose.msra.mxu0 0
        %1690 = vmatprep.subr.bf16.mxu0 0
        %1691 = vmatpush1.bf16.xpose.msra.mxu0 0
        %1692 = vmatprep.subr.bf16.mxu0 0
        %1693 = vmatpush1.bf16.xpose.msra.mxu0 0
        %1694 = vmatprep.subr.bf16.mxu0 0
        %1695 = vmatpush1.bf16.xpose.msra.mxu0 0
        %1696 = vmatprep.subr.bf16.mxu0 0
        %1697 = vmatpush1.bf16.xpose.msra.mxu0 0
        %1698 = vmatprep.subr.bf16.mxu0 0
        %1699 = vmatpush1.bf16.xpose.msra.mxu0 0
        %1700 = vmatprep.subr.bf16.mxu0 0
        %1701 = vmatpush1.bf16.xpose.msra.mxu0 0
        %1702 = vmatprep.subr.bf16.mxu0 0
        %1703 = vmatpush1.bf16.xpose.msra.mxu0 0
        %1704 = vmatprep.subr.bf16.mxu0 0
        %1705 = vmatpush1.bf16.xpose.msra.mxu0 0
        %1706 = vmatprep.subr.bf16.mxu0 0
        %1707 = vmatpush1.bf16.xpose.msra.mxu0 0
        %1708 = vmatprep.subr.bf16.mxu0 0
        %1709 = vmatpush1.bf16.xpose.msra.mxu0 0
        %1710 = vmatprep.subr.bf16.mxu0 0
        %1711 = vmatpush1.bf16.xpose.msra.mxu0 0
        %1712 = vmatprep.subr.bf16.mxu0 0
        %1713 = vmatpush1.bf16.xpose.msra.mxu0 0
        %1714 = vmatprep.mubr.bf16.mxu0 0
        %1715 = vmatmul.mubr.bf16.gmra.mrb[0].mxu0 %v1677
        %v1716 = vpop.f32.mrb[0].mxu0
        %v1717 = vadd.f32 0.0, %v1716
        %v1718 = vpop.f32.mrb[0].mxu0
        %v1719 = vpop.f32.mrb[0].mxu0
        %v1720 = vpop.f32.mrb[0].mxu0
        %1721 = vdwg.mxu0
        %1723 = vrot.lane.b32.xlu0 %v1670, 104
        %v1724 = vpop.permute.xlu0 %1723
        %1725 = vrot.lane.b32.xlu0 %v1670, 72
        %v1726 = vpop.permute.xlu0 %1725
        %v1728 = vsel %vm968, %v1724, 0
        %v1731 = vsel %vm968, %v1726, 0
        %1733 = vmatprep.subr.bf16.mxu0 0
        %1734 = vmatpush1.bf16.xpose.msra.mxu0 %v1731
        %1735 = vmatprep.subr.bf16.mxu0 0
        %1736 = vmatpush1.bf16.xpose.msra.mxu0 0
        %1737 = vmatprep.subr.bf16.mxu0 0
        %1738 = vmatpush1.bf16.xpose.msra.mxu0 0
        %1739 = vmatprep.subr.bf16.mxu0 0
        %1740 = vmatpush1.bf16.xpose.msra.mxu0 0
        %1741 = vmatprep.subr.bf16.mxu0 0
        %1742 = vmatpush1.bf16.xpose.msra.mxu0 0
        %1743 = vmatprep.subr.bf16.mxu0 0
        %1744 = vmatpush1.bf16.xpose.msra.mxu0 0
        %1745 = vmatprep.subr.bf16.mxu0 0
        %1746 = vmatpush1.bf16.xpose.msra.mxu0 0
        %1747 = vmatprep.subr.bf16.mxu0 0
        %1748 = vmatpush1.bf16.xpose.msra.mxu0 0
        %1749 = vmatprep.subr.bf16.mxu0 0
        %1750 = vmatpush1.bf16.xpose.msra.mxu0 0
        %1751 = vmatprep.subr.bf16.mxu0 0
        %1752 = vmatpush1.bf16.xpose.msra.mxu0 0
        %1753 = vmatprep.subr.bf16.mxu0 0
        %1754 = vmatpush1.bf16.xpose.msra.mxu0 0
        %1755 = vmatprep.subr.bf16.mxu0 0
        %1756 = vmatpush1.bf16.xpose.msra.mxu0 0
        %1757 = vmatprep.subr.bf16.mxu0 0
        %1758 = vmatpush1.bf16.xpose.msra.mxu0 0
        %1759 = vmatprep.subr.bf16.mxu0 0
        %1760 = vmatpush1.bf16.xpose.msra.mxu0 0
        %1761 = vmatprep.subr.bf16.mxu0 0
        %1762 = vmatpush1.bf16.xpose.msra.mxu0 0
        %1763 = vmatprep.subr.bf16.mxu0 0
        %1764 = vmatpush1.bf16.xpose.msra.mxu0 0
        %1765 = vmatprep.mubr.bf16.mxu0 0
        %1766 = vmatmul.mubr.bf16.gmra.mrb[0].mxu0 %v1728
        %v1767 = vpop.f32.mrb[0].mxu0
        %v1768 = vadd.f32 0.0, %v1767
        %v1769 = vpop.f32.mrb[0].mxu0
        %v1770 = vpop.f32.mrb[0].mxu0
        %v1771 = vpop.f32.mrb[0].mxu0
        %1772 = vdwg.mxu0
        %v1773 = vmul.f32 %v1717, 0.35355338
        %v1774 = vmul.f32 %v1768, 0.35355338
        %v1775 = vsel %vm968, %v1773, -inf
        %1776 = vmax.xlane.f32.xlu0 %v1775
        %v1777 = vpop.xlane.xlu0 %1776
        %v1778 = vsel %vm968, %v1774, -inf
        %1779 = vmax.xlane.f32.xlu0 %v1778
        %v1780 = vpop.xlane.xlu0 %1779
        %v1781 = vsub.f32 %v1773, %v1777
        %v1782 = vsub.f32 %v1774, %v1780
        %v1783 = vmul.f32 %v1781, 1.442695
        %v1784 = vpow.pop %v1783
        %v1785 = vmul.f32 %v1782, 1.442695
        %v1786 = vpow.pop %v1785
        %v1787 = vsel %vm968, %v1784, 0.0
        %1788 = vadd.xlane.f32.xlu0 %v1787
        %v1789 = vpop.xlane.xlu0 %1788
        %v1790 = vsel %vm968, %v1786, 0.0
        %1791 = vadd.xlane.f32.xlu0 %v1790
        %v1792 = vpop.xlane.xlu0 %1791
        %v1793 = vrcp.pop %v1789
        %v1794 = vrcp.pop %v1792
        %v1795 = vmul.f32 %v1784, %v1793
        %v1796 = vmul.f32 %v1786, %v1794
        %v1797 = vpack.c.bf16 %v1795, %v1795
        %v1798 = vpack.c.bf16 %v1796, %v1796
        %1799 = vrot.lane.b32.xlu0 %v1669, 40
        %v1800 = vpop.permute.xlu0 %1799
        %v1802 = vsel %vm968, %v1797, 0
        %v1805 = vsel %vm1095, %v1800, 0
        %1807 = vmatprep.subr.bf16.mxu0 0
        %1808 = vmatpush1.bf16.msra.mxu0 %v1805
        %1809 = vmatprep.subr.bf16.mxu0 0
        %1810 = vmatpush1.bf16.msra.mxu0 0
        %1811 = vmatprep.subr.bf16.mxu0 0
        %1812 = vmatpush1.bf16.msra.mxu0 0
        %1813 = vmatprep.subr.bf16.mxu0 0
        %1814 = vmatpush1.bf16.msra.mxu0 0
        %1815 = vmatprep.subr.bf16.mxu0 0
        %1816 = vmatpush1.bf16.msra.mxu0 0
        %1817 = vmatprep.subr.bf16.mxu0 0
        %1818 = vmatpush1.bf16.msra.mxu0 0
        %1819 = vmatprep.subr.bf16.mxu0 0
        %1820 = vmatpush1.bf16.msra.mxu0 0
        %1821 = vmatprep.subr.bf16.mxu0 0
        %1822 = vmatpush1.bf16.msra.mxu0 0
        %1823 = vmatprep.subr.bf16.mxu0 0
        %1824 = vmatpush1.bf16.msra.mxu0 0
        %1825 = vmatprep.subr.bf16.mxu0 0
        %1826 = vmatpush1.bf16.msra.mxu0 0
        %1827 = vmatprep.subr.bf16.mxu0 0
        %1828 = vmatpush1.bf16.msra.mxu0 0
        %1829 = vmatprep.subr.bf16.mxu0 0
        %1830 = vmatpush1.bf16.msra.mxu0 0
        %1831 = vmatprep.subr.bf16.mxu0 0
        %1832 = vmatpush1.bf16.msra.mxu0 0
        %1833 = vmatprep.subr.bf16.mxu0 0
        %1834 = vmatpush1.bf16.msra.mxu0 0
        %1835 = vmatprep.subr.bf16.mxu0 0
        %1836 = vmatpush1.bf16.msra.mxu0 0
        %1837 = vmatprep.subr.bf16.mxu0 0
        %1838 = vmatpush1.bf16.msra.mxu0 0
        %1839 = vmatprep.mubr.bf16.mxu0 0
        %1840 = vmatmul.mubr.bf16.gmra.mrb[0].mxu0 %v1802
        %v1841 = vpop.f32.mrb[0].mxu0
        %v1842 = vadd.f32 0.0, %v1841
        %v1843 = vpop.f32.mrb[0].mxu0
        %v1844 = vpop.f32.mrb[0].mxu0
        %v1845 = vpop.f32.mrb[0].mxu0
        %1846 = vdwg.mxu0
        %1847 = vrot.lane.b32.xlu0 %v1670, 40
        %v1848 = vpop.permute.xlu0 %1847
        %v1850 = vsel %vm968, %v1798, 0
        %v1853 = vsel %vm1095, %v1848, 0
        %1855 = vmatprep.subr.bf16.mxu0 0
        %1856 = vmatpush1.bf16.msra.mxu0 %v1853
        %1857 = vmatprep.subr.bf16.mxu0 0
        %1858 = vmatpush1.bf16.msra.mxu0 0
        %1859 = vmatprep.subr.bf16.mxu0 0
        %1860 = vmatpush1.bf16.msra.mxu0 0
        %1861 = vmatprep.subr.bf16.mxu0 0
        %1862 = vmatpush1.bf16.msra.mxu0 0
        %1863 = vmatprep.subr.bf16.mxu0 0
        %1864 = vmatpush1.bf16.msra.mxu0 0
        %1865 = vmatprep.subr.bf16.mxu0 0
        %1866 = vmatpush1.bf16.msra.mxu0 0
        %1867 = vmatprep.subr.bf16.mxu0 0
        %1868 = vmatpush1.bf16.msra.mxu0 0
        %1869 = vmatprep.subr.bf16.mxu0 0
        %1870 = vmatpush1.bf16.msra.mxu0 0
        %1871 = vmatprep.subr.bf16.mxu0 0
        %1872 = vmatpush1.bf16.msra.mxu0 0
        %1873 = vmatprep.subr.bf16.mxu0 0
        %1874 = vmatpush1.bf16.msra.mxu0 0
        %1875 = vmatprep.subr.bf16.mxu0 0
        %1876 = vmatpush1.bf16.msra.mxu0 0
        %1877 = vmatprep.subr.bf16.mxu0 0
        %1878 = vmatpush1.bf16.msra.mxu0 0
        %1879 = vmatprep.subr.bf16.mxu0 0
        %1880 = vmatpush1.bf16.msra.mxu0 0
        %1881 = vmatprep.subr.bf16.mxu0 0
        %1882 = vmatpush1.bf16.msra.mxu0 0
        %1883 = vmatprep.subr.bf16.mxu0 0
        %1884 = vmatpush1.bf16.msra.mxu0 0
        %1885 = vmatprep.subr.bf16.mxu0 0
        %1886 = vmatpush1.bf16.msra.mxu0 0
        %1887 = vmatprep.mubr.bf16.mxu0 0
        %1888 = vmatmul.mubr.bf16.gmra.mrb[0].mxu0 %v1850
        %v1889 = vpop.f32.mrb[0].mxu0
        %v1890 = vadd.f32 0.0, %v1889
        %v1891 = vpop.f32.mrb[0].mxu0
        %v1892 = vpop.f32.mrb[0].mxu0
        %v1893 = vpop.f32.mrb[0].mxu0
        %1894 = vdwg.mxu0
        %1897 = vrot.lane.b32.xlu0 %v1842, 24
        %v1898 = vpop.permute.xlu0 %1897
        %1899 = vrot.lane.b32.xlu0 %v1890, 24
        %v1900 = vpop.permute.xlu0 %1899
        %vm1903 = vcmask 261312
        %1904 = vst.msk [vmem:[#allocation4] sm:$0xff] %vm1903, %v1898
        %1905 = vst.msk [vmem:[#allocation4 + $0x8] sm:$0xff] %vm1903, %v1900
        %v1906 = vld [vmem:[#allocation4] sm:$0xff]
        %v1907 = vld [vmem:[#allocation4 + $0x8] sm:$0xff]
        %v1908 = vpack.c.bf16 %v1907, %v1906
        %v1909 = vld [vmem:[%s800] sm:$0xf]
        %v1910 = vld [vmem:[%s800 + $0x4] sm:$0xf]
        %v1911 = vld [vmem:[%s800 + $0x8] sm:$0xf]
        %v1912 = vld [vmem:[%s800 + $0xc] sm:$0xf]
        %v1913 = vld [vmem:[%s803] sm:$0x1]
        %v1915 = vlaneseq
        %v1916 = vshrl.u32 %v1915, 7
        %v1917 = vsub.s32 0, %v1916
        %v1918 = vrot.slane %v1913, %v1917
        %v1924 = vunpack.c.l.b16 %v1909
        %v1925 = vunpack.c.l.b16 %v1910
        %v1926 = vunpack.c.l.b16 %v1911
        %v1927 = vunpack.c.l.b16 %v1912
        %v1928 = vpack.c.b16 %v1925, %v1924
        %v1929 = vpack.c.b16 %v1927, %v1926
        %v1933 = vsel %vm846, %v1908, 0
        %1935 = vmatprep.subr.bf16.mxu0 0
        %1936 = vmatpush1.bf16.msra.mxu0 %v1928
        %1937 = vmatprep.subr.bf16.mxu0 0
        %1938 = vmatpush1.bf16.msra.mxu0 %v1929
        %1939 = vmatprep.subr.bf16.mxu0 0
        %1940 = vmatpush1.bf16.msra.mxu0 0
        %1941 = vmatprep.subr.bf16.mxu0 0
        %1942 = vmatpush1.bf16.msra.mxu0 0
        %1943 = vmatprep.subr.bf16.mxu0 0
        %1944 = vmatpush1.bf16.msra.mxu0 0
        %1945 = vmatprep.subr.bf16.mxu0 0
        %1946 = vmatpush1.bf16.msra.mxu0 0
        %1947 = vmatprep.subr.bf16.mxu0 0
        %1948 = vmatpush1.bf16.msra.mxu0 0
        %1949 = vmatprep.subr.bf16.mxu0 0
        %1950 = vmatpush1.bf16.msra.mxu0 0
        %1951 = vmatprep.subr.bf16.mxu0 0
        %1952 = vmatpush1.bf16.msra.mxu0 0
        %1953 = vmatprep.subr.bf16.mxu0 0
        %1954 = vmatpush1.bf16.msra.mxu0 0
        %1955 = vmatprep.subr.bf16.mxu0 0
        %1956 = vmatpush1.bf16.msra.mxu0 0
        %1957 = vmatprep.subr.bf16.mxu0 0
        %1958 = vmatpush1.bf16.msra.mxu0 0
        %1959 = vmatprep.subr.bf16.mxu0 0
        %1960 = vmatpush1.bf16.msra.mxu0 0
        %1961 = vmatprep.subr.bf16.mxu0 0
        %1962 = vmatpush1.bf16.msra.mxu0 0
        %1963 = vmatprep.subr.bf16.mxu0 0
        %1964 = vmatpush1.bf16.msra.mxu0 0
        %1965 = vmatprep.subr.bf16.mxu0 0
        %1966 = vmatpush1.bf16.msra.mxu0 0
        %1967 = vmatprep.mubr.bf16.mxu0 0
        %1968 = vmatmul.mubr.bf16.gmra.mrb[0].mxu0 %v1933
        %v1969 = vpop.f32.mrb[0].mxu0
        %v1970 = vadd.f32 %v1918, %v1969
        %v1971 = vpop.f32.mrb[0].mxu0
        %v1972 = vpop.f32.mrb[0].mxu0
        %v1973 = vadd.f32 %v1918, %v1972
        %v1974 = vpop.f32.mrb[0].mxu0
        %1975 = vdwg.mxu0
        %v1976 = vadd.f32 %v842, %v1970
        %v1977 = vadd.f32 %v843, %v1973
        %v1978 = vld [vmem:[%s806] sm:$0x1]
        %v1979 = vld [vmem:[%s809] sm:$0x1]
        %v1980 = vsel %vm846, %v1976, 0.0
        %1981 = vadd.xlane.f32.xlu0 %v1980
        %v1982 = vpop.xlane.xlu0 %1981
        %v1983 = vsel %vm846, %v1977, 0.0
        %1984 = vadd.xlane.f32.xlu0 %v1983
        %v1985 = vpop.xlane.xlu0 %1984
        %v1986 = vmul.f32 %v1982, %v853
        %v1987 = vmul.f32 %v1985, %v853
        %v1988 = vsub.f32 %v1976, %v1986
        %v1989 = vsub.f32 %v1977, %v1987
        %v1990 = vmul.f32 %v1988, %v1988
        %v1991 = vmul.f32 %v1989, %v1989
        %v1992 = vsel %vm846, %v1990, 0.0
        %1993 = vadd.xlane.f32.xlu0 %v1992
        %v1994 = vpop.xlane.xlu0 %1993
        %v1995 = vsel %vm846, %v1991, 0.0
        %1996 = vadd.xlane.f32.xlu0 %v1995
        %v1997 = vpop.xlane.xlu0 %1996
        %v1998 = vmul.f32 %v1994, %v853
        %v1999 = vmul.f32 %v1997, %v853
        %v2000 = vadd.f32 %v1998, 1e-06
        %v2001 = vadd.f32 %v1999, 1e-06
        %v2002 = vrsqrt.pop %v2000
        %v2003 = vrsqrt.pop %v2001
        %v2004 = vmul.f32 %v1988, %v2002
        %v2005 = vmul.f32 %v1989, %v2003
        %v2007 = vlaneseq
        %v2008 = vshrl.u32 %v2007, 7
        %v2009 = vsub.s32 0, %v2008
        %v2010 = vrot.slane %v1978, %v2009
        %v2012 = vmul.f32 %v2004, %v2010
        %v2013 = vmul.f32 %v2005, %v2010
        %v2015 = vlaneseq
        %v2016 = vshrl.u32 %v2015, 7
        %v2017 = vsub.s32 0, %v2016
        %v2018 = vrot.slane %v1979, %v2017
        %v2020 = vadd.f32 %v2012, %v2018
        %v2021 = vadd.f32 %v2013, %v2018
        %v2022 = vpack.c.bf16 %v2021, %v2020
        %v2023 = vld [vmem:[%s814] sm:$0xf]
        %v2024 = vld [vmem:[%s814 + $0x4] sm:$0xf]
        %v2025 = vld [vmem:[%s814 + $0x8] sm:$0xf]
        %v2026 = vld [vmem:[%s814 + $0xc] sm:$0xf]
        %v2027 = vld [vmem:[%s817] sm:$0x1]
        %v2029 = vlaneseq
        %v2030 = vshrl.u32 %v2029, 7
        %v2031 = vsub.s32 0, %v2030
        %v2032 = vrot.slane %v2027, %v2031
        %v2038 = vunpack.c.l.b16 %v2023
        %v2039 = vunpack.c.l.b16 %v2024
        %v2040 = vunpack.c.l.b16 %v2025
        %v2041 = vunpack.c.l.b16 %v2026
        %v2042 = vpack.c.b16 %v2039, %v2038
        %v2043 = vpack.c.b16 %v2041, %v2040
        %v2047 = vsel %vm846, %v2022, 0
        %2049 = vmatprep.subr.bf16.mxu0 0
        %2050 = vmatpush1.bf16.msra.mxu0 %v2042
        %2051 = vmatprep.subr.bf16.mxu0 0
        %2052 = vmatpush1.bf16.msra.mxu0 %v2043
        %2053 = vmatprep.subr.bf16.mxu0 0
        %2054 = vmatpush1.bf16.msra.mxu0 0
        %2055 = vmatprep.subr.bf16.mxu0 0
        %2056 = vmatpush1.bf16.msra.mxu0 0
        %2057 = vmatprep.subr.bf16.mxu0 0
        %2058 = vmatpush1.bf16.msra.mxu0 0
        %2059 = vmatprep.subr.bf16.mxu0 0
        %2060 = vmatpush1.bf16.msra.mxu0 0
        %2061 = vmatprep.subr.bf16.mxu0 0
        %2062 = vmatpush1.bf16.msra.mxu0 0
        %2063 = vmatprep.subr.bf16.mxu0 0
        %2064 = vmatpush1.bf16.msra.mxu0 0
        %2065 = vmatprep.subr.bf16.mxu0 0
        %2066 = vmatpush1.bf16.msra.mxu0 0
        %2067 = vmatprep.subr.bf16.mxu0 0
        %2068 = vmatpush1.bf16.msra.mxu0 0
        %2069 = vmatprep.subr.bf16.mxu0 0
        %2070 = vmatpush1.bf16.msra.mxu0 0
        %2071 = vmatprep.subr.bf16.mxu0 0
        %2072 = vmatpush1.bf16.msra.mxu0 0
        %2073 = vmatprep.subr.bf16.mxu0 0
        %2074 = vmatpush1.bf16.msra.mxu0 0
        %2075 = vmatprep.subr.bf16.mxu0 0
        %2076 = vmatpush1.bf16.msra.mxu0 0
        %2077 = vmatprep.subr.bf16.mxu0 0
        %2078 = vmatpush1.bf16.msra.mxu0 0
        %2079 = vmatprep.subr.bf16.mxu0 0
        %2080 = vmatpush1.bf16.msra.mxu0 0
        %2081 = vmatprep.mubr.bf16.mxu0 0
        %2082 = vmatmul.mubr.bf16.gmra.mrb[0].mxu0 %v2047
        %v2083 = vpop.f32.mrb[0].mxu0
        %v2084 = vadd.f32 %v2032, %v2083
        %v2085 = vpop.f32.mrb[0].mxu0
        %v2086 = vpop.f32.mrb[0].mxu0
        %v2087 = vadd.f32 %v2032, %v2086
        %v2088 = vpop.f32.mrb[0].mxu0
        %2089 = vdwg.mxu0
        %v2090 = vmul.f32 %v2084, %v2084
        %v2091 = vmul.f32 %v2087, %v2087
        %v2092 = vmul.f32 %v2084, %v2090
        %v2093 = vmul.f32 %v2087, %v2091
        %v2094 = vmul.f32 %v2092, 0.044715
        %v2095 = vmul.f32 %v2093, 0.044715
        %v2096 = vadd.f32 %v2084, %v2094
        %v2097 = vadd.f32 %v2087, %v2095
        %v2098 = vmul.f32 %v2096, 0.7978846
        %v2099 = vmul.f32 %v2097, 0.7978846
        %v2100 = vtanh.pop %v2098
        %v2101 = vtanh.pop %v2099
        %v2102 = vadd.f32 %v2100, 1.0
        %v2103 = vadd.f32 %v2101, 1.0
        %v2104 = vmul.f32 %v2102, 0.5
        %v2105 = vmul.f32 %v2103, 0.5
        %v2106 = vmul.f32 %v2084, %v2104
        %v2107 = vmul.f32 %v2087, %v2105
        %v2108 = vpack.c.bf16 %v2107, %v2106
        %v2109 = vld [vmem:[%s822] sm:$0xf]
        %v2110 = vld [vmem:[%s822 + $0x4] sm:$0xf]
        %v2111 = vld [vmem:[%s822 + $0x8] sm:$0xf]
        %v2112 = vld [vmem:[%s822 + $0xc] sm:$0xf]
        %v2113 = vld [vmem:[%s822 + $0x10] sm:$0xf]
        %v2114 = vld [vmem:[%s822 + $0x14] sm:$0xf]
        %v2115 = vld [vmem:[%s822 + $0x18] sm:$0xf]
        %v2116 = vld [vmem:[%s822 + $0x1c] sm:$0xf]
        %v2117 = vld [vmem:[%s822 + $0x20] sm:$0xf]
        %v2118 = vld [vmem:[%s822 + $0x24] sm:$0xf]
        %v2119 = vld [vmem:[%s822 + $0x28] sm:$0xf]
        %v2120 = vld [vmem:[%s822 + $0x2c] sm:$0xf]
        %v2121 = vld [vmem:[%s822 + $0x30] sm:$0xf]
        %v2122 = vld [vmem:[%s822 + $0x34] sm:$0xf]
        %v2123 = vld [vmem:[%s822 + $0x38] sm:$0xf]
        %v2124 = vld [vmem:[%s822 + $0x3c] sm:$0xf]
        %v2141 = vunpack.c.l.b16 %v2109
        %v2142 = vunpack.c.l.b16 %v2110
        %v2143 = vunpack.c.l.b16 %v2111
        %v2144 = vunpack.c.l.b16 %v2112
        %v2145 = vunpack.c.l.b16 %v2113
        %v2146 = vunpack.c.l.b16 %v2114
        %v2147 = vunpack.c.l.b16 %v2115
        %v2148 = vunpack.c.l.b16 %v2116
        %v2149 = vunpack.c.l.b16 %v2117
        %v2150 = vunpack.c.l.b16 %v2118
        %v2151 = vunpack.c.l.b16 %v2119
        %v2152 = vunpack.c.l.b16 %v2120
        %v2153 = vunpack.c.l.b16 %v2121
        %v2154 = vunpack.c.l.b16 %v2122
        %v2155 = vunpack.c.l.b16 %v2123
        %v2156 = vunpack.c.l.b16 %v2124
        %v2157 = vpack.c.b16 %v2142, %v2141
        %v2158 = vpack.c.b16 %v2144, %v2143
        %v2159 = vpack.c.b16 %v2146, %v2145
        %v2160 = vpack.c.b16 %v2148, %v2147
        %v2161 = vpack.c.b16 %v2150, %v2149
        %v2162 = vpack.c.b16 %v2152, %v2151
        %v2163 = vpack.c.b16 %v2154, %v2153
        %v2164 = vpack.c.b16 %v2156, %v2155
        %2173 = vmatprep.subr.bf16.mxu0 0
        %2174 = vmatpush1.bf16.msra.mxu0 %v2157
        %2175 = vmatprep.subr.bf16.mxu0 0
        %2176 = vmatpush1.bf16.msra.mxu0 %v2158
        %2177 = vmatprep.subr.bf16.mxu0 0
        %2178 = vmatpush1.bf16.msra.mxu0 %v2159
        %2179 = vmatprep.subr.bf16.mxu0 0
        %2180 = vmatpush1.bf16.msra.mxu0 %v2160
        %2181 = vmatprep.subr.bf16.mxu0 0
        %2182 = vmatpush1.bf16.msra.mxu0 %v2161
        %2183 = vmatprep.subr.bf16.mxu0 0
        %2184 = vmatpush1.bf16.msra.mxu0 %v2162
        %2185 = vmatprep.subr.bf16.mxu0 0
        %2186 = vmatpush1.bf16.msra.mxu0 %v2163
        %2187 = vmatprep.subr.bf16.mxu0 0
        %2188 = vmatpush1.bf16.msra.mxu0 %v2164
        %2189 = vmatprep.subr.bf16.mxu0 0
        %2190 = vmatpush1.bf16.msra.mxu0 0
        %2191 = vmatprep.subr.bf16.mxu0 0
        %2192 = vmatpush1.bf16.msra.mxu0 0
        %2193 = vmatprep.subr.bf16.mxu0 0
        %2194 = vmatpush1.bf16.msra.mxu0 0
        %2195 = vmatprep.subr.bf16.mxu0 0
        %2196 = vmatpush1.bf16.msra.mxu0 0
        %2197 = vmatprep.subr.bf16.mxu0 0
        %2198 = vmatpush1.bf16.msra.mxu0 0
        %2199 = vmatprep.subr.bf16.mxu0 0
        %2200 = vmatpush1.bf16.msra.mxu0 0
        %2201 = vmatprep.subr.bf16.mxu0 0
        %2202 = vmatpush1.bf16.msra.mxu0 0
        %2203 = vmatprep.subr.bf16.mxu0 0
        %2204 = vmatpush1.bf16.msra.mxu0 0
        %2205 = vmatprep.mubr.bf16.mxu0 0
        %2206 = vmatmul.mubr.bf16.gmra.mrb[0].mxu0 %v2108
        %v2207 = vpop.f32.mrb[0].mxu0
        %v2208 = vadd.f32 0.0, %v2207
        %v2209 = vpop.f32.mrb[0].mxu0
        %v2210 = vpop.f32.mrb[0].mxu0
        %v2211 = vadd.f32 0.0, %v2210
        %v2212 = vpop.f32.mrb[0].mxu0
        %2213 = vdwg.mxu0
        %v2214 = vadd.f32 %v1976, %v2208
        %v2215 = vadd.f32 %v1977, %v2211
        %v2216 = vld [vmem:[%s825] sm:$0x1]
        %v2218 = vlaneseq
        %v2219 = vshrl.u32 %v2218, 7
        %v2220 = vsub.s32 0, %v2219
        %v2221 = vrot.slane %v2216, %v2220
        %v2223 = vadd.f32 %v2214, %v2221
        %v2224 = vadd.f32 %v2215, %v2221
        %2225 = vst.msk [vmem:[#allocation2] sm:$0xff] %vm846, %v2223
        %2226 = vst.msk [vmem:[#allocation2 + $0x8] sm:$0xff] %vm846, %v2224
        %p2227 = scmp.eq.s32.totalorder %s38, 1
        // Predicated region
        $region97: #{fwd.5} parent=91 // pred_check
          %p2228 = pneg %p2227
        $region98: #{fwd.5} parent=91 // pred_check_branch
          %2230 = sbr.rel (%p2228) target = $region100
        $region99: #{fwd.5} parent=91 // pred_region
          %v2231 = vld [vmem:[%s14] sm:$0x1]
          %v2232 = vld [vmem:[%s15] sm:$0x1]
          %vm2233 = vcmask 257024
          %v2234 = vsel %vm2233, %v2223, 0.0
          %2235 = vadd.xlane.f32.xlu0 %v2234
          %v2236 = vpop.xlane.xlu0 %2235
          %v2237 = vsel %vm2233, %v2224, 0.0
          %2238 = vadd.xlane.f32.xlu0 %v2237
          %v2239 = vpop.xlane.xlu0 %2238
          %v2240 = vmul.f32 %v2236, %v853
          %v2241 = vmul.f32 %v2239, %v853
          %v2242 = vsub.f32 %v2223, %v2240
          %v2243 = vsub.f32 %v2224, %v2241
          %v2244 = vmul.f32 %v2242, %v2242
          %v2245 = vmul.f32 %v2243, %v2243
          %v2246 = vsel %vm2233, %v2244, 0.0
          %2247 = vadd.xlane.f32.xlu0 %v2246
          %v2248 = vpop.xlane.xlu0 %2247
          %v2249 = vsel %vm2233, %v2245, 0.0
          %2250 = vadd.xlane.f32.xlu0 %v2249
          %v2251 = vpop.xlane.xlu0 %2250
          %v2252 = vmul.f32 %v2248, %v853
          %v2253 = vmul.f32 %v2251, %v853
          %v2254 = vadd.f32 %v2252, 1e-06
          %v2255 = vadd.f32 %v2253, 1e-06
          %v2256 = vrsqrt.pop %v2254
          %v2257 = vrsqrt.pop %v2255
          %v2258 = vmul.f32 %v2242, %v2256
          %v2259 = vmul.f32 %v2243, %v2257
          %v2261 = vlaneseq
          %v2262 = vshrl.u32 %v2261, 7
          %v2263 = vsub.s32 0, %v2262
          %v2264 = vrot.slane %v2231, %v2263
          %v2266 = vmul.f32 %v2258, %v2264
          %v2267 = vmul.f32 %v2259, %v2264
          %v2269 = vlaneseq
          %v2270 = vshrl.u32 %v2269, 7
          %v2271 = vsub.s32 0, %v2270
          %v2272 = vrot.slane %v2232, %v2271
          %v2274 = vadd.f32 %v2266, %v2272
          %v2275 = vadd.f32 %v2267, %v2272
          %2276 = vst.msk [vmem:[#allocation5] sm:$0xf] %vm2233, %v2274
          %2277 = vst.msk [vmem:[#allocation5 + $0x4] sm:$0xf] %vm2233, %v2275
          %v2278 = vld [vmem:[%s16] sm:$0x1]
          %v2279 = vld [vmem:[%s17] sm:$0x1]
          %vm2280 = vcmask 261124
          %v2281 = vsel %vm2280, %v2223, 0.0
          %2282 = vadd.xlane.f32.xlu0 %v2281
          %v2283 = vpop.xlane.xlu0 %2282
          %v2284 = vsel %vm2280, %v2224, 0.0
          %2285 = vadd.xlane.f32.xlu0 %v2284
          %v2286 = vpop.xlane.xlu0 %2285
          %v2287 = vmul.f32 %v2283, %v853
          %v2288 = vmul.f32 %v2286, %v853
          %v2289 = vsub.f32 %v2223, %v2287
          %v2290 = vsub.f32 %v2224, %v2288
          %v2291 = vmul.f32 %v2289, %v2289
          %v2292 = vmul.f32 %v2290, %v2290
          %v2293 = vsel %vm2280, %v2291, 0.0
          %2294 = vadd.xlane.f32.xlu0 %v2293
          %v2295 = vpop.xlane.xlu0 %2294
          %v2296 = vsel %vm2280, %v2292, 0.0
          %2297 = vadd.xlane.f32.xlu0 %v2296
          %v2298 = vpop.xlane.xlu0 %2297
          %v2299 = vmul.f32 %v2295, %v853
          %v2300 = vmul.f32 %v2298, %v853
          %v2301 = vadd.f32 %v2299, 1e-06
          %v2302 = vadd.f32 %v2300, 1e-06
          %v2303 = vrsqrt.pop %v2301
          %v2304 = vrsqrt.pop %v2302
          %v2305 = vmul.f32 %v2289, %v2303
          %v2306 = vmul.f32 %v2290, %v2304
          %v2308 = vlaneseq
          %v2309 = vshrl.u32 %v2308, 7
          %v2310 = vsub.s32 0, %v2309
          %v2311 = vrot.slane %v2278, %v2310
          %v2313 = vmul.f32 %v2305, %v2311
          %v2314 = vmul.f32 %v2306, %v2311
          %v2316 = vlaneseq
          %v2317 = vshrl.u32 %v2316, 7
          %v2318 = vsub.s32 0, %v2317
          %v2319 = vrot.slane %v2279, %v2318
          %v2321 = vadd.f32 %v2313, %v2319
          %v2322 = vadd.f32 %v2314, %v2319
          %2323 = vst.msk [vmem:[#allocation7 - $0x4] sm:$0xf0] %vm2280, %v2321
          %2324 = vst.msk [vmem:[#allocation7] sm:$0xf0] %vm2280, %v2322
        $region100: #{fwd.5} parent=91 // pred_fallthru
          _
        // Predicated region
        $region101: #{fwd.5} parent=91 // pred_check
          %p2325 = pneg %p511
        $region102: #{fwd.5} parent=91 // pred_check_branch
          %2327 = sbr.rel (%p2325) target = $region104
        $region103: #{fwd.5} parent=91 // pred_region
          %s2328 = smul.u32 2, %s37
          %s2330 = ssub.s32 128, 128
          %2331 = vsyncadd [#allocation6], %s2330
          %s2332 = smul.addr %s2328, 64
          %s2333 = scalar_lea.hbm %s18, %s2332
          %s2334 = sshll.u32 [#allocation5], 4
          %s2335 = int_to_ptr.vmem [resolvable:$true] %s2334
          %2340 = dma.vmem_to_hbm [thread:$0]  %s2335, 128, %s2333, [#allocation6], 64, 64, 4
        $region104: #{fwd.5} parent=91 // pred_fallthru
          _
        // Predicated region
        $region105: #{fwd.5} parent=91 // pred_check
          %p2341 = pneg %p537
        $region106: #{fwd.5} parent=91 // pred_check_branch
          %2343 = sbr.rel (%p2341) target = $region108
        $region107: #{fwd.5} parent=91 // pred_region
          %s2344 = smul.u32 2, %s37
          %s2346 = ssub.s32 128, 128
          %2347 = vsyncadd [#allocation8], %s2346
          %s2348 = smul.addr %s2344, 64
          %s2349 = scalar_lea.hbm %s19, %s2348
          %s2350 = sshll.u32 [#allocation7], 4
          %s2351 = int_to_ptr.vmem [resolvable:$true] %s2350
          %2356 = dma.vmem_to_hbm [thread:$0]  %s2351, 128, %s2349, [#allocation8], 64, 64, 4
        $region108: #{fwd.5} parent=91 // pred_fallthru
          _
        // Predicated region
        $region109: #{fwd.5} parent=91 // pred_check
          %p2357 = pneg %p511
        $region110: #{fwd.5} parent=91 // pred_check_branch
          %2359 = sbr.rel (%p2357) target = $region112
        $region111: #{fwd.5} parent=91 // pred_region
          %2360 = dma.done [#allocation6], 128
        $region112: #{fwd.5} parent=91 // pred_fallthru
          _
        // Predicated region
        $region113: #{fwd.5} parent=91 // pred_check
          %p2361 = pneg %p537
        $region114: #{fwd.5} parent=91 // pred_check_branch
          %2363 = sbr.rel (%p2361) target = $region116
        $region115: #{fwd.5} parent=91 // pred_region
          %2364 = dma.done [#allocation8], 128
        $region116: #{fwd.5} parent=91 // pred_fallthru
          _
      $region92: #{fwd.5} parent=5 // pred_fallthru
        _
      %p2365 = scmp.le.s32.totalorder 2, %s28
      // Predicated region
      $region117: #{fwd.5} parent=5 // pred_check
        %p2366 = pneg %p2365
      $region118: #{fwd.5} parent=5 // pred_check_branch
        %2368 = sbr.rel (%p2366) target = $region120
      $region119: #{fwd.5} parent=5 // pred_region
        %s2369 = ssub.s32 %s28, 2
      $region120: #{fwd.5} parent=5 // pred_fallthru
        _
    $region6: #{fwd.5} parent=1 // loop_footer
      %s32 = sadd.s32 1, %s28
    $region7: #{fwd.5} parent=1 // loop_footer_branch
      %27 = sbr.rel target = $region3
    $region8: #{fwd.5} parent=1 // loop_exit
      _
    %2370 = vsyncpa [#allocation6], 1
    %s2371 = scalar_lea.sflag [#allocation6], 1
    %2372 = vsyncpa %s2371, 1
    %2373 = vsyncpa [#allocation8], 1

</llo_original>
